<compile_context>
chip_gen: v5e
topology: v5e:2x2
jax: 0.10.0
libtpu: 0.0.40
codegen_flags: <defaults>
</compile_context>

<pallas_src>
import jax
import jax.numpy as jnp
from jax import lax
from jax.experimental import pallas as pl
from jax.experimental.pallas import tpu as pltpu

# ----------------------------------------------------------------------------
# Static problem sizes (from the PyTorch module: 3x28x28 input, fc1 = 32*7*7)
# ----------------------------------------------------------------------------
B = 2                      # batch
C_IN, C1, C2 = 3, 16, 32   # channels
HP1 = WP1 = 14             # spatial after pool1
HP2 = WP2 = 7              # spatial after pool2
K1 = 9 * C_IN              # 27  im2col features, conv1
K2 = 9 * C1                # 144 im2col features, conv2
M1 = B * HP1 * WP1         # 392 rows per pool phase, conv1 (multiple of 8)
M2 = HP2 * WP2 * B         # 98  rows per pool phase, conv2 (rows ordered (h2,w2,b))
M2_PAD = 104               # padded to a multiple of 8 for aligned phase slices
FLAT = C2 * HP2 * WP2      # 1568
HID = 128


# ----------------------------------------------------------------------------
# Pallas kernels
# ----------------------------------------------------------------------------
def _conv1_kernel(p_ref, w_ref, b_ref, o_ref):
    """Fused conv1 (single im2col matmul over all phases+batch) + ReLU + 2x2 maxpool.

    p_ref: (4*M1, K1)  pool-phase im2col patches, phase-major rows
    w_ref: (K1, C1)    conv1 weight matrix, rows ordered (kh, kw, cin)
    b_ref: (1, C1)
    o_ref: (M1, C1)    pooled activations, rows ordered (b, hp, wp)
    """
    z = jnp.dot(p_ref[...], w_ref[...], preferred_element_type=jnp.float32)  # (4*M1, C1)
    # max over the 4 pool phases: static row slices at multiples of 8 -> layout-free.
    m = jnp.maximum(jnp.maximum(z[0 * M1:1 * M1], z[1 * M1:2 * M1]),
                    jnp.maximum(z[2 * M1:3 * M1], z[3 * M1:4 * M1]))
    # bias is identical across phases and ReLU is monotone, so applying them after
    # the max matches the torch relu -> maxpool order exactly.
    o_ref[...] = jnp.maximum(m + b_ref[...], 0.0)


def _conv2_fc_kernel(p_ref, w2_ref, b2_ref, wf1_ref, bf1_ref, wf2_ref, bf2_ref,
                     o_ref, y2_ref, flat_ref):
    """Fused conv2 (single matmul) + ReLU + maxpool + flatten + fc1 + ReLU + fc2.

    p_ref  : (4*M2_PAD, K2) pool-phase im2col patches of y1, phase-major rows,
             rows within a phase ordered (h2, w2, b) (rows 98..103 zero padding)
    w2_ref : (K2, C2); b2_ref: (1, C2)
    wf1_ref: (FLAT, HID) fc1 weight, rows permuted to (h2, w2, c) flatten order
    bf1_ref: (1, HID); wf2_ref: (HID, num_classes); bf2_ref: (1, num_classes)
    o_ref  : (B, num_classes)
    y2_ref : VMEM scratch (M2_PAD, C2)
    flat_ref: VMEM scratch (B, FLAT)
    """
    z = jnp.dot(p_ref[...], w2_ref[...], preferred_element_type=jnp.float32)  # (416, C2)
    m = jnp.maximum(jnp.maximum(z[0 * M2_PAD:1 * M2_PAD], z[1 * M2_PAD:2 * M2_PAD]),
                    jnp.maximum(z[2 * M2_PAD:3 * M2_PAD], z[3 * M2_PAD:4 * M2_PAD]))
    y2_ref[...] = jnp.maximum(m + b2_ref[...], 0.0)          # rows (h2, w2, b)

    # Flatten to one 1568-feature row per image, (h2, w2, c) order (matched by the
    # precomputed fc1 weight permutation).  Rows are (pixel, batch)-interleaved, so
    # every pool pixel contributes one contiguous (B, C2) chunk of lanes.
    for pix in range(HP2 * WP2):
        flat_ref[:, C2 * pix: C2 * (pix + 1)] = y2_ref[2 * pix: 2 * pix + 2, :]

    h = jnp.dot(flat_ref[...], wf1_ref[...], preferred_element_type=jnp.float32)
    h = jnp.maximum(h + bf1_ref[...], 0.0)
    o = jnp.dot(h, wf2_ref[...], preferred_element_type=jnp.float32)
    o_ref[...] = (o + bf2_ref[...]).astype(o_ref.dtype)


def conv1_pallas(p1, w1m, b1row):
    """p1: (4*M1, K1) -> (M1, C1). Single invocation, everything VMEM-resident."""
    return pl.pallas_call(
        _conv1_kernel,
        out_shape=jax.ShapeDtypeStruct((M1, C1), jnp.float32),
    )(p1, w1m, b1row)


def conv2_fc_pallas(p2, w2m, b2row, wf1, bf1row, wf2, bf2row):
    """p2: (4*M2_PAD, K2) -> (B, num_classes). conv2+pool+flatten+fc1+relu+fc2."""
    num_classes = wf2.shape[1]
    return pl.pallas_call(
        _conv2_fc_kernel,
        out_shape=jax.ShapeDtypeStruct((B, num_classes), jnp.float32),
        scratch_shapes=[pltpu.VMEM((M2_PAD, C2), jnp.float32),
                        pltpu.VMEM((B, FLAT), jnp.float32)],
    )(p2, w2m, b2row, wf1, bf1row, wf2, bf2row)


# ----------------------------------------------------------------------------
# Host-side glue (pure layout work: pool-phase im2col patch extraction)
# ----------------------------------------------------------------------------
def _phase_patches_conv1(x_nchw):
    """(B,3,28,28) -> (4*M1, K1). Rows: (phase, b, hp, wp); features: (kh, kw, cin)."""
    x = jnp.transpose(x_nchw, (0, 2, 3, 1))                       # NHWC
    xp = jnp.pad(x, ((0, 0), (1, 1), (1, 1), (0, 0)))             # (B, 30, 30, 3)
    phases = []
    for ph in range(2):
        for pw in range(2):
            cols = [xp[:, ph + kh: ph + kh + 2 * HP1: 2,
                       pw + kw: pw + kw + 2 * WP1: 2, :]
                    for kh in range(3) for kw in range(3)]
            phases.append(jnp.concatenate(cols, axis=-1).reshape(M1, K1))
    return jnp.concatenate(phases, axis=0)                        # (1568, 27)


def _phase_patches_conv2(y1):
    """y1: (M1, C1) rows (b,hp,wp) -> (4*M2_PAD, K2).
    Rows per phase ordered (h2, w2, b), zero-padded 98 -> 104; features (kh,kw,cin)."""
    y = y1.reshape(B, HP1, WP1, C1)
    yp = jnp.pad(y, ((0, 0), (1, 1), (1, 1), (0, 0)))             # (B, 16, 16, 16)
    phases = []
    for ph in range(2):
        for pw in range(2):
            cols = [yp[:, ph + kh: ph + kh + 2 * HP2: 2,
                       pw + kw: pw + kw + 2 * WP2: 2, :]
                    for kh in range(3) for kw in range(3)]
            blk = jnp.concatenate(cols, axis=-1)                  # (B, 7, 7, 144)
            blk = jnp.transpose(blk, (1, 2, 0, 3)).reshape(M2, K2)  # rows (h2,w2,b)
            blk = jnp.pad(blk, ((0, M2_PAD - M2), (0, 0)))
            phases.append(blk)
    return jnp.concatenate(phases, axis=0)                        # (416, 144)


# ----------------------------------------------------------------------------
# Static weight re-layouts, hoisted out of the per-call path (done once)
# ----------------------------------------------------------------------------
def prepare_params(params):
    w1, b1, w2, b2, wfc1, bfc1, wfc2, bfc2 = params
    w1m = jnp.transpose(w1, (2, 3, 1, 0)).reshape(K1, C1)         # (kh,kw,cin) rows
    w2m = jnp.transpose(w2, (2, 3, 1, 0)).reshape(K2, C2)
    # fc1: permute torch (c,h,w) flatten-order columns to our (h,w,c) order, then
    # transpose for right-multiplication.
    wf1 = jnp.transpose(wfc1.reshape(HID, C2, HP2 * WP2), (0, 2, 1)) \
             .reshape(HID, FLAT).T                                # (1568, 128)
    wf2 = wfc2.T                                                  # (128, num_classes)
    return (w1m, b1.reshape(1, C1), w2m, b2.reshape(1, C2),
            wf1, bfc1.reshape(1, HID), wf2, bfc2.reshape(1, -1))


def basic_cnn_forward(x_nchw, prep):
    w1m, b1r, w2m, b2r, wf1, bf1r, wf2, bf2r = prep
    p1 = _phase_patches_conv1(x_nchw)                             # layout glue only
    y1 = conv1_pallas(p1, w1m, b1r)                               # conv1+relu+pool
    p2 = _phase_patches_conv2(y1)                                 # layout glue only
    return conv2_fc_pallas(p2, w2m, b2r, wf1, bf1r, wf2, bf2r)    # conv2..fc2 fused


# ----------------------------------------------------------------------------
# Pure-JAX reference (for correctness check)
# ----------------------------------------------------------------------------
def _ref_pool(y_nchw):
    b, c, h, w = y_nchw.shape
    return y_nchw.reshape(b, c, h // 2, 2, w // 2, 2).max(axis=(3, 5))


def basic_cnn_reference(x_nchw, params):
    w1, b1, w2, b2, wfc1, bfc1, wfc2, bfc2 = params
    dn = ("NCHW", "OIHW", "NCHW")
    y = lax.conv_general_dilated(x_nchw, w1, (1, 1), ((1, 1), (1, 1)),
                                 dimension_numbers=dn) + b1[None, :, None, None]
    y = _ref_pool(jax.nn.relu(y))
    y = lax.conv_general_dilated(y, w2, (1, 1), ((1, 1), (1, 1)),
                                 dimension_numbers=dn) + b2[None, :, None, None]
    y = _ref_pool(jax.nn.relu(y))
    flat = y.reshape(y.shape[0], -1)
    h = jax.nn.relu(flat @ wfc1.T + bfc1)
    return h @ wfc2.T + bfc2


# ----------------------------------------------------------------------------
# Main
# ----------------------------------------------------------------------------
if __name__ == "__main__":
    num_classes = 10

    key = jax.random.PRNGKey(0)
    keys = jax.random.split(key, 9)

    # Deterministic synthetic parameters (PyTorch layouts / shapes).
    w1 = jax.random.normal(keys[0], (C1, C_IN, 3, 3), jnp.float32) * 0.1
    b1 = jax.random.normal(keys[1], (C1,), jnp.float32) * 0.1
    w2 = jax.random.normal(keys[2], (C2, C1, 3, 3), jnp.float32) * 0.05
    b2 = jax.random.normal(keys[3], (C2,), jnp.float32) * 0.05
    wfc1 = jax.random.normal(keys[4], (HID, FLAT), jnp.float32) * 0.02
    bfc1 = jax.random.normal(keys[5], (HID,), jnp.float32) * 0.02
    wfc2 = jax.random.normal(keys[6], (num_classes, HID), jnp.float32) * 0.05
    bfc2 = jax.random.normal(keys[7], (num_classes,), jnp.float32) * 0.05
    params = (w1, b1, w2, b2, wfc1, bfc1, wfc2, bfc2)

    # Static weight re-layouts hoisted out of the jitted forward (perf-review item).
    prep = prepare_params(params)

    # Input: spatial size must be 28x28 for fc1's 32*7*7 input features.
    x = jax.random.normal(keys[8], (B, C_IN, 28, 28), jnp.float32)

    fwd = jax.jit(basic_cnn_forward)
    out = jax.block_until_ready(fwd(x, prep))

    ref = basic_cnn_reference(x, params)
    assert out.shape == (B, num_classes), out.shape
    max_err = float(jnp.max(jnp.abs(out - ref)))
    assert max_err < 1e-3, f"mismatch vs reference: {max_err}"

    print("KERNEL_OK")
</pallas_src>

<mosaic_0001>
module attributes {stable_mosaic.version = 11 : i64} {
  func.func @_conv1_kernel(%arg0: memref<1568x27xf32, #tpu.memory_space<vmem>>, %arg1: memref<27x16xf32, #tpu.memory_space<vmem>>, %arg2: memref<1x16xf32, #tpu.memory_space<vmem>>, %arg3: memref<392x16xf32, #tpu.memory_space<vmem>>) attributes {dimension_semantics = [], scalar_prefetch = 0 : i64, scratch_operands = 0 : i64, tpu.core_type = #tpu.core_type<tc>} {
    %c0 = arith.constant 0 : index
    %c0_0 = arith.constant 0 : index
    %0 = vector.load %arg0[%c0, %c0_0] : memref<1568x27xf32, #tpu.memory_space<vmem>>, vector<1568x27xf32>
    %c0_1 = arith.constant 0 : index
    %c0_2 = arith.constant 0 : index
    %1 = vector.load %arg1[%c0_1, %c0_2] : memref<27x16xf32, #tpu.memory_space<vmem>>, vector<27x16xf32>
    %cst = arith.constant dense<0.000000e+00> : vector<1568x16xf32>
    %2 = tpu.matmul %0, %1, %cst {dimension_numbers = #tpu.dot_dimension_numbers<[1], [0], [0], [1], [0, 0, 1, 1], [], []>} : vector<1568x27xf32>, vector<27x16xf32>, vector<1568x16xf32> -> vector<1568x16xf32>
    %3 = vector.extract_strided_slice %2 {offsets = [0, 0], sizes = [392, 16], strides = [1, 1]} : vector<1568x16xf32> to vector<392x16xf32>
    %4 = vector.extract_strided_slice %2 {offsets = [392, 0], sizes = [392, 16], strides = [1, 1]} : vector<1568x16xf32> to vector<392x16xf32>
    %5 = arith.maximumf %3, %4 : vector<392x16xf32>
    %6 = vector.extract_strided_slice %2 {offsets = [784, 0], sizes = [392, 16], strides = [1, 1]} : vector<1568x16xf32> to vector<392x16xf32>
    %7 = vector.extract_strided_slice %2 {offsets = [1176, 0], sizes = [392, 16], strides = [1, 1]} : vector<1568x16xf32> to vector<392x16xf32>
    %8 = arith.maximumf %6, %7 : vector<392x16xf32>
    %9 = arith.maximumf %5, %8 : vector<392x16xf32>
    %c0_3 = arith.constant 0 : index
    %c0_4 = arith.constant 0 : index
    %10 = vector.load %arg2[%c0_3, %c0_4] : memref<1x16xf32, #tpu.memory_space<vmem>>, vector<1x16xf32>
    %11 = vector.broadcast %10 : vector<1x16xf32> to vector<392x16xf32>
    %12 = arith.addf %9, %11 : vector<392x16xf32>
    %cst_5 = arith.constant 0.000000e+00 : f32
    %13 = vector.broadcast %cst_5 : f32 to vector<392x16xf32>
    %14 = arith.maximumf %12, %13 : vector<392x16xf32>
    %c0_6 = arith.constant 0 : index
    %c0_7 = arith.constant 0 : index
    %15 = vector.load %arg3[%c0_6, %c0_7] : memref<392x16xf32, #tpu.memory_space<vmem>>, vector<392x16xf32>
    tpu.vector_store %arg3[%c0_6, %c0_7], %14 {strides = array<i32>} : memref<392x16xf32, #tpu.memory_space<vmem>>, vector<392x16xf32>,
    return
  }
}

module attributes {stable_mosaic.version = 11 : i64} {
  func.func @_conv2_fc_kernel(%arg0: memref<416x144xf32, #tpu.memory_space<vmem>>, %arg1: memref<144x32xf32, #tpu.memory_space<vmem>>, %arg2: memref<1x32xf32, #tpu.memory_space<vmem>>, %arg3: memref<1568x128xf32, #tpu.memory_space<vmem>>, %arg4: memref<1x128xf32, #tpu.memory_space<vmem>>, %arg5: memref<128x10xf32, #tpu.memory_space<vmem>>, %arg6: memref<1x10xf32, #tpu.memory_space<vmem>>, %arg7: memref<2x10xf32, #tpu.memory_space<vmem>>, %arg8: memref<104x32xf32, #tpu.memory_space<vmem>>, %arg9: memref<2x1568xf32, #tpu.memory_space<vmem>>) attributes {dimension_semantics = [], scalar_prefetch = 0 : i64, scratch_operands = 2 : i64, tpu.core_type = #tpu.core_type<tc>} {
    %c0 = arith.constant 0 : index
    %c0_0 = arith.constant 0 : index
    %0 = vector.load %arg0[%c0, %c0_0] : memref<416x144xf32, #tpu.memory_space<vmem>>, vector<416x144xf32>
    %c0_1 = arith.constant 0 : index
    %c0_2 = arith.constant 0 : index
    %1 = vector.load %arg1[%c0_1, %c0_2] : memref<144x32xf32, #tpu.memory_space<vmem>>, vector<144x32xf32>
    %cst = arith.constant dense<0.000000e+00> : vector<416x32xf32>
    %2 = tpu.matmul %0, %1, %cst {dimension_numbers = #tpu.dot_dimension_numbers<[1], [0], [0], [1], [0, 0, 1, 1], [], []>} : vector<416x144xf32>, vector<144x32xf32>, vector<416x32xf32> -> vector<416x32xf32>
    %3 = vector.extract_strided_slice %2 {offsets = [0, 0], sizes = [104, 32], strides = [1, 1]} : vector<416x32xf32> to vector<104x32xf32>
    %4 = vector.extract_strided_slice %2 {offsets = [104, 0], sizes = [104, 32], strides = [1, 1]} : vector<416x32xf32> to vector<104x32xf32>
    %5 = arith.maximumf %3, %4 : vector<104x32xf32>
    %6 = vector.extract_strided_slice %2 {offsets = [208, 0], sizes = [104, 32], strides = [1, 1]} : vector<416x32xf32> to vector<104x32xf32>
    %7 = vector.extract_strided_slice %2 {offsets = [312, 0], sizes = [104, 32], strides = [1, 1]} : vector<416x32xf32> to vector<104x32xf32>
    %8 = arith.maximumf %6, %7 : vector<104x32xf32>
    %9 = arith.maximumf %5, %8 : vector<104x32xf32>
    %c0_3 = arith.constant 0 : index
    %c0_4 = arith.constant 0 : index
    %10 = vector.load %arg2[%c0_3, %c0_4] : memref<1x32xf32, #tpu.memory_space<vmem>>, vector<1x32xf32>
    %11 = vector.broadcast %10 : vector<1x32xf32> to vector<104x32xf32>
    %12 = arith.addf %9, %11 : vector<104x32xf32>
    %cst_5 = arith.constant 0.000000e+00 : f32
    %13 = vector.broadcast %cst_5 : f32 to vector<104x32xf32>
    %14 = arith.maximumf %12, %13 : vector<104x32xf32>
    %c0_6 = arith.constant 0 : index
    %c0_7 = arith.constant 0 : index
    %15 = vector.load %arg8[%c0_6, %c0_7] : memref<104x32xf32, #tpu.memory_space<vmem>>, vector<104x32xf32>
    tpu.vector_store %arg8[%c0_6, %c0_7], %14 {strides = array<i32>} : memref<104x32xf32, #tpu.memory_space<vmem>>, vector<104x32xf32>,
    %c0_8 = arith.constant 0 : index
    %c0_9 = arith.constant 0 : index
    %16 = vector.load %arg8[%c0_8, %c0_9] : memref<104x32xf32, #tpu.memory_space<vmem>>, vector<2x32xf32>
    %c0_10 = arith.constant 0 : index
    %c0_11 = arith.constant 0 : index
    %17 = vector.load %arg9[%c0_10, %c0_11] : memref<2x1568xf32, #tpu.memory_space<vmem>>, vector<2x32xf32>
    tpu.vector_store %arg9[%c0_10, %c0_11], %16 {strides = array<i32>} : memref<2x1568xf32, #tpu.memory_space<vmem>>, vector<2x32xf32>,
    %c2 = arith.constant 2 : index
    %c0_12 = arith.constant 0 : index
    %18 = vector.load %arg8[%c2, %c0_12] : memref<104x32xf32, #tpu.memory_space<vmem>>, vector<2x32xf32>
    %c0_13 = arith.constant 0 : index
    %c32 = arith.constant 32 : index
    %19 = vector.load %arg9[%c0_13, %c32] : memref<2x1568xf32, #tpu.memory_space<vmem>>, vector<2x32xf32>
    tpu.vector_store %arg9[%c0_13, %c32], %18 {strides = array<i32>} : memref<2x1568xf32, #tpu.memory_space<vmem>>, vector<2x32xf32>,
    %c4 = arith.constant 4 : index
    %c0_14 = arith.constant 0 : index
    %20 = vector.load %arg8[%c4, %c0_14] : memref<104x32xf32, #tpu.memory_space<vmem>>, vector<2x32xf32>
    %c0_15 = arith.constant 0 : index
    %c64 = arith.constant 64 : index
    %21 = vector.load %arg9[%c0_15, %c64] : memref<2x1568xf32, #tpu.memory_space<vmem>>, vector<2x32xf32>
    tpu.vector_store %arg9[%c0_15, %c64], %20 {strides = array<i32>} : memref<2x1568xf32, #tpu.memory_space<vmem>>, vector<2x32xf32>,
    %c6 = arith.constant 6 : index
    %c0_16 = arith.constant 0 : index
    %22 = vector.load %arg8[%c6, %c0_16] : memref<104x32xf32, #tpu.memory_space<vmem>>, vector<2x32xf32>
    %c0_17 = arith.constant 0 : index
    %c96 = arith.constant 96 : index
    %23 = vector.load %arg9[%c0_17, %c96] : memref<2x1568xf32, #tpu.memory_space<vmem>>, vector<2x32xf32>
    tpu.vector_store %arg9[%c0_17, %c96], %22 {strides = array<i32>} : memref<2x1568xf32, #tpu.memory_space<vmem>>, vector<2x32xf32>,
    %c8 = arith.constant 8 : index
    %c0_18 = arith.constant 0 : index
    %24 = vector.load %arg8[%c8, %c0_18] : memref<104x32xf32, #tpu.memory_space<vmem>>, vector<2x32xf32>
    %c0_19 = arith.constant 0 : index
    %c128 = arith.constant 128 : index
    %25 = vector.load %arg9[%c0_19, %c128] : memref<2x1568xf32, #tpu.memory_space<vmem>>, vector<2x32xf32>
    tpu.vector_store %arg9[%c0_19, %c128], %24 {strides = array<i32>} : memref<2x1568xf32, #tpu.memory_space<vmem>>, vector<2x32xf32>,
    %c10 = arith.constant 10 : index
    %c0_20 = arith.constant 0 : index
    %26 = vector.load %arg8[%c10, %c0_20] : memref<104x32xf32, #tpu.memory_space<vmem>>, vector<2x32xf32>
    %c0_21 = arith.constant 0 : index
    %c160 = arith.constant 160 : index
    %27 = vector.load %arg9[%c0_21, %c160] : memref<2x1568xf32, #tpu.memory_space<vmem>>, vector<2x32xf32>
    tpu.vector_store %arg9[%c0_21, %c160], %26 {strides = array<i32>} : memref<2x1568xf32, #tpu.memory_space<vmem>>, vector<2x32xf32>,
    %c12 = arith.constant 12 : index
    %c0_22 = arith.constant 0 : index
    %28 = vector.load %arg8[%c12, %c0_22] : memref<104x32xf32, #tpu.memory_space<vmem>>, vector<2x32xf32>
    %c0_23 = arith.constant 0 : index
    %c192 = arith.constant 192 : index
    %29 = vector.load %arg9[%c0_23, %c192] : memref<2x1568xf32, #tpu.memory_space<vmem>>, vector<2x32xf32>
    tpu.vector_store %arg9[%c0_23, %c192], %28 {strides = array<i32>} : memref<2x1568xf32, #tpu.memory_space<vmem>>, vector<2x32xf32>,
    %c14 = arith.constant 14 : index
    %c0_24 = arith.constant 0 : index
    %30 = vector.load %arg8[%c14, %c0_24] : memref<104x32xf32, #tpu.memory_space<vmem>>, vector<2x32xf32>
    %c0_25 = arith.constant 0 : index
    %c224 = arith.constant 224 : index
    %31 = vector.load %arg9[%c0_25, %c224] : memref<2x1568xf32, #tpu.memory_space<vmem>>, vector<2x32xf32>
    tpu.vector_store %arg9[%c0_25, %c224], %30 {strides = array<i32>} : memref<2x1568xf32, #tpu.memory_space<vmem>>, vector<2x32xf32>,
    %c16 = arith.constant 16 : index
    %c0_26 = arith.constant 0 : index
    %32 = vector.load %arg8[%c16, %c0_26] : memref<104x32xf32, #tpu.memory_space<vmem>>, vector<2x32xf32>
    %c0_27 = arith.constant 0 : index
    %c256 = arith.constant 256 : index
    %33 = vector.load %arg9[%c0_27, %c256] : memref<2x1568xf32, #tpu.memory_space<vmem>>, vector<2x32xf32>
    tpu.vector_store %arg9[%c0_27, %c256], %32 {strides = array<i32>} : memref<2x1568xf32, #tpu.memory_space<vmem>>, vector<2x32xf32>,
    %c18 = arith.constant 18 : index
    %c0_28 = arith.constant 0 : index
    %34 = vector.load %arg8[%c18, %c0_28] : memref<104x32xf32, #tpu.memory_space<vmem>>, vector<2x32xf32>
    %c0_29 = arith.constant 0 : index
    %c288 = arith.constant 288 : index
    %35 = vector.load %arg9[%c0_29, %c288] : memref<2x1568xf32, #tpu.memory_space<vmem>>, vector<2x32xf32>
    tpu.vector_store %arg9[%c0_29, %c288], %34 {strides = array<i32>} : memref<2x1568xf32, #tpu.memory_space<vmem>>, vector<2x32xf32>,
    %c20 = arith.constant 20 : index
    %c0_30 = arith.constant 0 : index
    %36 = vector.load %arg8[%c20, %c0_30] : memref<104x32xf32, #tpu.memory_space<vmem>>, vector<2x32xf32>
    %c0_31 = arith.constant 0 : index
    %c320 = arith.constant 320 : index
    %37 = vector.load %arg9[%c0_31, %c320] : memref<2x1568xf32, #tpu.memory_space<vmem>>, vector<2x32xf32>
    tpu.vector_store %arg9[%c0_31, %c320], %36 {strides = array<i32>} : memref<2x1568xf32, #tpu.memory_space<vmem>>, vector<2x32xf32>,
    %c22 = arith.constant 22 : index
    %c0_32 = arith.constant 0 : index
    %38 = vector.load %arg8[%c22, %c0_32] : memref<104x32xf32, #tpu.memory_space<vmem>>, vector<2x32xf32>
    %c0_33 = arith.constant 0 : index
    %c352 = arith.constant 352 : index
    %39 = vector.load %arg9[%c0_33, %c352] : memref<2x1568xf32, #tpu.memory_space<vmem>>, vector<2x32xf32>
    tpu.vector_store %arg9[%c0_33, %c352], %38 {strides = array<i32>} : memref<2x1568xf32, #tpu.memory_space<vmem>>, vector<2x32xf32>,
    %c24 = arith.constant 24 : index
    %c0_34 = arith.constant 0 : index
    %40 = vector.load %arg8[%c24, %c0_34] : memref<104x32xf32, #tpu.memory_space<vmem>>, vector<2x32xf32>
    %c0_35 = arith.constant 0 : index
    %c384 = arith.constant 384 : index
    %41 = vector.load %arg9[%c0_35, %c384] : memref<2x1568xf32, #tpu.memory_space<vmem>>, vector<2x32xf32>
    tpu.vector_store %arg9[%c0_35, %c384], %40 {strides = array<i32>} : memref<2x1568xf32, #tpu.memory_space<vmem>>, vector<2x32xf32>,
    %c26 = arith.constant 26 : index
    %c0_36 = arith.constant 0 : index
    %42 = vector.load %arg8[%c26, %c0_36] : memref<104x32xf32, #tpu.memory_space<vmem>>, vector<2x32xf32>
    %c0_37 = arith.constant 0 : index
    %c416 = arith.constant 416 : index
    %43 = vector.load %arg9[%c0_37, %c416] : memref<2x1568xf32, #tpu.memory_space<vmem>>, vector<2x32xf32>
    tpu.vector_store %arg9[%c0_37, %c416], %42 {strides = array<i32>} : memref<2x1568xf32, #tpu.memory_space<vmem>>, vector<2x32xf32>,
    %c28 = arith.constant 28 : index
    %c0_38 = arith.constant 0 : index
    %44 = vector.load %arg8[%c28, %c0_38] : memref<104x32xf32, #tpu.memory_space<vmem>>, vector<2x32xf32>
    %c0_39 = arith.constant 0 : index
    %c448 = arith.constant 448 : index
    %45 = vector.load %arg9[%c0_39, %c448] : memref<2x1568xf32, #tpu.memory_space<vmem>>, vector<2x32xf32>
    tpu.vector_store %arg9[%c0_39, %c448], %44 {strides = array<i32>} : memref<2x1568xf32, #tpu.memory_space<vmem>>, vector<2x32xf32>,
    %c30 = arith.constant 30 : index
    %c0_40 = arith.constant 0 : index
    %46 = vector.load %arg8[%c30, %c0_40] : memref<104x32xf32, #tpu.memory_space<vmem>>, vector<2x32xf32>
    %c0_41 = arith.constant 0 : index
    %c480 = arith.constant 480 : index
    %47 = vector.load %arg9[%c0_41, %c480] : memref<2x1568xf32, #tpu.memory_space<vmem>>, vector<2x32xf32>
    tpu.vector_store %arg9[%c0_41, %c480], %46 {strides = array<i32>} : memref<2x1568xf32, #tpu.memory_space<vmem>>, vector<2x32xf32>,
    %c32_42 = arith.constant 32 : index
    %c0_43 = arith.constant 0 : index
    %48 = vector.load %arg8[%c32_42, %c0_43] : memref<104x32xf32, #tpu.memory_space<vmem>>, vector<2x32xf32>
    %c0_44 = arith.constant 0 : index
    %c512 = arith.constant 512 : index
    %49 = vector.load %arg9[%c0_44, %c512] : memref<2x1568xf32, #tpu.memory_space<vmem>>, vector<2x32xf32>
    tpu.vector_store %arg9[%c0_44, %c512], %48 {strides = array<i32>} : memref<2x1568xf32, #tpu.memory_space<vmem>>, vector<2x32xf32>,
    %c34 = arith.constant 34 : index
    %c0_45 = arith.constant 0 : index
    %50 = vector.load %arg8[%c34, %c0_45] : memref<104x32xf32, #tpu.memory_space<vmem>>, vector<2x32xf32>
    %c0_46 = arith.constant 0 : index
    %c544 = arith.constant 544 : index
    %51 = vector.load %arg9[%c0_46, %c544] : memref<2x1568xf32, #tpu.memory_space<vmem>>, vector<2x32xf32>
    tpu.vector_store %arg9[%c0_46, %c544], %50 {strides = array<i32>} : memref<2x1568xf32, #tpu.memory_space<vmem>>, vector<2x32xf32>,
    %c36 = arith.constant 36 : index
    %c0_47 = arith.constant 0 : index
    %52 = vector.load %arg8[%c36, %c0_47] : memref<104x32xf32, #tpu.memory_space<vmem>>, vector<2x32xf32>
    %c0_48 = arith.constant 0 : index
    %c576 = arith.constant 576 : index
    %53 = vector.load %arg9[%c0_48, %c576] : memref<2x1568xf32, #tpu.memory_space<vmem>>, vector<2x32xf32>
    tpu.vector_store %arg9[%c0_48, %c576], %52 {strides = array<i32>} : memref<2x1568xf32, #tpu.memory_space<vmem>>, vector<2x32xf32>,
    %c38 = arith.constant 38 : index
    %c0_49 = arith.constant 0 : index
    %54 = vector.load %arg8[%c38, %c0_49] : memref<104x32xf32, #tpu.memory_space<vmem>>, vector<2x32xf32>
    %c0_50 = arith.constant 0 : index
    %c608 = arith.constant 608 : index
    %55 = vector.load %arg9[%c0_50, %c608] : memref<2x1568xf32, #tpu.memory_space<vmem>>, vector<2x32xf32>
    tpu.vector_store %arg9[%c0_50, %c608], %54 {strides = array<i32>} : memref<2x1568xf32, #tpu.memory_space<vmem>>, vector<2x32xf32>,
    %c40 = arith.constant 40 : index
    %c0_51 = arith.constant 0 : index
    %56 = vector.load %arg8[%c40, %c0_51] : memref<104x32xf32, #tpu.memory_space<vmem>>, vector<2x32xf32>
    %c0_52 = arith.constant 0 : index
    %c640 = arith.constant 640 : index
    %57 = vector.load %arg9[%c0_52, %c640] : memref<2x1568xf32, #tpu.memory_space<vmem>>, vector<2x32xf32>
    tpu.vector_store %arg9[%c0_52, %c640], %56 {strides = array<i32>} : memref<2x1568xf32, #tpu.memory_space<vmem>>, vector<2x32xf32>,
    %c42 = arith.constant 42 : index
    %c0_53 = arith.constant 0 : index
    %58 = vector.load %arg8[%c42, %c0_53] : memref<104x32xf32, #tpu.memory_space<vmem>>, vector<2x32xf32>
    %c0_54 = arith.constant 0 : index
    %c672 = arith.constant 672 : index
    %59 = vector.load %arg9[%c0_54, %c672] : memref<2x1568xf32, #tpu.memory_space<vmem>>, vector<2x32xf32>
    tpu.vector_store %arg9[%c0_54, %c672], %58 {strides = array<i32>} : memref<2x1568xf32, #tpu.memory_space<vmem>>, vector<2x32xf32>,
    %c44 = arith.constant 44 : index
    %c0_55 = arith.constant 0 : index
    %60 = vector.load %arg8[%c44, %c0_55] : memref<104x32xf32, #tpu.memory_space<vmem>>, vector<2x32xf32>
    %c0_56 = arith.constant 0 : index
    %c704 = arith.constant 704 : index
    %61 = vector.load %arg9[%c0_56, %c704] : memref<2x1568xf32, #tpu.memory_space<vmem>>, vector<2x32xf32>
    tpu.vector_store %arg9[%c0_56, %c704], %60 {strides = array<i32>} : memref<2x1568xf32, #tpu.memory_space<vmem>>, vector<2x32xf32>,
    %c46 = arith.constant 46 : index
    %c0_57 = arith.constant 0 : index
    %62 = vector.load %arg8[%c46, %c0_57] : memref<104x32xf32, #tpu.memory_space<vmem>>, vector<2x32xf32>
    %c0_58 = arith.constant 0 : index
    %c736 = arith.constant 736 : index
    %63 = vector.load %arg9[%c0_58, %c736] : memref<2x1568xf32, #tpu.memory_space<vmem>>, vector<2x32xf32>
    tpu.vector_store %arg9[%c0_58, %c736], %62 {strides = array<i32>} : memref<2x1568xf32, #tpu.memory_space<vmem>>, vector<2x32xf32>,
    %c48 = arith.constant 48 : index
    %c0_59 = arith.constant 0 : index
    %64 = vector.load %arg8[%c48, %c0_59] : memref<104x32xf32, #tpu.memory_space<vmem>>, vector<2x32xf32>
    %c0_60 = arith.constant 0 : index
    %c768 = arith.constant 768 : index
    %65 = vector.load %arg9[%c0_60, %c768] : memref<2x1568xf32, #tpu.memory_space<vmem>>, vector<2x32xf32>
    tpu.vector_store %arg9[%c0_60, %c768], %64 {strides = array<i32>} : memref<2x1568xf32, #tpu.memory_space<vmem>>, vector<2x32xf32>,
    %c50 = arith.constant 50 : index
    %c0_61 = arith.constant 0 : index
    %66 = vector.load %arg8[%c50, %c0_61] : memref<104x32xf32, #tpu.memory_space<vmem>>, vector<2x32xf32>
    %c0_62 = arith.constant 0 : index
    %c800 = arith.constant 800 : index
    %67 = vector.load %arg9[%c0_62, %c800] : memref<2x1568xf32, #tpu.memory_space<vmem>>, vector<2x32xf32>
    tpu.vector_store %arg9[%c0_62, %c800], %66 {strides = array<i32>} : memref<2x1568xf32, #tpu.memory_space<vmem>>, vector<2x32xf32>,
    %c52 = arith.constant 52 : index
    %c0_63 = arith.constant 0 : index
    %68 = vector.load %arg8[%c52, %c0_63] : memref<104x32xf32, #tpu.memory_space<vmem>>, vector<2x32xf32>
    %c0_64 = arith.constant 0 : index
    %c832 = arith.constant 832 : index
    %69 = vector.load %arg9[%c0_64, %c832] : memref<2x1568xf32, #tpu.memory_space<vmem>>, vector<2x32xf32>
    tpu.vector_store %arg9[%c0_64, %c832], %68 {strides = array<i32>} : memref<2x1568xf32, #tpu.memory_space<vmem>>, vector<2x32xf32>,
    %c54 = arith.constant 54 : index
    %c0_65 = arith.constant 0 : index
    %70 = vector.load %arg8[%c54, %c0_65] : memref<104x32xf32, #tpu.memory_space<vmem>>, vector<2x32xf32>
    %c0_66 = arith.constant 0 : index
    %c864 = arith.constant 864 : index
    %71 = vector.load %arg9[%c0_66, %c864] : memref<2x1568xf32, #tpu.memory_space<vmem>>, vector<2x32xf32>
    tpu.vector_store %arg9[%c0_66, %c864], %70 {strides = array<i32>} : memref<2x1568xf32, #tpu.memory_space<vmem>>, vector<2x32xf32>,
    %c56 = arith.constant 56 : index
    %c0_67 = arith.constant 0 : index
    %72 = vector.load %arg8[%c56, %c0_67] : memref<104x32xf32, #tpu.memory_space<vmem>>, vector<2x32xf32>
    %c0_68 = arith.constant 0 : index
    %c896 = arith.constant 896 : index
    %73 = vector.load %arg9[%c0_68, %c896] : memref<2x1568xf32, #tpu.memory_space<vmem>>, vector<2x32xf32>
    tpu.vector_store %arg9[%c0_68, %c896], %72 {strides = array<i32>} : memref<2x1568xf32, #tpu.memory_space<vmem>>, vector<2x32xf32>,
    %c58 = arith.constant 58 : index
    %c0_69 = arith.constant 0 : index
    %74 = vector.load %arg8[%c58, %c0_69] : memref<104x32xf32, #tpu.memory_space<vmem>>, vector<2x32xf32>
    %c0_70 = arith.constant 0 : index
    %c928 = arith.constant 928 : index
    %75 = vector.load %arg9[%c0_70, %c928] : memref<2x1568xf32, #tpu.memory_space<vmem>>, vector<2x32xf32>
    tpu.vector_store %arg9[%c0_70, %c928], %74 {strides = array<i32>} : memref<2x1568xf32, #tpu.memory_space<vmem>>, vector<2x32xf32>,
    %c60 = arith.constant 60 : index
    %c0_71 = arith.constant 0 : index
    %76 = vector.load %arg8[%c60, %c0_71] : memref<104x32xf32, #tpu.memory_space<vmem>>, vector<2x32xf32>
    %c0_72 = arith.constant 0 : index
    %c960 = arith.constant 960 : index
    %77 = vector.load %arg9[%c0_72, %c960] : memref<2x1568xf32, #tpu.memory_space<vmem>>, vector<2x32xf32>
    tpu.vector_store %arg9[%c0_72, %c960], %76 {strides = array<i32>} : memref<2x1568xf32, #tpu.memory_space<vmem>>, vector<2x32xf32>,
    %c62 = arith.constant 62 : index
    %c0_73 = arith.constant 0 : index
    %78 = vector.load %arg8[%c62, %c0_73] : memref<104x32xf32, #tpu.memory_space<vmem>>, vector<2x32xf32>
    %c0_74 = arith.constant 0 : index
    %c992 = arith.constant 992 : index
    %79 = vector.load %arg9[%c0_74, %c992] : memref<2x1568xf32, #tpu.memory_space<vmem>>, vector<2x32xf32>
    tpu.vector_store %arg9[%c0_74, %c992], %78 {strides = array<i32>} : memref<2x1568xf32, #tpu.memory_space<vmem>>, vector<2x32xf32>,
    %c64_75 = arith.constant 64 : index
    %c0_76 = arith.constant 0 : index
    %80 = vector.load %arg8[%c64_75, %c0_76] : memref<104x32xf32, #tpu.memory_space<vmem>>, vector<2x32xf32>
    %c0_77 = arith.constant 0 : index
    %c1024 = arith.constant 1024 : index
    %81 = vector.load %arg9[%c0_77, %c1024] : memref<2x1568xf32, #tpu.memory_space<vmem>>, vector<2x32xf32>
    tpu.vector_store %arg9[%c0_77, %c1024], %80 {strides = array<i32>} : memref<2x1568xf32, #tpu.memory_space<vmem>>, vector<2x32xf32>,
    %c66 = arith.constant 66 : index
    %c0_78 = arith.constant 0 : index
    %82 = vector.load %arg8[%c66, %c0_78] : memref<104x32xf32, #tpu.memory_space<vmem>>, vector<2x32xf32>
    %c0_79 = arith.constant 0 : index
    %c1056 = arith.constant 1056 : index
    %83 = vector.load %arg9[%c0_79, %c1056] : memref<2x1568xf32, #tpu.memory_space<vmem>>, vector<2x32xf32>
    tpu.vector_store %arg9[%c0_79, %c1056], %82 {strides = array<i32>} : memref<2x1568xf32, #tpu.memory_space<vmem>>, vector<2x32xf32>,
    %c68 = arith.constant 68 : index
    %c0_80 = arith.constant 0 : index
    %84 = vector.load %arg8[%c68, %c0_80] : memref<104x32xf32, #tpu.memory_space<vmem>>, vector<2x32xf32>
    %c0_81 = arith.constant 0 : index
    %c1088 = arith.constant 1088 : index
    %85 = vector.load %arg9[%c0_81, %c1088] : memref<2x1568xf32, #tpu.memory_space<vmem>>, vector<2x32xf32>
    tpu.vector_store %arg9[%c0_81, %c1088], %84 {strides = array<i32>} : memref<2x1568xf32, #tpu.memory_space<vmem>>, vector<2x32xf32>,
    %c70 = arith.constant 70 : index
    %c0_82 = arith.constant 0 : index
    %86 = vector.load %arg8[%c70, %c0_82] : memref<104x32xf32, #tpu.memory_space<vmem>>, vector<2x32xf32>
    %c0_83 = arith.constant 0 : index
    %c1120 = arith.constant 1120 : index
    %87 = vector.load %arg9[%c0_83, %c1120] : memref<2x1568xf32, #tpu.memory_space<vmem>>, vector<2x32xf32>
    tpu.vector_store %arg9[%c0_83, %c1120], %86 {strides = array<i32>} : memref<2x1568xf32, #tpu.memory_space<vmem>>, vector<2x32xf32>,
    %c72 = arith.constant 72 : index
    %c0_84 = arith.constant 0 : index
    %88 = vector.load %arg8[%c72, %c0_84] : memref<104x32xf32, #tpu.memory_space<vmem>>, vector<2x32xf32>
    %c0_85 = arith.constant 0 : index
    %c1152 = arith.constant 1152 : index
    %89 = vector.load %arg9[%c0_85, %c1152] : memref<2x1568xf32, #tpu.memory_space<vmem>>, vector<2x32xf32>
    tpu.vector_store %arg9[%c0_85, %c1152], %88 {strides = array<i32>} : memref<2x1568xf32, #tpu.memory_space<vmem>>, vector<2x32xf32>,
    %c74 = arith.constant 74 : index
    %c0_86 = arith.constant 0 : index
    %90 = vector.load %arg8[%c74, %c0_86] : memref<104x32xf32, #tpu.memory_space<vmem>>, vector<2x32xf32>
    %c0_87 = arith.constant 0 : index
    %c1184 = arith.constant 1184 : index
    %91 = vector.load %arg9[%c0_87, %c1184] : memref<2x1568xf32, #tpu.memory_space<vmem>>, vector<2x32xf32>
    tpu.vector_store %arg9[%c0_87, %c1184], %90 {strides = array<i32>} : memref<2x1568xf32, #tpu.memory_space<vmem>>, vector<2x32xf32>,
    %c76 = arith.constant 76 : index
    %c0_88 = arith.constant 0 : index
    %92 = vector.load %arg8[%c76, %c0_88] : memref<104x32xf32, #tpu.memory_space<vmem>>, vector<2x32xf32>
    %c0_89 = arith.constant 0 : index
    %c1216 = arith.constant 1216 : index
    %93 = vector.load %arg9[%c0_89, %c1216] : memref<2x1568xf32, #tpu.memory_space<vmem>>, vector<2x32xf32>
    tpu.vector_store %arg9[%c0_89, %c1216], %92 {strides = array<i32>} : memref<2x1568xf32, #tpu.memory_space<vmem>>, vector<2x32xf32>,
    %c78 = arith.constant 78 : index
    %c0_90 = arith.constant 0 : index
    %94 = vector.load %arg8[%c78, %c0_90] : memref<104x32xf32, #tpu.memory_space<vmem>>, vector<2x32xf32>
    %c0_91 = arith.constant 0 : index
    %c1248 = arith.constant 1248 : index
    %95 = vector.load %arg9[%c0_91, %c1248] : memref<2x1568xf32, #tpu.memory_space<vmem>>, vector<2x32xf32>
    tpu.vector_store %arg9[%c0_91, %c1248], %94 {strides = array<i32>} : memref<2x1568xf32, #tpu.memory_space<vmem>>, vector<2x32xf32>,
    %c80 = arith.constant 80 : index
    %c0_92 = arith.constant 0 : index
    %96 = vector.load %arg8[%c80, %c0_92] : memref<104x32xf32, #tpu.memory_space<vmem>>, vector<2x32xf32>
    %c0_93 = arith.constant 0 : index
    %c1280 = arith.constant 1280 : index
    %97 = vector.load %arg9[%c0_93, %c1280] : memref<2x1568xf32, #tpu.memory_space<vmem>>, vector<2x32xf32>
    tpu.vector_store %arg9[%c0_93, %c1280], %96 {strides = array<i32>} : memref<2x1568xf32, #tpu.memory_space<vmem>>, vector<2x32xf32>,
    %c82 = arith.constant 82 : index
    %c0_94 = arith.constant 0 : index
    %98 = vector.load %arg8[%c82, %c0_94] : memref<104x32xf32, #tpu.memory_space<vmem>>, vector<2x32xf32>
    %c0_95 = arith.constant 0 : index
    %c1312 = arith.constant 1312 : index
    %99 = vector.load %arg9[%c0_95, %c1312] : memref<2x1568xf32, #tpu.memory_space<vmem>>, vector<2x32xf32>
    tpu.vector_store %arg9[%c0_95, %c1312], %98 {strides = array<i32>} : memref<2x1568xf32, #tpu.memory_space<vmem>>, vector<2x32xf32>,
    %c84 = arith.constant 84 : index
    %c0_96 = arith.constant 0 : index
    %100 = vector.load %arg8[%c84, %c0_96] : memref<104x32xf32, #tpu.memory_space<vmem>>, vector<2x32xf32>
    %c0_97 = arith.constant 0 : index
    %c1344 = arith.constant 1344 : index
    %101 = vector.load %arg9[%c0_97, %c1344] : memref<2x1568xf32, #tpu.memory_space<vmem>>, vector<2x32xf32>
    tpu.vector_store %arg9[%c0_97, %c1344], %100 {strides = array<i32>} : memref<2x1568xf32, #tpu.memory_space<vmem>>, vector<2x32xf32>,
    %c86 = arith.constant 86 : index
    %c0_98 = arith.constant 0 : index
    %102 = vector.load %arg8[%c86, %c0_98] : memref<104x32xf32, #tpu.memory_space<vmem>>, vector<2x32xf32>
    %c0_99 = arith.constant 0 : index
    %c1376 = arith.constant 1376 : index
    %103 = vector.load %arg9[%c0_99, %c1376] : memref<2x1568xf32, #tpu.memory_space<vmem>>, vector<2x32xf32>
    tpu.vector_store %arg9[%c0_99, %c1376], %102 {strides = array<i32>} : memref<2x1568xf32, #tpu.memory_space<vmem>>, vector<2x32xf32>,
    %c88 = arith.constant 88 : index
    %c0_100 = arith.constant 0 : index
    %104 = vector.load %arg8[%c88, %c0_100] : memref<104x32xf32, #tpu.memory_space<vmem>>, vector<2x32xf32>
    %c0_101 = arith.constant 0 : index
    %c1408 = arith.constant 1408 : index
    %105 = vector.load %arg9[%c0_101, %c1408] : memref<2x1568xf32, #tpu.memory_space<vmem>>, vector<2x32xf32>
    tpu.vector_store %arg9[%c0_101, %c1408], %104 {strides = array<i32>} : memref<2x1568xf32, #tpu.memory_space<vmem>>, vector<2x32xf32>,
    %c90 = arith.constant 90 : index
    %c0_102 = arith.constant 0 : index
    %106 = vector.load %arg8[%c90, %c0_102] : memref<104x32xf32, #tpu.memory_space<vmem>>, vector<2x32xf32>
    %c0_103 = arith.constant 0 : index
    %c1440 = arith.constant 1440 : index
    %107 = vector.load %arg9[%c0_103, %c1440] : memref<2x1568xf32, #tpu.memory_space<vmem>>, vector<2x32xf32>
    tpu.vector_store %arg9[%c0_103, %c1440], %106 {strides = array<i32>} : memref<2x1568xf32, #tpu.memory_space<vmem>>, vector<2x32xf32>,
    %c92 = arith.constant 92 : index
    %c0_104 = arith.constant 0 : index
    %108 = vector.load %arg8[%c92, %c0_104] : memref<104x32xf32, #tpu.memory_space<vmem>>, vector<2x32xf32>
    %c0_105 = arith.constant 0 : index
    %c1472 = arith.constant 1472 : index
    %109 = vector.load %arg9[%c0_105, %c1472] : memref<2x1568xf32, #tpu.memory_space<vmem>>, vector<2x32xf32>
    tpu.vector_store %arg9[%c0_105, %c1472], %108 {strides = array<i32>} : memref<2x1568xf32, #tpu.memory_space<vmem>>, vector<2x32xf32>,
    %c94 = arith.constant 94 : index
    %c0_106 = arith.constant 0 : index
    %110 = vector.load %arg8[%c94, %c0_106] : memref<104x32xf32, #tpu.memory_space<vmem>>, vector<2x32xf32>
    %c0_107 = arith.constant 0 : index
    %c1504 = arith.constant 1504 : index
    %111 = vector.load %arg9[%c0_107, %c1504] : memref<2x1568xf32, #tpu.memory_space<vmem>>, vector<2x32xf32>
    tpu.vector_store %arg9[%c0_107, %c1504], %110 {strides = array<i32>} : memref<2x1568xf32, #tpu.memory_space<vmem>>, vector<2x32xf32>,
    %c96_108 = arith.constant 96 : index
    %c0_109 = arith.constant 0 : index
    %112 = vector.load %arg8[%c96_108, %c0_109] : memref<104x32xf32, #tpu.memory_space<vmem>>, vector<2x32xf32>
    %c0_110 = arith.constant 0 : index
    %c1536 = arith.constant 1536 : index
    %113 = vector.load %arg9[%c0_110, %c1536] : memref<2x1568xf32, #tpu.memory_space<vmem>>, vector<2x32xf32>
    tpu.vector_store %arg9[%c0_110, %c1536], %112 {strides = array<i32>} : memref<2x1568xf32, #tpu.memory_space<vmem>>, vector<2x32xf32>,
    %c0_111 = arith.constant 0 : index
    %c0_112 = arith.constant 0 : index
    %114 = vector.load %arg9[%c0_111, %c0_112] : memref<2x1568xf32, #tpu.memory_space<vmem>>, vector<2x1568xf32>
    %c0_113 = arith.constant 0 : index
    %c0_114 = arith.constant 0 : index
    %115 = vector.load %arg3[%c0_113, %c0_114] : memref<1568x128xf32, #tpu.memory_space<vmem>>, vector<1568x128xf32>
    %cst_115 = arith.constant dense<0.000000e+00> : vector<2x128xf32>
    %116 = tpu.matmul %114, %115, %cst_115 {dimension_numbers = #tpu.dot_dimension_numbers<[1], [0], [0], [1], [0, 0, 1, 1], [], []>} : vector<2x1568xf32>, vector<1568x128xf32>, vector<2x128xf32> -> vector<2x128xf32>
    %c0_116 = arith.constant 0 : index
    %c0_117 = arith.constant 0 : index
    %117 = vector.load %arg4[%c0_116, %c0_117] : memref<1x128xf32, #tpu.memory_space<vmem>>, vector<1x128xf32>
    %118 = vector.broadcast %117 : vector<1x128xf32> to vector<2x128xf32>
    %119 = arith.addf %116, %118 : vector<2x128xf32>
    %cst_118 = arith.constant 0.000000e+00 : f32
    %120 = vector.broadcast %cst_118 : f32 to vector<2x128xf32>
    %121 = arith.maximumf %119, %120 : vector<2x128xf32>
    %c0_119 = arith.constant 0 : index
    %c0_120 = arith.constant 0 : index
    %122 = vector.load %arg5[%c0_119, %c0_120] : memref<128x10xf32, #tpu.memory_space<vmem>>, vector<128x10xf32>
    %cst_121 = arith.constant dense<0.000000e+00> : vector<2x10xf32>
    %123 = tpu.matmul %121, %122, %cst_121 {dimension_numbers = #tpu.dot_dimension_numbers<[1], [0], [0], [1], [0, 0, 1, 1], [], []>} : vector<2x128xf32>, vector<128x10xf32>, vector<2x10xf32> -> vector<2x10xf32>
    %c0_122 = arith.constant 0 : index
    %c0_123 = arith.constant 0 : index
    %124 = vector.load %arg6[%c0_122, %c0_123] : memref<1x10xf32, #tpu.memory_space<vmem>>, vector<1x10xf32>
    %125 = vector.broadcast %124 : vector<1x10xf32> to vector<2x10xf32>
    %126 = arith.addf %123, %125 : vector<2x10xf32>
    %c0_124 = arith.constant 0 : index
    %c0_125 = arith.constant 0 : index
    %127 = vector.load %arg7[%c0_124, %c0_125] : memref<2x10xf32, #tpu.memory_space<vmem>>, vector<2x10xf32>
    tpu.vector_store %arg7[%c0_124, %c0_125], %126 {strides = array<i32>} : memref<2x10xf32, #tpu.memory_space<vmem>>, vector<2x10xf32>,
    return
  }
}

</mosaic_0001>

<llo_original>
// kernel: basic_cnn_forward.2
$region0: #{basic_cnn_forward.2}
  #allocation0 [shape = 'u32[]', space=smem, size = 0x4, offset = 0x4, fixed_abs, tag = 'smem constant byte address 0x4 - core index']
  #allocation1 [shape = 'u32[72,128]{1,0:T(1,128)}', space=vmem, size = 0x9000, scoped, tag = 'internal scratch']
  %s0 = inlined_call_operand.vmem [shape: f32[1568,27], index: 0, kind: input, shape index: {}]
  %s1 = inlined_call_operand.vmem [shape: f32[27,16], index: 1, kind: input, shape index: {}]
  %s2 = inlined_call_operand.vmem [shape: f32[1,16], index: 2, kind: input, shape index: {}]
  %s3 = inlined_call_operand.vmem [shape: f32[392,16], index: 3, kind: output, shape index: {}]
  %s4 = sld [smem:[#allocation0]]
  $region22: #{basic_cnn_forward.2} parent=0
    _
  %s6 = ssub.s32 1, %s4
  %s7 = scalar_select 0, %s6, %s4
  // Predicated region
  $region2: #{basic_cnn_forward.2} parent=0 // pred_check
    _
  $region3: #{basic_cnn_forward.2} parent=0 // pred_check_branch
    %9 = sbr.rel (0) target = $region5
  $region4: #{basic_cnn_forward.2} parent=0 // pred_region
    _
  $region5: #{basic_cnn_forward.2} parent=0 // pred_fallthru
    _
  // Predicated region
  $region6: #{basic_cnn_forward.2} parent=0 // pred_check
    _
  $region7: #{basic_cnn_forward.2} parent=0 // pred_check_branch
    %11 = sbr.rel (0) target = $region9
  $region8: #{basic_cnn_forward.2} parent=0 // pred_region
    _
  $region9: #{basic_cnn_forward.2} parent=0 // pred_fallthru
    _
  // Predicated region
  $region10: #{basic_cnn_forward.2} parent=0 // pred_check
    _
  $region11: #{basic_cnn_forward.2} parent=0 // pred_check_branch
    %13 = sbr.rel (0) target = $region13
  $region12: #{basic_cnn_forward.2} parent=0 // pred_region
    _
  $region13: #{basic_cnn_forward.2} parent=0 // pred_fallthru
    _
  %v14 = vld [vmem:[%s0] sm:$0xff]
  %v15 = vld [vmem:[%s0 + $0x8] sm:$0xff]
  %v16 = vld [vmem:[%s0 + $0x10] sm:$0xff]
  %v17 = vld [vmem:[%s0 + $0x18] sm:$0xff]
  %v18 = vld [vmem:[%s0 + $0x20] sm:$0xff]
  %v19 = vld [vmem:[%s0 + $0x28] sm:$0xff]
  %v20 = vld [vmem:[%s0 + $0x30] sm:$0xff]
  %v21 = vld [vmem:[%s0 + $0x38] sm:$0xff]
  %v22 = vld [vmem:[%s0 + $0x40] sm:$0xff]
  %v23 = vld [vmem:[%s0 + $0x48] sm:$0xff]
  %v24 = vld [vmem:[%s0 + $0x50] sm:$0xff]
  %v25 = vld [vmem:[%s0 + $0x58] sm:$0xff]
  %v26 = vld [vmem:[%s0 + $0x60] sm:$0xff]
  %v27 = vld [vmem:[%s0 + $0x68] sm:$0xff]
  %v28 = vld [vmem:[%s0 + $0x70] sm:$0xff]
  %v29 = vld [vmem:[%s0 + $0x78] sm:$0xff]
  %v30 = vld [vmem:[%s0 + $0x80] sm:$0xff]
  %v31 = vld [vmem:[%s0 + $0x88] sm:$0xff]
  %v32 = vld [vmem:[%s0 + $0x90] sm:$0xff]
  %v33 = vld [vmem:[%s0 + $0x98] sm:$0xff]
  %v34 = vld [vmem:[%s0 + $0xa0] sm:$0xff]
  %v35 = vld [vmem:[%s0 + $0xa8] sm:$0xff]
  %v36 = vld [vmem:[%s0 + $0xb0] sm:$0xff]
  %v37 = vld [vmem:[%s0 + $0xb8] sm:$0xff]
  %v38 = vld [vmem:[%s0 + $0xc0] sm:$0xff]
  %v39 = vld [vmem:[%s0 + $0xc8] sm:$0xff]
  %v40 = vld [vmem:[%s0 + $0xd0] sm:$0xff]
  %v41 = vld [vmem:[%s0 + $0xd8] sm:$0xff]
  %v42 = vld [vmem:[%s0 + $0xe0] sm:$0xff]
  %v43 = vld [vmem:[%s0 + $0xe8] sm:$0xff]
  %v44 = vld [vmem:[%s0 + $0xf0] sm:$0xff]
  %v45 = vld [vmem:[%s0 + $0xf8] sm:$0xff]
  %v46 = vld [vmem:[%s0 + $0x100] sm:$0xff]
  %v47 = vld [vmem:[%s0 + $0x108] sm:$0xff]
  %v48 = vld [vmem:[%s0 + $0x110] sm:$0xff]
  %v49 = vld [vmem:[%s0 + $0x118] sm:$0xff]
  %v50 = vld [vmem:[%s0 + $0x120] sm:$0xff]
  %v51 = vld [vmem:[%s0 + $0x128] sm:$0xff]
  %v52 = vld [vmem:[%s0 + $0x130] sm:$0xff]
  %v53 = vld [vmem:[%s0 + $0x138] sm:$0xff]
  %v54 = vld [vmem:[%s0 + $0x140] sm:$0xff]
  %v55 = vld [vmem:[%s0 + $0x148] sm:$0xff]
  %v56 = vld [vmem:[%s0 + $0x150] sm:$0xff]
  %v57 = vld [vmem:[%s0 + $0x158] sm:$0xff]
  %v58 = vld [vmem:[%s0 + $0x160] sm:$0xff]
  %v59 = vld [vmem:[%s0 + $0x168] sm:$0xff]
  %v60 = vld [vmem:[%s0 + $0x170] sm:$0xff]
  %v61 = vld [vmem:[%s0 + $0x178] sm:$0xff]
  %v62 = vld [vmem:[%s0 + $0x180] sm:$0xff]
  %v63 = vld [vmem:[%s0 + $0x188] sm:$0xff]
  %v64 = vld [vmem:[%s0 + $0x190] sm:$0xff]
  %v65 = vld [vmem:[%s0 + $0x198] sm:$0xff]
  %v66 = vld [vmem:[%s0 + $0x1a0] sm:$0xff]
  %v67 = vld [vmem:[%s0 + $0x1a8] sm:$0xff]
  %v68 = vld [vmem:[%s0 + $0x1b0] sm:$0xff]
  %v69 = vld [vmem:[%s0 + $0x1b8] sm:$0xff]
  %v70 = vld [vmem:[%s0 + $0x1c0] sm:$0xff]
  %v71 = vld [vmem:[%s0 + $0x1c8] sm:$0xff]
  %v72 = vld [vmem:[%s0 + $0x1d0] sm:$0xff]
  %v73 = vld [vmem:[%s0 + $0x1d8] sm:$0xff]
  %v74 = vld [vmem:[%s0 + $0x1e0] sm:$0xff]
  %v75 = vld [vmem:[%s0 + $0x1e8] sm:$0xff]
  %v76 = vld [vmem:[%s0 + $0x1f0] sm:$0xff]
  %v77 = vld [vmem:[%s0 + $0x1f8] sm:$0xff]
  %v78 = vld [vmem:[%s0 + $0x200] sm:$0xff]
  %v79 = vld [vmem:[%s0 + $0x208] sm:$0xff]
  %v80 = vld [vmem:[%s0 + $0x210] sm:$0xff]
  %v81 = vld [vmem:[%s0 + $0x218] sm:$0xff]
  %v82 = vld [vmem:[%s0 + $0x220] sm:$0xff]
  %v83 = vld [vmem:[%s0 + $0x228] sm:$0xff]
  %v84 = vld [vmem:[%s0 + $0x230] sm:$0xff]
  %v85 = vld [vmem:[%s0 + $0x238] sm:$0xff]
  %v86 = vld [vmem:[%s0 + $0x240] sm:$0xff]
  %v87 = vld [vmem:[%s0 + $0x248] sm:$0xff]
  %v88 = vld [vmem:[%s0 + $0x250] sm:$0xff]
  %v89 = vld [vmem:[%s0 + $0x258] sm:$0xff]
  %v90 = vld [vmem:[%s0 + $0x260] sm:$0xff]
  %v91 = vld [vmem:[%s0 + $0x268] sm:$0xff]
  %v92 = vld [vmem:[%s0 + $0x270] sm:$0xff]
  %v93 = vld [vmem:[%s0 + $0x278] sm:$0xff]
  %v94 = vld [vmem:[%s0 + $0x280] sm:$0xff]
  %v95 = vld [vmem:[%s0 + $0x288] sm:$0xff]
  %v96 = vld [vmem:[%s0 + $0x290] sm:$0xff]
  %v97 = vld [vmem:[%s0 + $0x298] sm:$0xff]
  %v98 = vld [vmem:[%s0 + $0x2a0] sm:$0xff]
  %v99 = vld [vmem:[%s0 + $0x2a8] sm:$0xff]
  %v100 = vld [vmem:[%s0 + $0x2b0] sm:$0xff]
  %v101 = vld [vmem:[%s0 + $0x2b8] sm:$0xff]
  %v102 = vld [vmem:[%s0 + $0x2c0] sm:$0xff]
  %v103 = vld [vmem:[%s0 + $0x2c8] sm:$0xff]
  %v104 = vld [vmem:[%s0 + $0x2d0] sm:$0xff]
  %v105 = vld [vmem:[%s0 + $0x2d8] sm:$0xff]
  %v106 = vld [vmem:[%s0 + $0x2e0] sm:$0xff]
  %v107 = vld [vmem:[%s0 + $0x2e8] sm:$0xff]
  %v108 = vld [vmem:[%s0 + $0x2f0] sm:$0xff]
  %v109 = vld [vmem:[%s0 + $0x2f8] sm:$0xff]
  %v110 = vld [vmem:[%s0 + $0x300] sm:$0xff]
  %v111 = vld [vmem:[%s0 + $0x308] sm:$0xff]
  %v112 = vld [vmem:[%s0 + $0x310] sm:$0xff]
  %v113 = vld [vmem:[%s0 + $0x318] sm:$0xff]
  %v114 = vld [vmem:[%s0 + $0x320] sm:$0xff]
  %v115 = vld [vmem:[%s0 + $0x328] sm:$0xff]
  %v116 = vld [vmem:[%s0 + $0x330] sm:$0xff]
  %v117 = vld [vmem:[%s0 + $0x338] sm:$0xff]
  %v118 = vld [vmem:[%s0 + $0x340] sm:$0xff]
  %v119 = vld [vmem:[%s0 + $0x348] sm:$0xff]
  %v120 = vld [vmem:[%s0 + $0x350] sm:$0xff]
  %v121 = vld [vmem:[%s0 + $0x358] sm:$0xff]
  %v122 = vld [vmem:[%s0 + $0x360] sm:$0xff]
  %v123 = vld [vmem:[%s0 + $0x368] sm:$0xff]
  %v124 = vld [vmem:[%s0 + $0x370] sm:$0xff]
  %v125 = vld [vmem:[%s0 + $0x378] sm:$0xff]
  %v126 = vld [vmem:[%s0 + $0x380] sm:$0xff]
  %v127 = vld [vmem:[%s0 + $0x388] sm:$0xff]
  %v128 = vld [vmem:[%s0 + $0x390] sm:$0xff]
  %v129 = vld [vmem:[%s0 + $0x398] sm:$0xff]
  %v130 = vld [vmem:[%s0 + $0x3a0] sm:$0xff]
  %v131 = vld [vmem:[%s0 + $0x3a8] sm:$0xff]
  %v132 = vld [vmem:[%s0 + $0x3b0] sm:$0xff]
  %v133 = vld [vmem:[%s0 + $0x3b8] sm:$0xff]
  %v134 = vld [vmem:[%s0 + $0x3c0] sm:$0xff]
  %v135 = vld [vmem:[%s0 + $0x3c8] sm:$0xff]
  %v136 = vld [vmem:[%s0 + $0x3d0] sm:$0xff]
  %v137 = vld [vmem:[%s0 + $0x3d8] sm:$0xff]
  %v138 = vld [vmem:[%s0 + $0x3e0] sm:$0xff]
  %v139 = vld [vmem:[%s0 + $0x3e8] sm:$0xff]
  %v140 = vld [vmem:[%s0 + $0x3f0] sm:$0xff]
  %v141 = vld [vmem:[%s0 + $0x3f8] sm:$0xff]
  %v142 = vld [vmem:[%s0 + $0x400] sm:$0xff]
  %v143 = vld [vmem:[%s0 + $0x408] sm:$0xff]
  %v144 = vld [vmem:[%s0 + $0x410] sm:$0xff]
  %v145 = vld [vmem:[%s0 + $0x418] sm:$0xff]
  %v146 = vld [vmem:[%s0 + $0x420] sm:$0xff]
  %v147 = vld [vmem:[%s0 + $0x428] sm:$0xff]
  %v148 = vld [vmem:[%s0 + $0x430] sm:$0xff]
  %v149 = vld [vmem:[%s0 + $0x438] sm:$0xff]
  %v150 = vld [vmem:[%s0 + $0x440] sm:$0xff]
  %v151 = vld [vmem:[%s0 + $0x448] sm:$0xff]
  %v152 = vld [vmem:[%s0 + $0x450] sm:$0xff]
  %v153 = vld [vmem:[%s0 + $0x458] sm:$0xff]
  %v154 = vld [vmem:[%s0 + $0x460] sm:$0xff]
  %v155 = vld [vmem:[%s0 + $0x468] sm:$0xff]
  %v156 = vld [vmem:[%s0 + $0x470] sm:$0xff]
  %v157 = vld [vmem:[%s0 + $0x478] sm:$0xff]
  %v158 = vld [vmem:[%s0 + $0x480] sm:$0xff]
  %v159 = vld [vmem:[%s0 + $0x488] sm:$0xff]
  %v160 = vld [vmem:[%s0 + $0x490] sm:$0xff]
  %v161 = vld [vmem:[%s0 + $0x498] sm:$0xff]
  %v162 = vld [vmem:[%s0 + $0x4a0] sm:$0xff]
  %v163 = vld [vmem:[%s0 + $0x4a8] sm:$0xff]
  %v164 = vld [vmem:[%s0 + $0x4b0] sm:$0xff]
  %v165 = vld [vmem:[%s0 + $0x4b8] sm:$0xff]
  %v166 = vld [vmem:[%s0 + $0x4c0] sm:$0xff]
  %v167 = vld [vmem:[%s0 + $0x4c8] sm:$0xff]
  %v168 = vld [vmem:[%s0 + $0x4d0] sm:$0xff]
  %v169 = vld [vmem:[%s0 + $0x4d8] sm:$0xff]
  %v170 = vld [vmem:[%s0 + $0x4e0] sm:$0xff]
  %v171 = vld [vmem:[%s0 + $0x4e8] sm:$0xff]
  %v172 = vld [vmem:[%s0 + $0x4f0] sm:$0xff]
  %v173 = vld [vmem:[%s0 + $0x4f8] sm:$0xff]
  %v174 = vld [vmem:[%s0 + $0x500] sm:$0xff]
  %v175 = vld [vmem:[%s0 + $0x508] sm:$0xff]
  %v176 = vld [vmem:[%s0 + $0x510] sm:$0xff]
  %v177 = vld [vmem:[%s0 + $0x518] sm:$0xff]
  %v178 = vld [vmem:[%s0 + $0x520] sm:$0xff]
  %v179 = vld [vmem:[%s0 + $0x528] sm:$0xff]
  %v180 = vld [vmem:[%s0 + $0x530] sm:$0xff]
  %v181 = vld [vmem:[%s0 + $0x538] sm:$0xff]
  %v182 = vld [vmem:[%s0 + $0x540] sm:$0xff]
  %v183 = vld [vmem:[%s0 + $0x548] sm:$0xff]
  %v184 = vld [vmem:[%s0 + $0x550] sm:$0xff]
  %v185 = vld [vmem:[%s0 + $0x558] sm:$0xff]
  %v186 = vld [vmem:[%s0 + $0x560] sm:$0xff]
  %v187 = vld [vmem:[%s0 + $0x568] sm:$0xff]
  %v188 = vld [vmem:[%s0 + $0x570] sm:$0xff]
  %v189 = vld [vmem:[%s0 + $0x578] sm:$0xff]
  %v190 = vld [vmem:[%s0 + $0x580] sm:$0xff]
  %v191 = vld [vmem:[%s0 + $0x588] sm:$0xff]
  %v192 = vld [vmem:[%s0 + $0x590] sm:$0xff]
  %v193 = vld [vmem:[%s0 + $0x598] sm:$0xff]
  %v194 = vld [vmem:[%s0 + $0x5a0] sm:$0xff]
  %v195 = vld [vmem:[%s0 + $0x5a8] sm:$0xff]
  %v196 = vld [vmem:[%s0 + $0x5b0] sm:$0xff]
  %v197 = vld [vmem:[%s0 + $0x5b8] sm:$0xff]
  %v198 = vld [vmem:[%s0 + $0x5c0] sm:$0xff]
  %v199 = vld [vmem:[%s0 + $0x5c8] sm:$0xff]
  %v200 = vld [vmem:[%s0 + $0x5d0] sm:$0xff]
  %v201 = vld [vmem:[%s0 + $0x5d8] sm:$0xff]
  %v202 = vld [vmem:[%s0 + $0x5e0] sm:$0xff]
  %v203 = vld [vmem:[%s0 + $0x5e8] sm:$0xff]
  %v204 = vld [vmem:[%s0 + $0x5f0] sm:$0xff]
  %v205 = vld [vmem:[%s0 + $0x5f8] sm:$0xff]
  %v206 = vld [vmem:[%s0 + $0x600] sm:$0xff]
  %v207 = vld [vmem:[%s0 + $0x608] sm:$0xff]
  %v208 = vld [vmem:[%s0 + $0x610] sm:$0xff]
  %v209 = vld [vmem:[%s0 + $0x618] sm:$0xff]
  %v210 = vld [vmem:[%s1] sm:$0xff]
  %v211 = vld [vmem:[%s1 + $0x8] sm:$0xff]
  %v212 = vld [vmem:[%s1 + $0x10] sm:$0xff]
  %v213 = vld [vmem:[%s1 + $0x18] sm:$0x7]
  %vm214 = vcmask 220160
  %v216 = vsel %vm214, %v14, 0
  %v219 = vsel %vm214, %v15, 0
  %v222 = vsel %vm214, %v16, 0
  %v225 = vsel %vm214, %v17, 0
  %v228 = vsel %vm214, %v18, 0
  %v231 = vsel %vm214, %v19, 0
  %v234 = vsel %vm214, %v20, 0
  %v237 = vsel %vm214, %v21, 0
  %v240 = vsel %vm214, %v22, 0
  %v243 = vsel %vm214, %v23, 0
  %v246 = vsel %vm214, %v24, 0
  %v249 = vsel %vm214, %v25, 0
  %v252 = vsel %vm214, %v26, 0
  %v255 = vsel %vm214, %v27, 0
  %v258 = vsel %vm214, %v28, 0
  %v261 = vsel %vm214, %v29, 0
  %v264 = vsel %vm214, %v30, 0
  %v267 = vsel %vm214, %v31, 0
  %v270 = vsel %vm214, %v32, 0
  %v273 = vsel %vm214, %v33, 0
  %v276 = vsel %vm214, %v34, 0
  %v279 = vsel %vm214, %v35, 0
  %v282 = vsel %vm214, %v36, 0
  %v285 = vsel %vm214, %v37, 0
  %v288 = vsel %vm214, %v38, 0
  %v291 = vsel %vm214, %v39, 0
  %v294 = vsel %vm214, %v40, 0
  %v297 = vsel %vm214, %v41, 0
  %v300 = vsel %vm214, %v42, 0
  %v303 = vsel %vm214, %v43, 0
  %v306 = vsel %vm214, %v44, 0
  %v309 = vsel %vm214, %v45, 0
  %v312 = vsel %vm214, %v46, 0
  %v315 = vsel %vm214, %v47, 0
  %v318 = vsel %vm214, %v48, 0
  %v321 = vsel %vm214, %v49, 0
  %v324 = vsel %vm214, %v50, 0
  %v327 = vsel %vm214, %v51, 0
  %v330 = vsel %vm214, %v52, 0
  %v333 = vsel %vm214, %v53, 0
  %v336 = vsel %vm214, %v54, 0
  %v339 = vsel %vm214, %v55, 0
  %v342 = vsel %vm214, %v56, 0
  %v345 = vsel %vm214, %v57, 0
  %v348 = vsel %vm214, %v58, 0
  %v351 = vsel %vm214, %v59, 0
  %v354 = vsel %vm214, %v60, 0
  %v357 = vsel %vm214, %v61, 0
  %v360 = vsel %vm214, %v62, 0
  %v363 = vsel %vm214, %v63, 0
  %v366 = vsel %vm214, %v64, 0
  %v369 = vsel %vm214, %v65, 0
  %v372 = vsel %vm214, %v66, 0
  %v375 = vsel %vm214, %v67, 0
  %v378 = vsel %vm214, %v68, 0
  %v381 = vsel %vm214, %v69, 0
  %v384 = vsel %vm214, %v70, 0
  %v387 = vsel %vm214, %v71, 0
  %v390 = vsel %vm214, %v72, 0
  %v393 = vsel %vm214, %v73, 0
  %v396 = vsel %vm214, %v74, 0
  %v399 = vsel %vm214, %v75, 0
  %v402 = vsel %vm214, %v76, 0
  %v405 = vsel %vm214, %v77, 0
  %v408 = vsel %vm214, %v78, 0
  %v411 = vsel %vm214, %v79, 0
  %v414 = vsel %vm214, %v80, 0
  %v417 = vsel %vm214, %v81, 0
  %v420 = vsel %vm214, %v82, 0
  %v423 = vsel %vm214, %v83, 0
  %v426 = vsel %vm214, %v84, 0
  %v429 = vsel %vm214, %v85, 0
  %v432 = vsel %vm214, %v86, 0
  %v435 = vsel %vm214, %v87, 0
  %v438 = vsel %vm214, %v88, 0
  %v441 = vsel %vm214, %v89, 0
  %v444 = vsel %vm214, %v90, 0
  %v447 = vsel %vm214, %v91, 0
  %v450 = vsel %vm214, %v92, 0
  %v453 = vsel %vm214, %v93, 0
  %v456 = vsel %vm214, %v94, 0
  %v459 = vsel %vm214, %v95, 0
  %v462 = vsel %vm214, %v96, 0
  %v465 = vsel %vm214, %v97, 0
  %v468 = vsel %vm214, %v98, 0
  %v471 = vsel %vm214, %v99, 0
  %v474 = vsel %vm214, %v100, 0
  %v477 = vsel %vm214, %v101, 0
  %v480 = vsel %vm214, %v102, 0
  %v483 = vsel %vm214, %v103, 0
  %v486 = vsel %vm214, %v104, 0
  %v489 = vsel %vm214, %v105, 0
  %v492 = vsel %vm214, %v106, 0
  %v495 = vsel %vm214, %v107, 0
  %v498 = vsel %vm214, %v108, 0
  %v501 = vsel %vm214, %v109, 0
  %v504 = vsel %vm214, %v110, 0
  %v507 = vsel %vm214, %v111, 0
  %v510 = vsel %vm214, %v112, 0
  %v513 = vsel %vm214, %v113, 0
  %v516 = vsel %vm214, %v114, 0
  %v519 = vsel %vm214, %v115, 0
  %v522 = vsel %vm214, %v116, 0
  %v525 = vsel %vm214, %v117, 0
  %v528 = vsel %vm214, %v118, 0
  %v531 = vsel %vm214, %v119, 0
  %v534 = vsel %vm214, %v120, 0
  %v537 = vsel %vm214, %v121, 0
  %v540 = vsel %vm214, %v122, 0
  %v543 = vsel %vm214, %v123, 0
  %v546 = vsel %vm214, %v124, 0
  %v549 = vsel %vm214, %v125, 0
  %v552 = vsel %vm214, %v126, 0
  %v555 = vsel %vm214, %v127, 0
  %v558 = vsel %vm214, %v128, 0
  %v561 = vsel %vm214, %v129, 0
  %v564 = vsel %vm214, %v130, 0
  %v567 = vsel %vm214, %v131, 0
  %v570 = vsel %vm214, %v132, 0
  %v573 = vsel %vm214, %v133, 0
  %v576 = vsel %vm214, %v134, 0
  %v579 = vsel %vm214, %v135, 0
  %v582 = vsel %vm214, %v136, 0
  %v585 = vsel %vm214, %v137, 0
  %v588 = vsel %vm214, %v138, 0
  %v591 = vsel %vm214, %v139, 0
  %v594 = vsel %vm214, %v140, 0
  %v597 = vsel %vm214, %v141, 0
  %v600 = vsel %vm214, %v142, 0
  %v603 = vsel %vm214, %v143, 0
  %v606 = vsel %vm214, %v144, 0
  %v609 = vsel %vm214, %v145, 0
  %v612 = vsel %vm214, %v146, 0
  %v615 = vsel %vm214, %v147, 0
  %v618 = vsel %vm214, %v148, 0
  %v621 = vsel %vm214, %v149, 0
  %v624 = vsel %vm214, %v150, 0
  %v627 = vsel %vm214, %v151, 0
  %v630 = vsel %vm214, %v152, 0
  %v633 = vsel %vm214, %v153, 0
  %v636 = vsel %vm214, %v154, 0
  %v639 = vsel %vm214, %v155, 0
  %v642 = vsel %vm214, %v156, 0
  %v645 = vsel %vm214, %v157, 0
  %v648 = vsel %vm214, %v158, 0
  %v651 = vsel %vm214, %v159, 0
  %v654 = vsel %vm214, %v160, 0
  %v657 = vsel %vm214, %v161, 0
  %v660 = vsel %vm214, %v162, 0
  %v663 = vsel %vm214, %v163, 0
  %v666 = vsel %vm214, %v164, 0
  %v669 = vsel %vm214, %v165, 0
  %v672 = vsel %vm214, %v166, 0
  %v675 = vsel %vm214, %v167, 0
  %v678 = vsel %vm214, %v168, 0
  %v681 = vsel %vm214, %v169, 0
  %v684 = vsel %vm214, %v170, 0
  %v687 = vsel %vm214, %v171, 0
  %v690 = vsel %vm214, %v172, 0
  %v693 = vsel %vm214, %v173, 0
  %v696 = vsel %vm214, %v174, 0
  %v699 = vsel %vm214, %v175, 0
  %v702 = vsel %vm214, %v176, 0
  %v705 = vsel %vm214, %v177, 0
  %v708 = vsel %vm214, %v178, 0
  %v711 = vsel %vm214, %v179, 0
  %v714 = vsel %vm214, %v180, 0
  %v717 = vsel %vm214, %v181, 0
  %v720 = vsel %vm214, %v182, 0
  %v723 = vsel %vm214, %v183, 0
  %v726 = vsel %vm214, %v184, 0
  %v729 = vsel %vm214, %v185, 0
  %v732 = vsel %vm214, %v186, 0
  %v735 = vsel %vm214, %v187, 0
  %v738 = vsel %vm214, %v188, 0
  %v741 = vsel %vm214, %v189, 0
  %v744 = vsel %vm214, %v190, 0
  %v747 = vsel %vm214, %v191, 0
  %v750 = vsel %vm214, %v192, 0
  %v753 = vsel %vm214, %v193, 0
  %v756 = vsel %vm214, %v194, 0
  %v759 = vsel %vm214, %v195, 0
  %v762 = vsel %vm214, %v196, 0
  %v765 = vsel %vm214, %v197, 0
  %v768 = vsel %vm214, %v198, 0
  %v771 = vsel %vm214, %v199, 0
  %v774 = vsel %vm214, %v200, 0
  %v777 = vsel %vm214, %v201, 0
  %v780 = vsel %vm214, %v202, 0
  %v783 = vsel %vm214, %v203, 0
  %v786 = vsel %vm214, %v204, 0
  %v789 = vsel %vm214, %v205, 0
  %v792 = vsel %vm214, %v206, 0
  %v795 = vsel %vm214, %v207, 0
  %v798 = vsel %vm214, %v208, 0
  %v801 = vsel %vm214, %v209, 0
  %vm803 = vcmask 1042432
  %v805 = vsel %vm803, %v213, 0
  %807 = vmatpush.msra.mxu0 0.0
  %808 = vmatpush.msra.mxu0 0.0
  %809 = vmatpush.msra.mxu0 0.0
  %810 = vmatpush.msra.mxu0 0.0
  %811 = vmatpush.msra.mxu0 0.0
  %812 = vmatpush.msra.mxu0 0.0
  %813 = vmatpush.msra.mxu0 0.0
  %814 = vmatpush.msra.mxu0 0.0
  %815 = vmatpush.msra.mxu0 0.0
  %816 = vmatpush.msra.mxu0 0.0
  %817 = vmatpush.msra.mxu0 0.0
  %818 = vmatpush.msra.mxu0 0.0
  %819 = vmatpush.msra.mxu0 %v805
  %820 = vmatpush.msra.mxu0 %v212
  %821 = vmatpush.msra.mxu0 %v211
  %822 = vmatpush.msra.mxu0 %v210
  %823 = vmatmul.f32.gmra.mxu0 %v216
  %v824 = vpop.f32.mrf.mxu0
  %v825 = vadd.f32 0.0, %v824
  %826 = vmatmul.f32.gmra.mxu0 %v219
  %v827 = vpop.f32.mrf.mxu0
  %v828 = vadd.f32 0.0, %v827
  %829 = vmatmul.f32.gmra.mxu0 %v222
  %v830 = vpop.f32.mrf.mxu0
  %v831 = vadd.f32 0.0, %v830
  %832 = vmatmul.f32.gmra.mxu0 %v225
  %v833 = vpop.f32.mrf.mxu0
  %v834 = vadd.f32 0.0, %v833
  %835 = vmatmul.f32.gmra.mxu0 %v228
  %v836 = vpop.f32.mrf.mxu0
  %v837 = vadd.f32 0.0, %v836
  %838 = vmatmul.f32.gmra.mxu0 %v231
  %v839 = vpop.f32.mrf.mxu0
  %v840 = vadd.f32 0.0, %v839
  %841 = vmatmul.f32.gmra.mxu0 %v234
  %v842 = vpop.f32.mrf.mxu0
  %v843 = vadd.f32 0.0, %v842
  %844 = vmatmul.f32.gmra.mxu0 %v237
  %v845 = vpop.f32.mrf.mxu0
  %v846 = vadd.f32 0.0, %v845
  %847 = vmatmul.f32.gmra.mxu0 %v240
  %v848 = vpop.f32.mrf.mxu0
  %v849 = vadd.f32 0.0, %v848
  %850 = vmatmul.f32.gmra.mxu0 %v243
  %v851 = vpop.f32.mrf.mxu0
  %v852 = vadd.f32 0.0, %v851
  %853 = vmatmul.f32.gmra.mxu0 %v246
  %v854 = vpop.f32.mrf.mxu0
  %v855 = vadd.f32 0.0, %v854
  %856 = vmatmul.f32.gmra.mxu0 %v249
  %v857 = vpop.f32.mrf.mxu0
  %v858 = vadd.f32 0.0, %v857
  %859 = vmatmul.f32.gmra.mxu0 %v252
  %v860 = vpop.f32.mrf.mxu0
  %v861 = vadd.f32 0.0, %v860
  %862 = vmatmul.f32.gmra.mxu0 %v255
  %v863 = vpop.f32.mrf.mxu0
  %v864 = vadd.f32 0.0, %v863
  %865 = vmatmul.f32.gmra.mxu0 %v258
  %v866 = vpop.f32.mrf.mxu0
  %v867 = vadd.f32 0.0, %v866
  %868 = vmatmul.f32.gmra.mxu0 %v261
  %v869 = vpop.f32.mrf.mxu0
  %v870 = vadd.f32 0.0, %v869
  %871 = vmatmul.f32.gmra.mxu0 %v264
  %v872 = vpop.f32.mrf.mxu0
  %v873 = vadd.f32 0.0, %v872
  %874 = vmatmul.f32.gmra.mxu0 %v267
  %v875 = vpop.f32.mrf.mxu0
  %v876 = vadd.f32 0.0, %v875
  %877 = vmatmul.f32.gmra.mxu0 %v270
  %v878 = vpop.f32.mrf.mxu0
  %v879 = vadd.f32 0.0, %v878
  %880 = vmatmul.f32.gmra.mxu0 %v273
  %v881 = vpop.f32.mrf.mxu0
  %v882 = vadd.f32 0.0, %v881
  %883 = vmatmul.f32.gmra.mxu0 %v276
  %v884 = vpop.f32.mrf.mxu0
  %v885 = vadd.f32 0.0, %v884
  %886 = vmatmul.f32.gmra.mxu0 %v279
  %v887 = vpop.f32.mrf.mxu0
  %v888 = vadd.f32 0.0, %v887
  %889 = vmatmul.f32.gmra.mxu0 %v282
  %v890 = vpop.f32.mrf.mxu0
  %v891 = vadd.f32 0.0, %v890
  %892 = vmatmul.f32.gmra.mxu0 %v285
  %v893 = vpop.f32.mrf.mxu0
  %v894 = vadd.f32 0.0, %v893
  %895 = vmatmul.f32.gmra.mxu0 %v288
  %v896 = vpop.f32.mrf.mxu0
  %v897 = vadd.f32 0.0, %v896
  %898 = vmatmul.f32.gmra.mxu0 %v291
  %v899 = vpop.f32.mrf.mxu0
  %v900 = vadd.f32 0.0, %v899
  %901 = vmatmul.f32.gmra.mxu0 %v294
  %v902 = vpop.f32.mrf.mxu0
  %v903 = vadd.f32 0.0, %v902
  %904 = vmatmul.f32.gmra.mxu0 %v297
  %v905 = vpop.f32.mrf.mxu0
  %v906 = vadd.f32 0.0, %v905
  %907 = vmatmul.f32.gmra.mxu0 %v300
  %v908 = vpop.f32.mrf.mxu0
  %v909 = vadd.f32 0.0, %v908
  %910 = vmatmul.f32.gmra.mxu0 %v303
  %v911 = vpop.f32.mrf.mxu0
  %v912 = vadd.f32 0.0, %v911
  %913 = vmatmul.f32.gmra.mxu0 %v306
  %v914 = vpop.f32.mrf.mxu0
  %v915 = vadd.f32 0.0, %v914
  %916 = vmatmul.f32.gmra.mxu0 %v309
  %v917 = vpop.f32.mrf.mxu0
  %v918 = vadd.f32 0.0, %v917
  %919 = vmatmul.f32.gmra.mxu0 %v312
  %v920 = vpop.f32.mrf.mxu0
  %v921 = vadd.f32 0.0, %v920
  %922 = vmatmul.f32.gmra.mxu0 %v315
  %v923 = vpop.f32.mrf.mxu0
  %v924 = vadd.f32 0.0, %v923
  %925 = vmatmul.f32.gmra.mxu0 %v318
  %v926 = vpop.f32.mrf.mxu0
  %v927 = vadd.f32 0.0, %v926
  %928 = vmatmul.f32.gmra.mxu0 %v321
  %v929 = vpop.f32.mrf.mxu0
  %v930 = vadd.f32 0.0, %v929
  %931 = vmatmul.f32.gmra.mxu0 %v324
  %v932 = vpop.f32.mrf.mxu0
  %v933 = vadd.f32 0.0, %v932
  %934 = vmatmul.f32.gmra.mxu0 %v327
  %v935 = vpop.f32.mrf.mxu0
  %v936 = vadd.f32 0.0, %v935
  %937 = vmatmul.f32.gmra.mxu0 %v330
  %v938 = vpop.f32.mrf.mxu0
  %v939 = vadd.f32 0.0, %v938
  %940 = vmatmul.f32.gmra.mxu0 %v333
  %v941 = vpop.f32.mrf.mxu0
  %v942 = vadd.f32 0.0, %v941
  %943 = vmatmul.f32.gmra.mxu0 %v336
  %v944 = vpop.f32.mrf.mxu0
  %v945 = vadd.f32 0.0, %v944
  %946 = vmatmul.f32.gmra.mxu0 %v339
  %v947 = vpop.f32.mrf.mxu0
  %v948 = vadd.f32 0.0, %v947
  %949 = vmatmul.f32.gmra.mxu0 %v342
  %v950 = vpop.f32.mrf.mxu0
  %v951 = vadd.f32 0.0, %v950
  %952 = vmatmul.f32.gmra.mxu0 %v345
  %v953 = vpop.f32.mrf.mxu0
  %v954 = vadd.f32 0.0, %v953
  %955 = vmatmul.f32.gmra.mxu0 %v348
  %v956 = vpop.f32.mrf.mxu0
  %v957 = vadd.f32 0.0, %v956
  %958 = vmatmul.f32.gmra.mxu0 %v351
  %v959 = vpop.f32.mrf.mxu0
  %v960 = vadd.f32 0.0, %v959
  %961 = vmatmul.f32.gmra.mxu0 %v354
  %v962 = vpop.f32.mrf.mxu0
  %v963 = vadd.f32 0.0, %v962
  %964 = vmatmul.f32.gmra.mxu0 %v357
  %v965 = vpop.f32.mrf.mxu0
  %v966 = vadd.f32 0.0, %v965
  %967 = vmatmul.f32.gmra.mxu0 %v360
  %v968 = vpop.f32.mrf.mxu0
  %v969 = vadd.f32 0.0, %v968
  %970 = vmatmul.f32.gmra.mxu0 %v363
  %v971 = vpop.f32.mrf.mxu0
  %v972 = vadd.f32 0.0, %v971
  %973 = vmatmul.f32.gmra.mxu0 %v366
  %v974 = vpop.f32.mrf.mxu0
  %v975 = vadd.f32 0.0, %v974
  %976 = vmatmul.f32.gmra.mxu0 %v369
  %v977 = vpop.f32.mrf.mxu0
  %v978 = vadd.f32 0.0, %v977
  %979 = vmatmul.f32.gmra.mxu0 %v372
  %v980 = vpop.f32.mrf.mxu0
  %v981 = vadd.f32 0.0, %v980
  %982 = vmatmul.f32.gmra.mxu0 %v375
  %v983 = vpop.f32.mrf.mxu0
  %v984 = vadd.f32 0.0, %v983
  %985 = vmatmul.f32.gmra.mxu0 %v378
  %v986 = vpop.f32.mrf.mxu0
  %v987 = vadd.f32 0.0, %v986
  %988 = vmatmul.f32.gmra.mxu0 %v381
  %v989 = vpop.f32.mrf.mxu0
  %v990 = vadd.f32 0.0, %v989
  %991 = vmatmul.f32.gmra.mxu0 %v384
  %v992 = vpop.f32.mrf.mxu0
  %v993 = vadd.f32 0.0, %v992
  %994 = vmatmul.f32.gmra.mxu0 %v387
  %v995 = vpop.f32.mrf.mxu0
  %v996 = vadd.f32 0.0, %v995
  %997 = vmatmul.f32.gmra.mxu0 %v390
  %v998 = vpop.f32.mrf.mxu0
  %v999 = vadd.f32 0.0, %v998
  %1000 = vmatmul.f32.gmra.mxu0 %v393
  %v1001 = vpop.f32.mrf.mxu0
  %v1002 = vadd.f32 0.0, %v1001
  %1003 = vmatmul.f32.gmra.mxu0 %v396
  %v1004 = vpop.f32.mrf.mxu0
  %v1005 = vadd.f32 0.0, %v1004
  %1006 = vmatmul.f32.gmra.mxu0 %v399
  %v1007 = vpop.f32.mrf.mxu0
  %v1008 = vadd.f32 0.0, %v1007
  %1009 = vmatmul.f32.gmra.mxu0 %v402
  %v1010 = vpop.f32.mrf.mxu0
  %v1011 = vadd.f32 0.0, %v1010
  %1012 = vmatmul.f32.gmra.mxu0 %v405
  %v1013 = vpop.f32.mrf.mxu0
  %v1014 = vadd.f32 0.0, %v1013
  %1015 = vmatmul.f32.gmra.mxu0 %v408
  %v1016 = vpop.f32.mrf.mxu0
  %v1017 = vadd.f32 0.0, %v1016
  %1018 = vmatmul.f32.gmra.mxu0 %v411
  %v1019 = vpop.f32.mrf.mxu0
  %v1020 = vadd.f32 0.0, %v1019
  %1021 = vmatmul.f32.gmra.mxu0 %v414
  %v1022 = vpop.f32.mrf.mxu0
  %v1023 = vadd.f32 0.0, %v1022
  %1024 = vmatmul.f32.gmra.mxu0 %v417
  %v1025 = vpop.f32.mrf.mxu0
  %v1026 = vadd.f32 0.0, %v1025
  %1027 = vmatmul.f32.gmra.mxu0 %v420
  %v1028 = vpop.f32.mrf.mxu0
  %v1029 = vadd.f32 0.0, %v1028
  %1030 = vmatmul.f32.gmra.mxu0 %v423
  %v1031 = vpop.f32.mrf.mxu0
  %v1032 = vadd.f32 0.0, %v1031
  %1033 = vmatmul.f32.gmra.mxu0 %v426
  %v1034 = vpop.f32.mrf.mxu0
  %v1035 = vadd.f32 0.0, %v1034
  %1036 = vmatmul.f32.gmra.mxu0 %v429
  %v1037 = vpop.f32.mrf.mxu0
  %v1038 = vadd.f32 0.0, %v1037
  %1039 = vmatmul.f32.gmra.mxu0 %v432
  %v1040 = vpop.f32.mrf.mxu0
  %v1041 = vadd.f32 0.0, %v1040
  %1042 = vmatmul.f32.gmra.mxu0 %v435
  %v1043 = vpop.f32.mrf.mxu0
  %v1044 = vadd.f32 0.0, %v1043
  %1045 = vmatmul.f32.gmra.mxu0 %v438
  %v1046 = vpop.f32.mrf.mxu0
  %v1047 = vadd.f32 0.0, %v1046
  %1048 = vmatmul.f32.gmra.mxu0 %v441
  %v1049 = vpop.f32.mrf.mxu0
  %v1050 = vadd.f32 0.0, %v1049
  %1051 = vmatmul.f32.gmra.mxu0 %v444
  %v1052 = vpop.f32.mrf.mxu0
  %v1053 = vadd.f32 0.0, %v1052
  %1054 = vmatmul.f32.gmra.mxu0 %v447
  %v1055 = vpop.f32.mrf.mxu0
  %v1056 = vadd.f32 0.0, %v1055
  %1057 = vmatmul.f32.gmra.mxu0 %v450
  %v1058 = vpop.f32.mrf.mxu0
  %v1059 = vadd.f32 0.0, %v1058
  %1060 = vmatmul.f32.gmra.mxu0 %v453
  %v1061 = vpop.f32.mrf.mxu0
  %v1062 = vadd.f32 0.0, %v1061
  %1063 = vmatmul.f32.gmra.mxu0 %v456
  %v1064 = vpop.f32.mrf.mxu0
  %v1065 = vadd.f32 0.0, %v1064
  %1066 = vmatmul.f32.gmra.mxu0 %v459
  %v1067 = vpop.f32.mrf.mxu0
  %v1068 = vadd.f32 0.0, %v1067
  %1069 = vmatmul.f32.gmra.mxu0 %v462
  %v1070 = vpop.f32.mrf.mxu0
  %v1071 = vadd.f32 0.0, %v1070
  %1072 = vmatmul.f32.gmra.mxu0 %v465
  %v1073 = vpop.f32.mrf.mxu0
  %v1074 = vadd.f32 0.0, %v1073
  %1075 = vmatmul.f32.gmra.mxu0 %v468
  %v1076 = vpop.f32.mrf.mxu0
  %v1077 = vadd.f32 0.0, %v1076
  %1078 = vmatmul.f32.gmra.mxu0 %v471
  %v1079 = vpop.f32.mrf.mxu0
  %v1080 = vadd.f32 0.0, %v1079
  %1081 = vmatmul.f32.gmra.mxu0 %v474
  %v1082 = vpop.f32.mrf.mxu0
  %v1083 = vadd.f32 0.0, %v1082
  %1084 = vmatmul.f32.gmra.mxu0 %v477
  %v1085 = vpop.f32.mrf.mxu0
  %v1086 = vadd.f32 0.0, %v1085
  %1087 = vmatmul.f32.gmra.mxu0 %v480
  %v1088 = vpop.f32.mrf.mxu0
  %v1089 = vadd.f32 0.0, %v1088
  %1090 = vmatmul.f32.gmra.mxu0 %v483
  %v1091 = vpop.f32.mrf.mxu0
  %v1092 = vadd.f32 0.0, %v1091
  %1093 = vmatmul.f32.gmra.mxu0 %v486
  %v1094 = vpop.f32.mrf.mxu0
  %v1095 = vadd.f32 0.0, %v1094
  %1096 = vmatmul.f32.gmra.mxu0 %v489
  %v1097 = vpop.f32.mrf.mxu0
  %v1098 = vadd.f32 0.0, %v1097
  %1099 = vmatmul.f32.gmra.mxu0 %v492
  %v1100 = vpop.f32.mrf.mxu0
  %v1101 = vadd.f32 0.0, %v1100
  %1102 = vmatmul.f32.gmra.mxu0 %v495
  %v1103 = vpop.f32.mrf.mxu0
  %v1104 = vadd.f32 0.0, %v1103
  %1105 = vmatmul.f32.gmra.mxu0 %v498
  %v1106 = vpop.f32.mrf.mxu0
  %v1107 = vadd.f32 0.0, %v1106
  %1108 = vmatmul.f32.gmra.mxu0 %v501
  %v1109 = vpop.f32.mrf.mxu0
  %v1110 = vadd.f32 0.0, %v1109
  %1111 = vmatmul.f32.gmra.mxu0 %v504
  %v1112 = vpop.f32.mrf.mxu0
  %v1113 = vadd.f32 0.0, %v1112
  %1114 = vmatmul.f32.gmra.mxu0 %v507
  %v1115 = vpop.f32.mrf.mxu0
  %v1116 = vadd.f32 0.0, %v1115
  %1117 = vmatmul.f32.gmra.mxu0 %v510
  %v1118 = vpop.f32.mrf.mxu0
  %v1119 = vadd.f32 0.0, %v1118
  %1120 = vmatmul.f32.gmra.mxu0 %v513
  %v1121 = vpop.f32.mrf.mxu0
  %v1122 = vadd.f32 0.0, %v1121
  %1123 = vmatmul.f32.gmra.mxu0 %v516
  %v1124 = vpop.f32.mrf.mxu0
  %v1125 = vadd.f32 0.0, %v1124
  %1126 = vmatmul.f32.gmra.mxu0 %v519
  %v1127 = vpop.f32.mrf.mxu0
  %v1128 = vadd.f32 0.0, %v1127
  %1129 = vmatmul.f32.gmra.mxu0 %v522
  %v1130 = vpop.f32.mrf.mxu0
  %v1131 = vadd.f32 0.0, %v1130
  %1132 = vmatmul.f32.gmra.mxu0 %v525
  %v1133 = vpop.f32.mrf.mxu0
  %v1134 = vadd.f32 0.0, %v1133
  %1135 = vmatmul.f32.gmra.mxu0 %v528
  %v1136 = vpop.f32.mrf.mxu0
  %v1137 = vadd.f32 0.0, %v1136
  %1138 = vmatmul.f32.gmra.mxu0 %v531
  %v1139 = vpop.f32.mrf.mxu0
  %v1140 = vadd.f32 0.0, %v1139
  %1141 = vmatmul.f32.gmra.mxu0 %v534
  %v1142 = vpop.f32.mrf.mxu0
  %v1143 = vadd.f32 0.0, %v1142
  %1144 = vmatmul.f32.gmra.mxu0 %v537
  %v1145 = vpop.f32.mrf.mxu0
  %v1146 = vadd.f32 0.0, %v1145
  %1147 = vmatmul.f32.gmra.mxu0 %v540
  %v1148 = vpop.f32.mrf.mxu0
  %v1149 = vadd.f32 0.0, %v1148
  %1150 = vmatmul.f32.gmra.mxu0 %v543
  %v1151 = vpop.f32.mrf.mxu0
  %v1152 = vadd.f32 0.0, %v1151
  %1153 = vmatmul.f32.gmra.mxu0 %v546
  %v1154 = vpop.f32.mrf.mxu0
  %v1155 = vadd.f32 0.0, %v1154
  %1156 = vmatmul.f32.gmra.mxu0 %v549
  %v1157 = vpop.f32.mrf.mxu0
  %v1158 = vadd.f32 0.0, %v1157
  %1159 = vmatmul.f32.gmra.mxu0 %v552
  %v1160 = vpop.f32.mrf.mxu0
  %v1161 = vadd.f32 0.0, %v1160
  %1162 = vmatmul.f32.gmra.mxu0 %v555
  %v1163 = vpop.f32.mrf.mxu0
  %v1164 = vadd.f32 0.0, %v1163
  %1165 = vmatmul.f32.gmra.mxu0 %v558
  %v1166 = vpop.f32.mrf.mxu0
  %v1167 = vadd.f32 0.0, %v1166
  %1168 = vmatmul.f32.gmra.mxu0 %v561
  %v1169 = vpop.f32.mrf.mxu0
  %v1170 = vadd.f32 0.0, %v1169
  %1171 = vmatmul.f32.gmra.mxu0 %v564
  %v1172 = vpop.f32.mrf.mxu0
  %v1173 = vadd.f32 0.0, %v1172
  %1174 = vmatmul.f32.gmra.mxu0 %v567
  %v1175 = vpop.f32.mrf.mxu0
  %v1176 = vadd.f32 0.0, %v1175
  %1177 = vmatmul.f32.gmra.mxu0 %v570
  %v1178 = vpop.f32.mrf.mxu0
  %v1179 = vadd.f32 0.0, %v1178
  %1180 = vmatmul.f32.gmra.mxu0 %v573
  %v1181 = vpop.f32.mrf.mxu0
  %v1182 = vadd.f32 0.0, %v1181
  %1183 = vmatmul.f32.gmra.mxu0 %v576
  %v1184 = vpop.f32.mrf.mxu0
  %v1185 = vadd.f32 0.0, %v1184
  %1186 = vmatmul.f32.gmra.mxu0 %v579
  %v1187 = vpop.f32.mrf.mxu0
  %v1188 = vadd.f32 0.0, %v1187
  %1189 = vmatmul.f32.gmra.mxu0 %v582
  %v1190 = vpop.f32.mrf.mxu0
  %v1191 = vadd.f32 0.0, %v1190
  %1192 = vmatmul.f32.gmra.mxu0 %v585
  %v1193 = vpop.f32.mrf.mxu0
  %v1194 = vadd.f32 0.0, %v1193
  %1195 = vmatmul.f32.gmra.mxu0 %v588
  %v1196 = vpop.f32.mrf.mxu0
  %v1197 = vadd.f32 0.0, %v1196
  %1198 = vmatmul.f32.gmra.mxu0 %v591
  %v1199 = vpop.f32.mrf.mxu0
  %v1200 = vadd.f32 0.0, %v1199
  %1201 = vmatmul.f32.gmra.mxu0 %v594
  %v1202 = vpop.f32.mrf.mxu0
  %v1203 = vadd.f32 0.0, %v1202
  %1204 = vmatmul.f32.gmra.mxu0 %v597
  %v1205 = vpop.f32.mrf.mxu0
  %v1206 = vadd.f32 0.0, %v1205
  %1207 = vmatmul.f32.gmra.mxu0 %v600
  %v1208 = vpop.f32.mrf.mxu0
  %v1209 = vadd.f32 0.0, %v1208
  %1210 = vmatmul.f32.gmra.mxu0 %v603
  %v1211 = vpop.f32.mrf.mxu0
  %v1212 = vadd.f32 0.0, %v1211
  %1213 = vmatmul.f32.gmra.mxu0 %v606
  %v1214 = vpop.f32.mrf.mxu0
  %v1215 = vadd.f32 0.0, %v1214
  %1216 = vmatmul.f32.gmra.mxu0 %v609
  %v1217 = vpop.f32.mrf.mxu0
  %v1218 = vadd.f32 0.0, %v1217
  %1219 = vmatmul.f32.gmra.mxu0 %v612
  %v1220 = vpop.f32.mrf.mxu0
  %v1221 = vadd.f32 0.0, %v1220
  %1222 = vmatmul.f32.gmra.mxu0 %v615
  %v1223 = vpop.f32.mrf.mxu0
  %v1224 = vadd.f32 0.0, %v1223
  %1225 = vmatmul.f32.gmra.mxu0 %v618
  %v1226 = vpop.f32.mrf.mxu0
  %v1227 = vadd.f32 0.0, %v1226
  %1228 = vmatmul.f32.gmra.mxu0 %v621
  %v1229 = vpop.f32.mrf.mxu0
  %v1230 = vadd.f32 0.0, %v1229
  %1231 = vmatmul.f32.gmra.mxu0 %v624
  %v1232 = vpop.f32.mrf.mxu0
  %v1233 = vadd.f32 0.0, %v1232
  %1234 = vmatmul.f32.gmra.mxu0 %v627
  %v1235 = vpop.f32.mrf.mxu0
  %v1236 = vadd.f32 0.0, %v1235
  %1237 = vmatmul.f32.gmra.mxu0 %v630
  %v1238 = vpop.f32.mrf.mxu0
  %v1239 = vadd.f32 0.0, %v1238
  %1240 = vmatmul.f32.gmra.mxu0 %v633
  %v1241 = vpop.f32.mrf.mxu0
  %v1242 = vadd.f32 0.0, %v1241
  %1243 = vmatmul.f32.gmra.mxu0 %v636
  %v1244 = vpop.f32.mrf.mxu0
  %v1245 = vadd.f32 0.0, %v1244
  %1246 = vmatmul.f32.gmra.mxu0 %v639
  %v1247 = vpop.f32.mrf.mxu0
  %v1248 = vadd.f32 0.0, %v1247
  %1249 = vmatmul.f32.gmra.mxu0 %v642
  %v1250 = vpop.f32.mrf.mxu0
  %v1251 = vadd.f32 0.0, %v1250
  %1252 = vmatmul.f32.gmra.mxu0 %v645
  %v1253 = vpop.f32.mrf.mxu0
  %v1254 = vadd.f32 0.0, %v1253
  %1255 = vmatmul.f32.gmra.mxu0 %v648
  %v1256 = vpop.f32.mrf.mxu0
  %v1257 = vadd.f32 0.0, %v1256
  %1258 = vmatmul.f32.gmra.mxu0 %v651
  %v1259 = vpop.f32.mrf.mxu0
  %v1260 = vadd.f32 0.0, %v1259
  %1261 = vmatmul.f32.gmra.mxu0 %v654
  %v1262 = vpop.f32.mrf.mxu0
  %v1263 = vadd.f32 0.0, %v1262
  %1264 = vmatmul.f32.gmra.mxu0 %v657
  %v1265 = vpop.f32.mrf.mxu0
  %v1266 = vadd.f32 0.0, %v1265
  %1267 = vmatmul.f32.gmra.mxu0 %v660
  %v1268 = vpop.f32.mrf.mxu0
  %v1269 = vadd.f32 0.0, %v1268
  %1270 = vmatmul.f32.gmra.mxu0 %v663
  %v1271 = vpop.f32.mrf.mxu0
  %v1272 = vadd.f32 0.0, %v1271
  %1273 = vmatmul.f32.gmra.mxu0 %v666
  %v1274 = vpop.f32.mrf.mxu0
  %v1275 = vadd.f32 0.0, %v1274
  %1276 = vmatmul.f32.gmra.mxu0 %v669
  %v1277 = vpop.f32.mrf.mxu0
  %v1278 = vadd.f32 0.0, %v1277
  %1279 = vmatmul.f32.gmra.mxu0 %v672
  %v1280 = vpop.f32.mrf.mxu0
  %v1281 = vadd.f32 0.0, %v1280
  %1282 = vmatmul.f32.gmra.mxu0 %v675
  %v1283 = vpop.f32.mrf.mxu0
  %v1284 = vadd.f32 0.0, %v1283
  %1285 = vmatmul.f32.gmra.mxu0 %v678
  %v1286 = vpop.f32.mrf.mxu0
  %v1287 = vadd.f32 0.0, %v1286
  %1288 = vmatmul.f32.gmra.mxu0 %v681
  %v1289 = vpop.f32.mrf.mxu0
  %v1290 = vadd.f32 0.0, %v1289
  %1291 = vmatmul.f32.gmra.mxu0 %v684
  %v1292 = vpop.f32.mrf.mxu0
  %v1293 = vadd.f32 0.0, %v1292
  %1294 = vmatmul.f32.gmra.mxu0 %v687
  %v1295 = vpop.f32.mrf.mxu0
  %v1296 = vadd.f32 0.0, %v1295
  %1297 = vmatmul.f32.gmra.mxu0 %v690
  %v1298 = vpop.f32.mrf.mxu0
  %v1299 = vadd.f32 0.0, %v1298
  %1300 = vmatmul.f32.gmra.mxu0 %v693
  %v1301 = vpop.f32.mrf.mxu0
  %v1302 = vadd.f32 0.0, %v1301
  %1303 = vmatmul.f32.gmra.mxu0 %v696
  %v1304 = vpop.f32.mrf.mxu0
  %v1305 = vadd.f32 0.0, %v1304
  %1306 = vmatmul.f32.gmra.mxu0 %v699
  %v1307 = vpop.f32.mrf.mxu0
  %v1308 = vadd.f32 0.0, %v1307
  %1309 = vmatmul.f32.gmra.mxu0 %v702
  %v1310 = vpop.f32.mrf.mxu0
  %v1311 = vadd.f32 0.0, %v1310
  %1312 = vmatmul.f32.gmra.mxu0 %v705
  %v1313 = vpop.f32.mrf.mxu0
  %v1314 = vadd.f32 0.0, %v1313
  %1315 = vmatmul.f32.gmra.mxu0 %v708
  %v1316 = vpop.f32.mrf.mxu0
  %v1317 = vadd.f32 0.0, %v1316
  %1318 = vmatmul.f32.gmra.mxu0 %v711
  %v1319 = vpop.f32.mrf.mxu0
  %v1320 = vadd.f32 0.0, %v1319
  %1321 = vmatmul.f32.gmra.mxu0 %v714
  %v1322 = vpop.f32.mrf.mxu0
  %v1323 = vadd.f32 0.0, %v1322
  %1324 = vmatmul.f32.gmra.mxu0 %v717
  %v1325 = vpop.f32.mrf.mxu0
  %v1326 = vadd.f32 0.0, %v1325
  %1327 = vmatmul.f32.gmra.mxu0 %v720
  %v1328 = vpop.f32.mrf.mxu0
  %v1329 = vadd.f32 0.0, %v1328
  %1330 = vmatmul.f32.gmra.mxu0 %v723
  %v1331 = vpop.f32.mrf.mxu0
  %v1332 = vadd.f32 0.0, %v1331
  %1333 = vmatmul.f32.gmra.mxu0 %v726
  %v1334 = vpop.f32.mrf.mxu0
  %v1335 = vadd.f32 0.0, %v1334
  %1336 = vmatmul.f32.gmra.mxu0 %v729
  %v1337 = vpop.f32.mrf.mxu0
  %v1338 = vadd.f32 0.0, %v1337
  %1339 = vmatmul.f32.gmra.mxu0 %v732
  %v1340 = vpop.f32.mrf.mxu0
  %v1341 = vadd.f32 0.0, %v1340
  %1342 = vmatmul.f32.gmra.mxu0 %v735
  %v1343 = vpop.f32.mrf.mxu0
  %v1344 = vadd.f32 0.0, %v1343
  %1345 = vmatmul.f32.gmra.mxu0 %v738
  %v1346 = vpop.f32.mrf.mxu0
  %v1347 = vadd.f32 0.0, %v1346
  %1348 = vmatmul.f32.gmra.mxu0 %v741
  %v1349 = vpop.f32.mrf.mxu0
  %v1350 = vadd.f32 0.0, %v1349
  %1351 = vmatmul.f32.gmra.mxu0 %v744
  %v1352 = vpop.f32.mrf.mxu0
  %v1353 = vadd.f32 0.0, %v1352
  %1354 = vmatmul.f32.gmra.mxu0 %v747
  %v1355 = vpop.f32.mrf.mxu0
  %v1356 = vadd.f32 0.0, %v1355
  %1357 = vmatmul.f32.gmra.mxu0 %v750
  %v1358 = vpop.f32.mrf.mxu0
  %v1359 = vadd.f32 0.0, %v1358
  %1360 = vmatmul.f32.gmra.mxu0 %v753
  %v1361 = vpop.f32.mrf.mxu0
  %v1362 = vadd.f32 0.0, %v1361
  %1363 = vmatmul.f32.gmra.mxu0 %v756
  %v1364 = vpop.f32.mrf.mxu0
  %v1365 = vadd.f32 0.0, %v1364
  %1366 = vmatmul.f32.gmra.mxu0 %v759
  %v1367 = vpop.f32.mrf.mxu0
  %v1368 = vadd.f32 0.0, %v1367
  %1369 = vmatmul.f32.gmra.mxu0 %v762
  %v1370 = vpop.f32.mrf.mxu0
  %v1371 = vadd.f32 0.0, %v1370
  %1372 = vmatmul.f32.gmra.mxu0 %v765
  %v1373 = vpop.f32.mrf.mxu0
  %v1374 = vadd.f32 0.0, %v1373
  %1375 = vmatmul.f32.gmra.mxu0 %v768
  %v1376 = vpop.f32.mrf.mxu0
  %v1377 = vadd.f32 0.0, %v1376
  %1378 = vmatmul.f32.gmra.mxu0 %v771
  %v1379 = vpop.f32.mrf.mxu0
  %v1380 = vadd.f32 0.0, %v1379
  %1381 = vmatmul.f32.gmra.mxu0 %v774
  %v1382 = vpop.f32.mrf.mxu0
  %v1383 = vadd.f32 0.0, %v1382
  %1384 = vmatmul.f32.gmra.mxu0 %v777
  %v1385 = vpop.f32.mrf.mxu0
  %v1386 = vadd.f32 0.0, %v1385
  %1387 = vmatmul.f32.gmra.mxu0 %v780
  %v1388 = vpop.f32.mrf.mxu0
  %v1389 = vadd.f32 0.0, %v1388
  %1390 = vmatmul.f32.gmra.mxu0 %v783
  %v1391 = vpop.f32.mrf.mxu0
  %v1392 = vadd.f32 0.0, %v1391
  %1393 = vmatmul.f32.gmra.mxu0 %v786
  %v1394 = vpop.f32.mrf.mxu0
  %v1395 = vadd.f32 0.0, %v1394
  %1396 = vmatmul.f32.gmra.mxu0 %v789
  %v1397 = vpop.f32.mrf.mxu0
  %v1398 = vadd.f32 0.0, %v1397
  %1399 = vmatmul.f32.gmra.mxu0 %v792
  %v1400 = vpop.f32.mrf.mxu0
  %v1401 = vadd.f32 0.0, %v1400
  %1402 = vmatmul.f32.gmra.mxu0 %v795
  %v1403 = vpop.f32.mrf.mxu0
  %v1404 = vadd.f32 0.0, %v1403
  %1405 = vmatmul.f32.gmra.mxu0 %v798
  %v1406 = vpop.f32.mrf.mxu0
  %v1407 = vadd.f32 0.0, %v1406
  %1408 = vmatmul.f32.gmra.mxu0 %v801
  %v1409 = vpop.f32.mrf.mxu0
  %v1410 = vadd.f32 0.0, %v1409
  %1411 = vdwg.mxu0
  %v1412 = vmax.f32 %v825, %v972
  %v1413 = vmax.f32 %v828, %v975
  %v1414 = vmax.f32 %v831, %v978
  %v1415 = vmax.f32 %v834, %v981
  %v1416 = vmax.f32 %v837, %v984
  %v1417 = vmax.f32 %v840, %v987
  %v1418 = vmax.f32 %v843, %v990
  %v1419 = vmax.f32 %v846, %v993
  %v1420 = vmax.f32 %v849, %v996
  %v1421 = vmax.f32 %v852, %v999
  %v1422 = vmax.f32 %v855, %v1002
  %v1423 = vmax.f32 %v858, %v1005
  %v1424 = vmax.f32 %v861, %v1008
  %v1425 = vmax.f32 %v864, %v1011
  %v1426 = vmax.f32 %v867, %v1014
  %v1427 = vmax.f32 %v870, %v1017
  %v1428 = vmax.f32 %v873, %v1020
  %v1429 = vmax.f32 %v876, %v1023
  %v1430 = vmax.f32 %v879, %v1026
  %v1431 = vmax.f32 %v882, %v1029
  %v1432 = vmax.f32 %v885, %v1032
  %v1433 = vmax.f32 %v888, %v1035
  %v1434 = vmax.f32 %v891, %v1038
  %v1435 = vmax.f32 %v894, %v1041
  %v1436 = vmax.f32 %v897, %v1044
  %v1437 = vmax.f32 %v900, %v1047
  %v1438 = vmax.f32 %v903, %v1050
  %v1439 = vmax.f32 %v906, %v1053
  %v1440 = vmax.f32 %v909, %v1056
  %v1441 = vmax.f32 %v912, %v1059
  %v1442 = vmax.f32 %v915, %v1062
  %v1443 = vmax.f32 %v918, %v1065
  %v1444 = vmax.f32 %v921, %v1068
  %v1445 = vmax.f32 %v924, %v1071
  %v1446 = vmax.f32 %v927, %v1074
  %v1447 = vmax.f32 %v930, %v1077
  %v1448 = vmax.f32 %v933, %v1080
  %v1449 = vmax.f32 %v936, %v1083
  %v1450 = vmax.f32 %v939, %v1086
  %v1451 = vmax.f32 %v942, %v1089
  %v1452 = vmax.f32 %v945, %v1092
  %v1453 = vmax.f32 %v948, %v1095
  %v1454 = vmax.f32 %v951, %v1098
  %v1455 = vmax.f32 %v954, %v1101
  %v1456 = vmax.f32 %v957, %v1104
  %v1457 = vmax.f32 %v960, %v1107
  %v1458 = vmax.f32 %v963, %v1110
  %v1459 = vmax.f32 %v966, %v1113
  %v1460 = vmax.f32 %v969, %v1116
  %v1461 = vmax.f32 %v1119, %v1266
  %v1462 = vmax.f32 %v1122, %v1269
  %v1463 = vmax.f32 %v1125, %v1272
  %v1464 = vmax.f32 %v1128, %v1275
  %v1465 = vmax.f32 %v1131, %v1278
  %v1466 = vmax.f32 %v1134, %v1281
  %v1467 = vmax.f32 %v1137, %v1284
  %v1468 = vmax.f32 %v1140, %v1287
  %v1469 = vmax.f32 %v1143, %v1290
  %v1470 = vmax.f32 %v1146, %v1293
  %v1471 = vmax.f32 %v1149, %v1296
  %v1472 = vmax.f32 %v1152, %v1299
  %v1473 = vmax.f32 %v1155, %v1302
  %v1474 = vmax.f32 %v1158, %v1305
  %v1475 = vmax.f32 %v1161, %v1308
  %v1476 = vmax.f32 %v1164, %v1311
  %v1477 = vmax.f32 %v1167, %v1314
  %v1478 = vmax.f32 %v1170, %v1317
  %v1479 = vmax.f32 %v1173, %v1320
  %v1480 = vmax.f32 %v1176, %v1323
  %v1481 = vmax.f32 %v1179, %v1326
  %v1482 = vmax.f32 %v1182, %v1329
  %v1483 = vmax.f32 %v1185, %v1332
  %v1484 = vmax.f32 %v1188, %v1335
  %v1485 = vmax.f32 %v1191, %v1338
  %v1486 = vmax.f32 %v1194, %v1341
  %v1487 = vmax.f32 %v1197, %v1344
  %v1488 = vmax.f32 %v1200, %v1347
  %v1489 = vmax.f32 %v1203, %v1350
  %v1490 = vmax.f32 %v1206, %v1353
  %v1491 = vmax.f32 %v1209, %v1356
  %v1492 = vmax.f32 %v1212, %v1359
  %v1493 = vmax.f32 %v1215, %v1362
  %v1494 = vmax.f32 %v1218, %v1365
  %v1495 = vmax.f32 %v1221, %v1368
  %v1496 = vmax.f32 %v1224, %v1371
  %v1497 = vmax.f32 %v1227, %v1374
  %v1498 = vmax.f32 %v1230, %v1377
  %v1499 = vmax.f32 %v1233, %v1380
  %v1500 = vmax.f32 %v1236, %v1383
  %v1501 = vmax.f32 %v1239, %v1386
  %v1502 = vmax.f32 %v1242, %v1389
  %v1503 = vmax.f32 %v1245, %v1392
  %v1504 = vmax.f32 %v1248, %v1395
  %v1505 = vmax.f32 %v1251, %v1398
  %v1506 = vmax.f32 %v1254, %v1401
  %v1507 = vmax.f32 %v1257, %v1404
  %v1508 = vmax.f32 %v1260, %v1407
  %v1509 = vmax.f32 %v1263, %v1410
  %v1510 = vmax.f32 %v1412, %v1461
  %v1511 = vmax.f32 %v1413, %v1462
  %v1512 = vmax.f32 %v1414, %v1463
  %v1513 = vmax.f32 %v1415, %v1464
  %v1514 = vmax.f32 %v1416, %v1465
  %v1515 = vmax.f32 %v1417, %v1466
  %v1516 = vmax.f32 %v1418, %v1467
  %v1517 = vmax.f32 %v1419, %v1468
  %v1518 = vmax.f32 %v1420, %v1469
  %v1519 = vmax.f32 %v1421, %v1470
  %v1520 = vmax.f32 %v1422, %v1471
  %v1521 = vmax.f32 %v1423, %v1472
  %v1522 = vmax.f32 %v1424, %v1473
  %v1523 = vmax.f32 %v1425, %v1474
  %v1524 = vmax.f32 %v1426, %v1475
  %v1525 = vmax.f32 %v1427, %v1476
  %v1526 = vmax.f32 %v1428, %v1477
  %v1527 = vmax.f32 %v1429, %v1478
  %v1528 = vmax.f32 %v1430, %v1479
  %v1529 = vmax.f32 %v1431, %v1480
  %v1530 = vmax.f32 %v1432, %v1481
  %v1531 = vmax.f32 %v1433, %v1482
  %v1532 = vmax.f32 %v1434, %v1483
  %v1533 = vmax.f32 %v1435, %v1484
  %v1534 = vmax.f32 %v1436, %v1485
  %v1535 = vmax.f32 %v1437, %v1486
  %v1536 = vmax.f32 %v1438, %v1487
  %v1537 = vmax.f32 %v1439, %v1488
  %v1538 = vmax.f32 %v1440, %v1489
  %v1539 = vmax.f32 %v1441, %v1490
  %v1540 = vmax.f32 %v1442, %v1491
  %v1541 = vmax.f32 %v1443, %v1492
  %v1542 = vmax.f32 %v1444, %v1493
  %v1543 = vmax.f32 %v1445, %v1494
  %v1544 = vmax.f32 %v1446, %v1495
  %v1545 = vmax.f32 %v1447, %v1496
  %v1546 = vmax.f32 %v1448, %v1497
  %v1547 = vmax.f32 %v1449, %v1498
  %v1548 = vmax.f32 %v1450, %v1499
  %v1549 = vmax.f32 %v1451, %v1500
  %v1550 = vmax.f32 %v1452, %v1501
  %v1551 = vmax.f32 %v1453, %v1502
  %v1552 = vmax.f32 %v1454, %v1503
  %v1553 = vmax.f32 %v1455, %v1504
  %v1554 = vmax.f32 %v1456, %v1505
  %v1555 = vmax.f32 %v1457, %v1506
  %v1556 = vmax.f32 %v1458, %v1507
  %v1557 = vmax.f32 %v1459, %v1508
  %v1558 = vmax.f32 %v1460, %v1509
  %v1559 = vld [vmem:[%s2] sm:$0x1]
  %v1561 = vperm.slane %v1559, 0
  %v1563 = vadd.f32 %v1510, %v1561
  %v1564 = vadd.f32 %v1511, %v1561
  %v1565 = vadd.f32 %v1512, %v1561
  %v1566 = vadd.f32 %v1513, %v1561
  %v1567 = vadd.f32 %v1514, %v1561
  %v1568 = vadd.f32 %v1515, %v1561
  %v1569 = vadd.f32 %v1516, %v1561
  %v1570 = vadd.f32 %v1517, %v1561
  %v1571 = vadd.f32 %v1518, %v1561
  %v1572 = vadd.f32 %v1519, %v1561
  %v1573 = vadd.f32 %v1520, %v1561
  %v1574 = vadd.f32 %v1521, %v1561
  %v1575 = vadd.f32 %v1522, %v1561
  %v1576 = vadd.f32 %v1523, %v1561
  %v1577 = vadd.f32 %v1524, %v1561
  %v1578 = vadd.f32 %v1525, %v1561
  %v1579 = vadd.f32 %v1526, %v1561
  %v1580 = vadd.f32 %v1527, %v1561
  %v1581 = vadd.f32 %v1528, %v1561
  %v1582 = vadd.f32 %v1529, %v1561
  %v1583 = vadd.f32 %v1530, %v1561
  %v1584 = vadd.f32 %v1531, %v1561
  %v1585 = vadd.f32 %v1532, %v1561
  %v1586 = vadd.f32 %v1533, %v1561
  %v1587 = vadd.f32 %v1534, %v1561
  %v1588 = vadd.f32 %v1535, %v1561
  %v1589 = vadd.f32 %v1536, %v1561
  %v1590 = vadd.f32 %v1537, %v1561
  %v1591 = vadd.f32 %v1538, %v1561
  %v1592 = vadd.f32 %v1539, %v1561
  %v1593 = vadd.f32 %v1540, %v1561
  %v1594 = vadd.f32 %v1541, %v1561
  %v1595 = vadd.f32 %v1542, %v1561
  %v1596 = vadd.f32 %v1543, %v1561
  %v1597 = vadd.f32 %v1544, %v1561
  %v1598 = vadd.f32 %v1545, %v1561
  %v1599 = vadd.f32 %v1546, %v1561
  %v1600 = vadd.f32 %v1547, %v1561
  %v1601 = vadd.f32 %v1548, %v1561
  %v1602 = vadd.f32 %v1549, %v1561
  %v1603 = vadd.f32 %v1550, %v1561
  %v1604 = vadd.f32 %v1551, %v1561
  %v1605 = vadd.f32 %v1552, %v1561
  %v1606 = vadd.f32 %v1553, %v1561
  %v1607 = vadd.f32 %v1554, %v1561
  %v1608 = vadd.f32 %v1555, %v1561
  %v1609 = vadd.f32 %v1556, %v1561
  %v1610 = vadd.f32 %v1557, %v1561
  %v1611 = vadd.f32 %v1558, %v1561
  %v1612 = vmax.f32 %v1563, 0.0
  %v1613 = vmax.f32 %v1564, 0.0
  %v1614 = vmax.f32 %v1565, 0.0
  %v1615 = vmax.f32 %v1566, 0.0
  %v1616 = vmax.f32 %v1567, 0.0
  %v1617 = vmax.f32 %v1568, 0.0
  %v1618 = vmax.f32 %v1569, 0.0
  %v1619 = vmax.f32 %v1570, 0.0
  %v1620 = vmax.f32 %v1571, 0.0
  %v1621 = vmax.f32 %v1572, 0.0
  %v1622 = vmax.f32 %v1573, 0.0
  %v1623 = vmax.f32 %v1574, 0.0
  %v1624 = vmax.f32 %v1575, 0.0
  %v1625 = vmax.f32 %v1576, 0.0
  %v1626 = vmax.f32 %v1577, 0.0
  %v1627 = vmax.f32 %v1578, 0.0
  %v1628 = vmax.f32 %v1579, 0.0
  %v1629 = vmax.f32 %v1580, 0.0
  %v1630 = vmax.f32 %v1581, 0.0
  %v1631 = vmax.f32 %v1582, 0.0
  %v1632 = vmax.f32 %v1583, 0.0
  %v1633 = vmax.f32 %v1584, 0.0
  %v1634 = vmax.f32 %v1585, 0.0
  %v1635 = vmax.f32 %v1586, 0.0
  %v1636 = vmax.f32 %v1587, 0.0
  %v1637 = vmax.f32 %v1588, 0.0
  %v1638 = vmax.f32 %v1589, 0.0
  %v1639 = vmax.f32 %v1590, 0.0
  %v1640 = vmax.f32 %v1591, 0.0
  %v1641 = vmax.f32 %v1592, 0.0
  %v1642 = vmax.f32 %v1593, 0.0
  %v1643 = vmax.f32 %v1594, 0.0
  %v1644 = vmax.f32 %v1595, 0.0
  %v1645 = vmax.f32 %v1596, 0.0
  %v1646 = vmax.f32 %v1597, 0.0
  %v1647 = vmax.f32 %v1598, 0.0
  %v1648 = vmax.f32 %v1599, 0.0
  %v1649 = vmax.f32 %v1600, 0.0
  %v1650 = vmax.f32 %v1601, 0.0
  %v1651 = vmax.f32 %v1602, 0.0
  %v1652 = vmax.f32 %v1603, 0.0
  %v1653 = vmax.f32 %v1604, 0.0
  %v1654 = vmax.f32 %v1605, 0.0
  %v1655 = vmax.f32 %v1606, 0.0
  %v1656 = vmax.f32 %v1607, 0.0
  %v1657 = vmax.f32 %v1608, 0.0
  %v1658 = vmax.f32 %v1609, 0.0
  %v1659 = vmax.f32 %v1610, 0.0
  %v1660 = vmax.f32 %v1611, 0.0
  %vm1661 = vcmask 130048
  %1662 = vst.msk [vmem:[%s3] sm:$0xff] %vm1661, %v1612
  %1663 = vst.msk [vmem:[%s3 + $0x8] sm:$0xff] %vm1661, %v1613
  %1664 = vst.msk [vmem:[%s3 + $0x10] sm:$0xff] %vm1661, %v1614
  %1665 = vst.msk [vmem:[%s3 + $0x18] sm:$0xff] %vm1661, %v1615
  %1666 = vst.msk [vmem:[%s3 + $0x20] sm:$0xff] %vm1661, %v1616
  %1667 = vst.msk [vmem:[%s3 + $0x28] sm:$0xff] %vm1661, %v1617
  %1668 = vst.msk [vmem:[%s3 + $0x30] sm:$0xff] %vm1661, %v1618
  %1669 = vst.msk [vmem:[%s3 + $0x38] sm:$0xff] %vm1661, %v1619
  %1670 = vst.msk [vmem:[%s3 + $0x40] sm:$0xff] %vm1661, %v1620
  %1671 = vst.msk [vmem:[%s3 + $0x48] sm:$0xff] %vm1661, %v1621
  %1672 = vst.msk [vmem:[%s3 + $0x50] sm:$0xff] %vm1661, %v1622
  %1673 = vst.msk [vmem:[%s3 + $0x58] sm:$0xff] %vm1661, %v1623
  %1674 = vst.msk [vmem:[%s3 + $0x60] sm:$0xff] %vm1661, %v1624
  %1675 = vst.msk [vmem:[%s3 + $0x68] sm:$0xff] %vm1661, %v1625
  %1676 = vst.msk [vmem:[%s3 + $0x70] sm:$0xff] %vm1661, %v1626
  %1677 = vst.msk [vmem:[%s3 + $0x78] sm:$0xff] %vm1661, %v1627
  %1678 = vst.msk [vmem:[%s3 + $0x80] sm:$0xff] %vm1661, %v1628
  %1679 = vst.msk [vmem:[%s3 + $0x88] sm:$0xff] %vm1661, %v1629
  %1680 = vst.msk [vmem:[%s3 + $0x90] sm:$0xff] %vm1661, %v1630
  %1681 = vst.msk [vmem:[%s3 + $0x98] sm:$0xff] %vm1661, %v1631
  %1682 = vst.msk [vmem:[%s3 + $0xa0] sm:$0xff] %vm1661, %v1632
  %1683 = vst.msk [vmem:[%s3 + $0xa8] sm:$0xff] %vm1661, %v1633
  %1684 = vst.msk [vmem:[%s3 + $0xb0] sm:$0xff] %vm1661, %v1634
  %1685 = vst.msk [vmem:[%s3 + $0xb8] sm:$0xff] %vm1661, %v1635
  %1686 = vst.msk [vmem:[%s3 + $0xc0] sm:$0xff] %vm1661, %v1636
  %1687 = vst.msk [vmem:[%s3 + $0xc8] sm:$0xff] %vm1661, %v1637
  %1688 = vst.msk [vmem:[%s3 + $0xd0] sm:$0xff] %vm1661, %v1638
  %1689 = vst.msk [vmem:[%s3 + $0xd8] sm:$0xff] %vm1661, %v1639
  %1690 = vst.msk [vmem:[%s3 + $0xe0] sm:$0xff] %vm1661, %v1640
  %1691 = vst.msk [vmem:[%s3 + $0xe8] sm:$0xff] %vm1661, %v1641
  %1692 = vst.msk [vmem:[%s3 + $0xf0] sm:$0xff] %vm1661, %v1642
  %1693 = vst.msk [vmem:[%s3 + $0xf8] sm:$0xff] %vm1661, %v1643
  %1694 = vst.msk [vmem:[%s3 + $0x100] sm:$0xff] %vm1661, %v1644
  %1695 = vst.msk [vmem:[%s3 + $0x108] sm:$0xff] %vm1661, %v1645
  %1696 = vst.msk [vmem:[%s3 + $0x110] sm:$0xff] %vm1661, %v1646
  %1697 = vst.msk [vmem:[%s3 + $0x118] sm:$0xff] %vm1661, %v1647
  %1698 = vst.msk [vmem:[%s3 + $0x120] sm:$0xff] %vm1661, %v1648
  %1699 = vst.msk [vmem:[%s3 + $0x128] sm:$0xff] %vm1661, %v1649
  %1700 = vst.msk [vmem:[%s3 + $0x130] sm:$0xff] %vm1661, %v1650
  %1701 = vst.msk [vmem:[%s3 + $0x138] sm:$0xff] %vm1661, %v1651
  %1702 = vst.msk [vmem:[%s3 + $0x140] sm:$0xff] %vm1661, %v1652
  %1703 = vst.msk [vmem:[%s3 + $0x148] sm:$0xff] %vm1661, %v1653
  %1704 = vst.msk [vmem:[%s3 + $0x150] sm:$0xff] %vm1661, %v1654
  %1705 = vst.msk [vmem:[%s3 + $0x158] sm:$0xff] %vm1661, %v1655
  %1706 = vst.msk [vmem:[%s3 + $0x160] sm:$0xff] %vm1661, %v1656
  %1707 = vst.msk [vmem:[%s3 + $0x168] sm:$0xff] %vm1661, %v1657
  %1708 = vst.msk [vmem:[%s3 + $0x170] sm:$0xff] %vm1661, %v1658
  %1709 = vst.msk [vmem:[%s3 + $0x178] sm:$0xff] %vm1661, %v1659
  %1710 = vst.msk [vmem:[%s3 + $0x180] sm:$0xff] %vm1661, %v1660
  // Predicated region
  $region14: #{basic_cnn_forward.2} parent=0 // pred_check
    _
  $region15: #{basic_cnn_forward.2} parent=0 // pred_check_branch
    %1712 = sbr.rel (0) target = $region17
  $region16: #{basic_cnn_forward.2} parent=0 // pred_region
    _
  $region17: #{basic_cnn_forward.2} parent=0 // pred_fallthru
    _
  // Predicated region
  $region18: #{basic_cnn_forward.2} parent=0 // pred_check
    _
  $region19: #{basic_cnn_forward.2} parent=0 // pred_check_branch
    %1714 = sbr.rel (0) target = $region21
  $region20: #{basic_cnn_forward.2} parent=0 // pred_region
    _
  $region21: #{basic_cnn_forward.2} parent=0 // pred_fallthru
    _

// kernel: basic_cnn_forward.3
$region0: #{basic_cnn_forward.3}
  #allocation0 [shape = 'u32[]', space=smem, size = 0x4, offset = 0x4, fixed_abs, tag = 'smem constant byte address 0x4 - core index']
  #allocation1 [shape = 'u32[72,128]{1,0:T(1,128)}', space=vmem, size = 0x9000, scoped, tag = 'internal scratch']
  #allocation2 [shape = 'f32[104,32]{1,0:T(8,128)}', space=vmem, size = 0xd000, scoped, tag = 'scratch operand']
  #allocation3 [shape = 'f32[2,1568]{1,0:T(2,128)}', space=vmem, size = 0x3400, scoped, tag = 'scratch operand']
  %s0 = inlined_call_operand.vmem [shape: f32[416,144], index: 0, kind: input, shape index: {}]
  %s1 = inlined_call_operand.vmem [shape: f32[144,32], index: 1, kind: input, shape index: {}]
  %s2 = inlined_call_operand.vmem [shape: f32[1,32], index: 2, kind: input, shape index: {}]
  %s3 = inlined_call_operand.vmem [shape: f32[1568,128], index: 3, kind: input, shape index: {}]
  %s4 = inlined_call_operand.vmem [shape: f32[1,128], index: 4, kind: input, shape index: {}]
  %s5 = inlined_call_operand.vmem [shape: f32[128,10], index: 5, kind: input, shape index: {}]
  %s6 = inlined_call_operand.vmem [shape: f32[1,10], index: 6, kind: input, shape index: {}]
  %s7 = inlined_call_operand.hbm [shape: f32[2,10], index: 7, kind: output, shape index: {}]
  %s8 = sld [smem:[#allocation0]]
  $region38: #{basic_cnn_forward.3} parent=0
    _
  %s10 = ssub.s32 1, %s8
  %s11 = scalar_select 0, %s10, %s8
  $region1: #{basic_cnn_forward.3} parent=0
    #allocation4 [shape = 'u8[1024]{0}', space=vmem, size = 0x400, scoped, tag = 'output window, operand 0, single buffered']
    #allocation5 [shape = 's32[1]{0}', space=sflag, size = 0x4, scoped, tag = 'scoped memory for basic_cnn_forward.3']
    %12 = vsyncpa [#allocation5], 0
    // Predicated region
    $region2: #{basic_cnn_forward.3} parent=1 // pred_check
      _
    $region3: #{basic_cnn_forward.3} parent=1 // pred_check_branch
      %14 = sbr.rel (0) target = $region5
    $region4: #{basic_cnn_forward.3} parent=1 // pred_region
      _
    $region5: #{basic_cnn_forward.3} parent=1 // pred_fallthru
      _
    // Predicated region
    $region6: #{basic_cnn_forward.3} parent=1 // pred_check
      _
    $region7: #{basic_cnn_forward.3} parent=1 // pred_check_branch
      %16 = sbr.rel (0) target = $region9
    $region8: #{basic_cnn_forward.3} parent=1 // pred_region
      _
    $region9: #{basic_cnn_forward.3} parent=1 // pred_fallthru
      _
    // Predicated region
    $region10: #{basic_cnn_forward.3} parent=1 // pred_check
      _
    $region11: #{basic_cnn_forward.3} parent=1 // pred_check_branch
      %18 = sbr.rel (0) target = $region13
    $region12: #{basic_cnn_forward.3} parent=1 // pred_region
      _
    $region13: #{basic_cnn_forward.3} parent=1 // pred_fallthru
      _
    // Predicated region
    $region14: #{basic_cnn_forward.3} parent=1 // pred_check
      _
    $region15: #{basic_cnn_forward.3} parent=1 // pred_check_branch
      %20 = sbr.rel (0) target = $region17
    $region16: #{basic_cnn_forward.3} parent=1 // pred_region
      _
    $region17: #{basic_cnn_forward.3} parent=1 // pred_fallthru
      _
    // Predicated region
    $region18: #{basic_cnn_forward.3} parent=1 // pred_check
      _
    $region19: #{basic_cnn_forward.3} parent=1 // pred_check_branch
      %22 = sbr.rel (0) target = $region21
    $region20: #{basic_cnn_forward.3} parent=1 // pred_region
      _
    $region21: #{basic_cnn_forward.3} parent=1 // pred_fallthru
      _
    // Predicated region
    $region22: #{basic_cnn_forward.3} parent=1 // pred_check
      _
    $region23: #{basic_cnn_forward.3} parent=1 // pred_check_branch
      %24 = sbr.rel (0) target = $region25
    $region24: #{basic_cnn_forward.3} parent=1 // pred_region
      _
    $region25: #{basic_cnn_forward.3} parent=1 // pred_fallthru
      _
    // Predicated region
    $region26: #{basic_cnn_forward.3} parent=1 // pred_check
      _
    $region27: #{basic_cnn_forward.3} parent=1 // pred_check_branch
      %26 = sbr.rel (0) target = $region29
    $region28: #{basic_cnn_forward.3} parent=1 // pred_region
      _
    $region29: #{basic_cnn_forward.3} parent=1 // pred_fallthru
      _
    %v27 = vld [vmem:[%s0] sm:$0xff]
    %v28 = vld [vmem:[%s0 + $0x8] sm:$0xff]
    %v29 = vld [vmem:[%s0 + $0x10] sm:$0xff]
    %v30 = vld [vmem:[%s0 + $0x18] sm:$0xff]
    %v31 = vld [vmem:[%s0 + $0x20] sm:$0xff]
    %v32 = vld [vmem:[%s0 + $0x28] sm:$0xff]
    %v33 = vld [vmem:[%s0 + $0x30] sm:$0xff]
    %v34 = vld [vmem:[%s0 + $0x38] sm:$0xff]
    %v35 = vld [vmem:[%s0 + $0x40] sm:$0xff]
    %v36 = vld [vmem:[%s0 + $0x48] sm:$0xff]
    %v37 = vld [vmem:[%s0 + $0x50] sm:$0xff]
    %v38 = vld [vmem:[%s0 + $0x58] sm:$0xff]
    %v39 = vld [vmem:[%s0 + $0x60] sm:$0xff]
    %v40 = vld [vmem:[%s0 + $0x68] sm:$0xff]
    %v41 = vld [vmem:[%s0 + $0x70] sm:$0xff]
    %v42 = vld [vmem:[%s0 + $0x78] sm:$0xff]
    %v43 = vld [vmem:[%s0 + $0x80] sm:$0xff]
    %v44 = vld [vmem:[%s0 + $0x88] sm:$0xff]
    %v45 = vld [vmem:[%s0 + $0x90] sm:$0xff]
    %v46 = vld [vmem:[%s0 + $0x98] sm:$0xff]
    %v47 = vld [vmem:[%s0 + $0xa0] sm:$0xff]
    %v48 = vld [vmem:[%s0 + $0xa8] sm:$0xff]
    %v49 = vld [vmem:[%s0 + $0xb0] sm:$0xff]
    %v50 = vld [vmem:[%s0 + $0xb8] sm:$0xff]
    %v51 = vld [vmem:[%s0 + $0xc0] sm:$0xff]
    %v52 = vld [vmem:[%s0 + $0xc8] sm:$0xff]
    %v53 = vld [vmem:[%s0 + $0xd0] sm:$0xff]
    %v54 = vld [vmem:[%s0 + $0xd8] sm:$0xff]
    %v55 = vld [vmem:[%s0 + $0xe0] sm:$0xff]
    %v56 = vld [vmem:[%s0 + $0xe8] sm:$0xff]
    %v57 = vld [vmem:[%s0 + $0xf0] sm:$0xff]
    %v58 = vld [vmem:[%s0 + $0xf8] sm:$0xff]
    %v59 = vld [vmem:[%s0 + $0x100] sm:$0xff]
    %v60 = vld [vmem:[%s0 + $0x108] sm:$0xff]
    %v61 = vld [vmem:[%s0 + $0x110] sm:$0xff]
    %v62 = vld [vmem:[%s0 + $0x118] sm:$0xff]
    %v63 = vld [vmem:[%s0 + $0x120] sm:$0xff]
    %v64 = vld [vmem:[%s0 + $0x128] sm:$0xff]
    %v65 = vld [vmem:[%s0 + $0x130] sm:$0xff]
    %v66 = vld [vmem:[%s0 + $0x138] sm:$0xff]
    %v67 = vld [vmem:[%s0 + $0x140] sm:$0xff]
    %v68 = vld [vmem:[%s0 + $0x148] sm:$0xff]
    %v69 = vld [vmem:[%s0 + $0x150] sm:$0xff]
    %v70 = vld [vmem:[%s0 + $0x158] sm:$0xff]
    %v71 = vld [vmem:[%s0 + $0x160] sm:$0xff]
    %v72 = vld [vmem:[%s0 + $0x168] sm:$0xff]
    %v73 = vld [vmem:[%s0 + $0x170] sm:$0xff]
    %v74 = vld [vmem:[%s0 + $0x178] sm:$0xff]
    %v75 = vld [vmem:[%s0 + $0x180] sm:$0xff]
    %v76 = vld [vmem:[%s0 + $0x188] sm:$0xff]
    %v77 = vld [vmem:[%s0 + $0x190] sm:$0xff]
    %v78 = vld [vmem:[%s0 + $0x198] sm:$0xff]
    %v79 = vld [vmem:[%s0 + $0x1a0] sm:$0xff]
    %v80 = vld [vmem:[%s0 + $0x1a8] sm:$0xff]
    %v81 = vld [vmem:[%s0 + $0x1b0] sm:$0xff]
    %v82 = vld [vmem:[%s0 + $0x1b8] sm:$0xff]
    %v83 = vld [vmem:[%s0 + $0x1c0] sm:$0xff]
    %v84 = vld [vmem:[%s0 + $0x1c8] sm:$0xff]
    %v85 = vld [vmem:[%s0 + $0x1d0] sm:$0xff]
    %v86 = vld [vmem:[%s0 + $0x1d8] sm:$0xff]
    %v87 = vld [vmem:[%s0 + $0x1e0] sm:$0xff]
    %v88 = vld [vmem:[%s0 + $0x1e8] sm:$0xff]
    %v89 = vld [vmem:[%s0 + $0x1f0] sm:$0xff]
    %v90 = vld [vmem:[%s0 + $0x1f8] sm:$0xff]
    %v91 = vld [vmem:[%s0 + $0x200] sm:$0xff]
    %v92 = vld [vmem:[%s0 + $0x208] sm:$0xff]
    %v93 = vld [vmem:[%s0 + $0x210] sm:$0xff]
    %v94 = vld [vmem:[%s0 + $0x218] sm:$0xff]
    %v95 = vld [vmem:[%s0 + $0x220] sm:$0xff]
    %v96 = vld [vmem:[%s0 + $0x228] sm:$0xff]
    %v97 = vld [vmem:[%s0 + $0x230] sm:$0xff]
    %v98 = vld [vmem:[%s0 + $0x238] sm:$0xff]
    %v99 = vld [vmem:[%s0 + $0x240] sm:$0xff]
    %v100 = vld [vmem:[%s0 + $0x248] sm:$0xff]
    %v101 = vld [vmem:[%s0 + $0x250] sm:$0xff]
    %v102 = vld [vmem:[%s0 + $0x258] sm:$0xff]
    %v103 = vld [vmem:[%s0 + $0x260] sm:$0xff]
    %v104 = vld [vmem:[%s0 + $0x268] sm:$0xff]
    %v105 = vld [vmem:[%s0 + $0x270] sm:$0xff]
    %v106 = vld [vmem:[%s0 + $0x278] sm:$0xff]
    %v107 = vld [vmem:[%s0 + $0x280] sm:$0xff]
    %v108 = vld [vmem:[%s0 + $0x288] sm:$0xff]
    %v109 = vld [vmem:[%s0 + $0x290] sm:$0xff]
    %v110 = vld [vmem:[%s0 + $0x298] sm:$0xff]
    %v111 = vld [vmem:[%s0 + $0x2a0] sm:$0xff]
    %v112 = vld [vmem:[%s0 + $0x2a8] sm:$0xff]
    %v113 = vld [vmem:[%s0 + $0x2b0] sm:$0xff]
    %v114 = vld [vmem:[%s0 + $0x2b8] sm:$0xff]
    %v115 = vld [vmem:[%s0 + $0x2c0] sm:$0xff]
    %v116 = vld [vmem:[%s0 + $0x2c8] sm:$0xff]
    %v117 = vld [vmem:[%s0 + $0x2d0] sm:$0xff]
    %v118 = vld [vmem:[%s0 + $0x2d8] sm:$0xff]
    %v119 = vld [vmem:[%s0 + $0x2e0] sm:$0xff]
    %v120 = vld [vmem:[%s0 + $0x2e8] sm:$0xff]
    %v121 = vld [vmem:[%s0 + $0x2f0] sm:$0xff]
    %v122 = vld [vmem:[%s0 + $0x2f8] sm:$0xff]
    %v123 = vld [vmem:[%s0 + $0x300] sm:$0xff]
    %v124 = vld [vmem:[%s0 + $0x308] sm:$0xff]
    %v125 = vld [vmem:[%s0 + $0x310] sm:$0xff]
    %v126 = vld [vmem:[%s0 + $0x318] sm:$0xff]
    %v127 = vld [vmem:[%s0 + $0x320] sm:$0xff]
    %v128 = vld [vmem:[%s0 + $0x328] sm:$0xff]
    %v129 = vld [vmem:[%s0 + $0x330] sm:$0xff]
    %v130 = vld [vmem:[%s0 + $0x338] sm:$0xff]
    %v131 = vld [vmem:[%s1] sm:$0xff]
    %v132 = vld [vmem:[%s1 + $0x8] sm:$0xff]
    %v133 = vld [vmem:[%s1 + $0x10] sm:$0xff]
    %v134 = vld [vmem:[%s1 + $0x18] sm:$0xff]
    %v135 = vld [vmem:[%s1 + $0x20] sm:$0xff]
    %v136 = vld [vmem:[%s1 + $0x28] sm:$0xff]
    %v137 = vld [vmem:[%s1 + $0x30] sm:$0xff]
    %v138 = vld [vmem:[%s1 + $0x38] sm:$0xff]
    %v139 = vld [vmem:[%s1 + $0x40] sm:$0xff]
    %v140 = vld [vmem:[%s1 + $0x48] sm:$0xff]
    %v141 = vld [vmem:[%s1 + $0x50] sm:$0xff]
    %v142 = vld [vmem:[%s1 + $0x58] sm:$0xff]
    %v143 = vld [vmem:[%s1 + $0x60] sm:$0xff]
    %v144 = vld [vmem:[%s1 + $0x68] sm:$0xff]
    %v145 = vld [vmem:[%s1 + $0x70] sm:$0xff]
    %v146 = vld [vmem:[%s1 + $0x78] sm:$0xff]
    %v147 = vld [vmem:[%s1 + $0x80] sm:$0xff]
    %v148 = vld [vmem:[%s1 + $0x88] sm:$0xff]
    %vm149 = vcmask 130048
    %v151 = vsel %vm149, %v28, 0
    %v154 = vsel %vm149, %v30, 0
    %v157 = vsel %vm149, %v32, 0
    %v160 = vsel %vm149, %v34, 0
    %v163 = vsel %vm149, %v36, 0
    %v166 = vsel %vm149, %v38, 0
    %v169 = vsel %vm149, %v40, 0
    %v172 = vsel %vm149, %v42, 0
    %v175 = vsel %vm149, %v44, 0
    %v178 = vsel %vm149, %v46, 0
    %v181 = vsel %vm149, %v48, 0
    %v184 = vsel %vm149, %v50, 0
    %v187 = vsel %vm149, %v52, 0
    %v190 = vsel %vm149, %v54, 0
    %v193 = vsel %vm149, %v56, 0
    %v196 = vsel %vm149, %v58, 0
    %v199 = vsel %vm149, %v60, 0
    %v202 = vsel %vm149, %v62, 0
    %v205 = vsel %vm149, %v64, 0
    %v208 = vsel %vm149, %v66, 0
    %v211 = vsel %vm149, %v68, 0
    %v214 = vsel %vm149, %v70, 0
    %v217 = vsel %vm149, %v72, 0
    %v220 = vsel %vm149, %v74, 0
    %v223 = vsel %vm149, %v76, 0
    %v226 = vsel %vm149, %v78, 0
    %v229 = vsel %vm149, %v80, 0
    %v232 = vsel %vm149, %v82, 0
    %v235 = vsel %vm149, %v84, 0
    %v238 = vsel %vm149, %v86, 0
    %v241 = vsel %vm149, %v88, 0
    %v244 = vsel %vm149, %v90, 0
    %v247 = vsel %vm149, %v92, 0
    %v250 = vsel %vm149, %v94, 0
    %v253 = vsel %vm149, %v96, 0
    %v256 = vsel %vm149, %v98, 0
    %v259 = vsel %vm149, %v100, 0
    %v262 = vsel %vm149, %v102, 0
    %v265 = vsel %vm149, %v104, 0
    %v268 = vsel %vm149, %v106, 0
    %v271 = vsel %vm149, %v108, 0
    %v274 = vsel %vm149, %v110, 0
    %v277 = vsel %vm149, %v112, 0
    %v280 = vsel %vm149, %v114, 0
    %v283 = vsel %vm149, %v116, 0
    %v286 = vsel %vm149, %v118, 0
    %v289 = vsel %vm149, %v120, 0
    %v292 = vsel %vm149, %v122, 0
    %v295 = vsel %vm149, %v124, 0
    %v298 = vsel %vm149, %v126, 0
    %v301 = vsel %vm149, %v128, 0
    %v304 = vsel %vm149, %v130, 0
    %306 = vmatpush.msra.mxu0 %v146
    %307 = vmatpush.msra.mxu0 %v145
    %308 = vmatpush.msra.mxu0 %v144
    %309 = vmatpush.msra.mxu0 %v143
    %310 = vmatpush.msra.mxu0 %v142
    %311 = vmatpush.msra.mxu0 %v141
    %312 = vmatpush.msra.mxu0 %v140
    %313 = vmatpush.msra.mxu0 %v139
    %314 = vmatpush.msra.mxu0 %v138
    %315 = vmatpush.msra.mxu0 %v137
    %316 = vmatpush.msra.mxu0 %v136
    %317 = vmatpush.msra.mxu0 %v135
    %318 = vmatpush.msra.mxu0 %v134
    %319 = vmatpush.msra.mxu0 %v133
    %320 = vmatpush.msra.mxu0 %v132
    %321 = vmatpush.msra.mxu0 %v131
    %322 = vmatmul.f32.gmra.mxu0 %v27
    %v323 = vpop.f32.mrf.mxu0
    %v324 = vadd.f32 0.0, %v323
    %325 = vmatmul.f32.gmra.mxu0 %v29
    %v326 = vpop.f32.mrf.mxu0
    %v327 = vadd.f32 0.0, %v326
    %328 = vmatmul.f32.gmra.mxu0 %v31
    %v329 = vpop.f32.mrf.mxu0
    %v330 = vadd.f32 0.0, %v329
    %331 = vmatmul.f32.gmra.mxu0 %v33
    %v332 = vpop.f32.mrf.mxu0
    %v333 = vadd.f32 0.0, %v332
    %334 = vmatmul.f32.gmra.mxu0 %v35
    %v335 = vpop.f32.mrf.mxu0
    %v336 = vadd.f32 0.0, %v335
    %337 = vmatmul.f32.gmra.mxu0 %v37
    %v338 = vpop.f32.mrf.mxu0
    %v339 = vadd.f32 0.0, %v338
    %340 = vmatmul.f32.gmra.mxu0 %v39
    %v341 = vpop.f32.mrf.mxu0
    %v342 = vadd.f32 0.0, %v341
    %343 = vmatmul.f32.gmra.mxu0 %v41
    %v344 = vpop.f32.mrf.mxu0
    %v345 = vadd.f32 0.0, %v344
    %346 = vmatmul.f32.gmra.mxu0 %v43
    %v347 = vpop.f32.mrf.mxu0
    %v348 = vadd.f32 0.0, %v347
    %349 = vmatmul.f32.gmra.mxu0 %v45
    %v350 = vpop.f32.mrf.mxu0
    %v351 = vadd.f32 0.0, %v350
    %352 = vmatmul.f32.gmra.mxu0 %v47
    %v353 = vpop.f32.mrf.mxu0
    %v354 = vadd.f32 0.0, %v353
    %355 = vmatmul.f32.gmra.mxu0 %v49
    %v356 = vpop.f32.mrf.mxu0
    %v357 = vadd.f32 0.0, %v356
    %358 = vmatmul.f32.gmra.mxu0 %v51
    %v359 = vpop.f32.mrf.mxu0
    %v360 = vadd.f32 0.0, %v359
    %361 = vmatmul.f32.gmra.mxu0 %v53
    %v362 = vpop.f32.mrf.mxu0
    %v363 = vadd.f32 0.0, %v362
    %364 = vmatmul.f32.gmra.mxu0 %v55
    %v365 = vpop.f32.mrf.mxu0
    %v366 = vadd.f32 0.0, %v365
    %367 = vmatmul.f32.gmra.mxu0 %v57
    %v368 = vpop.f32.mrf.mxu0
    %v369 = vadd.f32 0.0, %v368
    %370 = vmatmul.f32.gmra.mxu0 %v59
    %v371 = vpop.f32.mrf.mxu0
    %v372 = vadd.f32 0.0, %v371
    %373 = vmatmul.f32.gmra.mxu0 %v61
    %v374 = vpop.f32.mrf.mxu0
    %v375 = vadd.f32 0.0, %v374
    %376 = vmatmul.f32.gmra.mxu0 %v63
    %v377 = vpop.f32.mrf.mxu0
    %v378 = vadd.f32 0.0, %v377
    %379 = vmatmul.f32.gmra.mxu0 %v65
    %v380 = vpop.f32.mrf.mxu0
    %v381 = vadd.f32 0.0, %v380
    %382 = vmatmul.f32.gmra.mxu0 %v67
    %v383 = vpop.f32.mrf.mxu0
    %v384 = vadd.f32 0.0, %v383
    %385 = vmatmul.f32.gmra.mxu0 %v69
    %v386 = vpop.f32.mrf.mxu0
    %v387 = vadd.f32 0.0, %v386
    %388 = vmatmul.f32.gmra.mxu0 %v71
    %v389 = vpop.f32.mrf.mxu0
    %v390 = vadd.f32 0.0, %v389
    %391 = vmatmul.f32.gmra.mxu0 %v73
    %v392 = vpop.f32.mrf.mxu0
    %v393 = vadd.f32 0.0, %v392
    %394 = vmatmul.f32.gmra.mxu0 %v75
    %v395 = vpop.f32.mrf.mxu0
    %v396 = vadd.f32 0.0, %v395
    %397 = vmatmul.f32.gmra.mxu0 %v77
    %v398 = vpop.f32.mrf.mxu0
    %v399 = vadd.f32 0.0, %v398
    %400 = vmatmul.f32.gmra.mxu0 %v79
    %v401 = vpop.f32.mrf.mxu0
    %v402 = vadd.f32 0.0, %v401
    %403 = vmatmul.f32.gmra.mxu0 %v81
    %v404 = vpop.f32.mrf.mxu0
    %v405 = vadd.f32 0.0, %v404
    %406 = vmatmul.f32.gmra.mxu0 %v83
    %v407 = vpop.f32.mrf.mxu0
    %v408 = vadd.f32 0.0, %v407
    %409 = vmatmul.f32.gmra.mxu0 %v85
    %v410 = vpop.f32.mrf.mxu0
    %v411 = vadd.f32 0.0, %v410
    %412 = vmatmul.f32.gmra.mxu0 %v87
    %v413 = vpop.f32.mrf.mxu0
    %v414 = vadd.f32 0.0, %v413
    %415 = vmatmul.f32.gmra.mxu0 %v89
    %v416 = vpop.f32.mrf.mxu0
    %v417 = vadd.f32 0.0, %v416
    %418 = vmatmul.f32.gmra.mxu0 %v91
    %v419 = vpop.f32.mrf.mxu0
    %v420 = vadd.f32 0.0, %v419
    %421 = vmatmul.f32.gmra.mxu0 %v93
    %v422 = vpop.f32.mrf.mxu0
    %v423 = vadd.f32 0.0, %v422
    %424 = vmatmul.f32.gmra.mxu0 %v95
    %v425 = vpop.f32.mrf.mxu0
    %v426 = vadd.f32 0.0, %v425
    %427 = vmatmul.f32.gmra.mxu0 %v97
    %v428 = vpop.f32.mrf.mxu0
    %v429 = vadd.f32 0.0, %v428
    %430 = vmatmul.f32.gmra.mxu0 %v99
    %v431 = vpop.f32.mrf.mxu0
    %v432 = vadd.f32 0.0, %v431
    %433 = vmatmul.f32.gmra.mxu0 %v101
    %v434 = vpop.f32.mrf.mxu0
    %v435 = vadd.f32 0.0, %v434
    %436 = vmatmul.f32.gmra.mxu0 %v103
    %v437 = vpop.f32.mrf.mxu0
    %v438 = vadd.f32 0.0, %v437
    %439 = vmatmul.f32.gmra.mxu0 %v105
    %v440 = vpop.f32.mrf.mxu0
    %v441 = vadd.f32 0.0, %v440
    %442 = vmatmul.f32.gmra.mxu0 %v107
    %v443 = vpop.f32.mrf.mxu0
    %v444 = vadd.f32 0.0, %v443
    %445 = vmatmul.f32.gmra.mxu0 %v109
    %v446 = vpop.f32.mrf.mxu0
    %v447 = vadd.f32 0.0, %v446
    %448 = vmatmul.f32.gmra.mxu0 %v111
    %v449 = vpop.f32.mrf.mxu0
    %v450 = vadd.f32 0.0, %v449
    %451 = vmatmul.f32.gmra.mxu0 %v113
    %v452 = vpop.f32.mrf.mxu0
    %v453 = vadd.f32 0.0, %v452
    %454 = vmatmul.f32.gmra.mxu0 %v115
    %v455 = vpop.f32.mrf.mxu0
    %v456 = vadd.f32 0.0, %v455
    %457 = vmatmul.f32.gmra.mxu0 %v117
    %v458 = vpop.f32.mrf.mxu0
    %v459 = vadd.f32 0.0, %v458
    %460 = vmatmul.f32.gmra.mxu0 %v119
    %v461 = vpop.f32.mrf.mxu0
    %v462 = vadd.f32 0.0, %v461
    %463 = vmatmul.f32.gmra.mxu0 %v121
    %v464 = vpop.f32.mrf.mxu0
    %v465 = vadd.f32 0.0, %v464
    %466 = vmatmul.f32.gmra.mxu0 %v123
    %v467 = vpop.f32.mrf.mxu0
    %v468 = vadd.f32 0.0, %v467
    %469 = vmatmul.f32.gmra.mxu0 %v125
    %v470 = vpop.f32.mrf.mxu0
    %v471 = vadd.f32 0.0, %v470
    %472 = vmatmul.f32.gmra.mxu0 %v127
    %v473 = vpop.f32.mrf.mxu0
    %v474 = vadd.f32 0.0, %v473
    %475 = vmatmul.f32.gmra.mxu0 %v129
    %v476 = vpop.f32.mrf.mxu0
    %v477 = vadd.f32 0.0, %v476
    %478 = vdwg.mxu0
    %479 = vmatpush.msra.mxu0 0.0
    %480 = vmatpush.msra.mxu0 0.0
    %481 = vmatpush.msra.mxu0 0.0
    %482 = vmatpush.msra.mxu0 0.0
    %483 = vmatpush.msra.mxu0 0.0
    %484 = vmatpush.msra.mxu0 0.0
    %485 = vmatpush.msra.mxu0 0.0
    %486 = vmatpush.msra.mxu0 0.0
    %487 = vmatpush.msra.mxu0 0.0
    %488 = vmatpush.msra.mxu0 0.0
    %489 = vmatpush.msra.mxu0 0.0
    %490 = vmatpush.msra.mxu0 0.0
    %491 = vmatpush.msra.mxu0 0.0
    %492 = vmatpush.msra.mxu0 0.0
    %493 = vmatpush.msra.mxu0 %v148
    %494 = vmatpush.msra.mxu0 %v147
    %495 = vmatmul.f32.gmra.mxu0 %v151
    %v496 = vpop.f32.mrf.mxu0
    %v497 = vadd.f32 %v324, %v496
    %498 = vmatmul.f32.gmra.mxu0 %v154
    %v499 = vpop.f32.mrf.mxu0
    %v500 = vadd.f32 %v327, %v499
    %501 = vmatmul.f32.gmra.mxu0 %v157
    %v502 = vpop.f32.mrf.mxu0
    %v503 = vadd.f32 %v330, %v502
    %504 = vmatmul.f32.gmra.mxu0 %v160
    %v505 = vpop.f32.mrf.mxu0
    %v506 = vadd.f32 %v333, %v505
    %507 = vmatmul.f32.gmra.mxu0 %v163
    %v508 = vpop.f32.mrf.mxu0
    %v509 = vadd.f32 %v336, %v508
    %510 = vmatmul.f32.gmra.mxu0 %v166
    %v511 = vpop.f32.mrf.mxu0
    %v512 = vadd.f32 %v339, %v511
    %513 = vmatmul.f32.gmra.mxu0 %v169
    %v514 = vpop.f32.mrf.mxu0
    %v515 = vadd.f32 %v342, %v514
    %516 = vmatmul.f32.gmra.mxu0 %v172
    %v517 = vpop.f32.mrf.mxu0
    %v518 = vadd.f32 %v345, %v517
    %519 = vmatmul.f32.gmra.mxu0 %v175
    %v520 = vpop.f32.mrf.mxu0
    %v521 = vadd.f32 %v348, %v520
    %522 = vmatmul.f32.gmra.mxu0 %v178
    %v523 = vpop.f32.mrf.mxu0
    %v524 = vadd.f32 %v351, %v523
    %525 = vmatmul.f32.gmra.mxu0 %v181
    %v526 = vpop.f32.mrf.mxu0
    %v527 = vadd.f32 %v354, %v526
    %528 = vmatmul.f32.gmra.mxu0 %v184
    %v529 = vpop.f32.mrf.mxu0
    %v530 = vadd.f32 %v357, %v529
    %531 = vmatmul.f32.gmra.mxu0 %v187
    %v532 = vpop.f32.mrf.mxu0
    %v533 = vadd.f32 %v360, %v532
    %534 = vmatmul.f32.gmra.mxu0 %v190
    %v535 = vpop.f32.mrf.mxu0
    %v536 = vadd.f32 %v363, %v535
    %537 = vmatmul.f32.gmra.mxu0 %v193
    %v538 = vpop.f32.mrf.mxu0
    %v539 = vadd.f32 %v366, %v538
    %540 = vmatmul.f32.gmra.mxu0 %v196
    %v541 = vpop.f32.mrf.mxu0
    %v542 = vadd.f32 %v369, %v541
    %543 = vmatmul.f32.gmra.mxu0 %v199
    %v544 = vpop.f32.mrf.mxu0
    %v545 = vadd.f32 %v372, %v544
    %546 = vmatmul.f32.gmra.mxu0 %v202
    %v547 = vpop.f32.mrf.mxu0
    %v548 = vadd.f32 %v375, %v547
    %549 = vmatmul.f32.gmra.mxu0 %v205
    %v550 = vpop.f32.mrf.mxu0
    %v551 = vadd.f32 %v378, %v550
    %552 = vmatmul.f32.gmra.mxu0 %v208
    %v553 = vpop.f32.mrf.mxu0
    %v554 = vadd.f32 %v381, %v553
    %555 = vmatmul.f32.gmra.mxu0 %v211
    %v556 = vpop.f32.mrf.mxu0
    %v557 = vadd.f32 %v384, %v556
    %558 = vmatmul.f32.gmra.mxu0 %v214
    %v559 = vpop.f32.mrf.mxu0
    %v560 = vadd.f32 %v387, %v559
    %561 = vmatmul.f32.gmra.mxu0 %v217
    %v562 = vpop.f32.mrf.mxu0
    %v563 = vadd.f32 %v390, %v562
    %564 = vmatmul.f32.gmra.mxu0 %v220
    %v565 = vpop.f32.mrf.mxu0
    %v566 = vadd.f32 %v393, %v565
    %567 = vmatmul.f32.gmra.mxu0 %v223
    %v568 = vpop.f32.mrf.mxu0
    %v569 = vadd.f32 %v396, %v568
    %570 = vmatmul.f32.gmra.mxu0 %v226
    %v571 = vpop.f32.mrf.mxu0
    %v572 = vadd.f32 %v399, %v571
    %573 = vmatmul.f32.gmra.mxu0 %v229
    %v574 = vpop.f32.mrf.mxu0
    %v575 = vadd.f32 %v402, %v574
    %576 = vmatmul.f32.gmra.mxu0 %v232
    %v577 = vpop.f32.mrf.mxu0
    %v578 = vadd.f32 %v405, %v577
    %579 = vmatmul.f32.gmra.mxu0 %v235
    %v580 = vpop.f32.mrf.mxu0
    %v581 = vadd.f32 %v408, %v580
    %582 = vmatmul.f32.gmra.mxu0 %v238
    %v583 = vpop.f32.mrf.mxu0
    %v584 = vadd.f32 %v411, %v583
    %585 = vmatmul.f32.gmra.mxu0 %v241
    %v586 = vpop.f32.mrf.mxu0
    %v587 = vadd.f32 %v414, %v586
    %588 = vmatmul.f32.gmra.mxu0 %v244
    %v589 = vpop.f32.mrf.mxu0
    %v590 = vadd.f32 %v417, %v589
    %591 = vmatmul.f32.gmra.mxu0 %v247
    %v592 = vpop.f32.mrf.mxu0
    %v593 = vadd.f32 %v420, %v592
    %594 = vmatmul.f32.gmra.mxu0 %v250
    %v595 = vpop.f32.mrf.mxu0
    %v596 = vadd.f32 %v423, %v595
    %597 = vmatmul.f32.gmra.mxu0 %v253
    %v598 = vpop.f32.mrf.mxu0
    %v599 = vadd.f32 %v426, %v598
    %600 = vmatmul.f32.gmra.mxu0 %v256
    %v601 = vpop.f32.mrf.mxu0
    %v602 = vadd.f32 %v429, %v601
    %603 = vmatmul.f32.gmra.mxu0 %v259
    %v604 = vpop.f32.mrf.mxu0
    %v605 = vadd.f32 %v432, %v604
    %606 = vmatmul.f32.gmra.mxu0 %v262
    %v607 = vpop.f32.mrf.mxu0
    %v608 = vadd.f32 %v435, %v607
    %609 = vmatmul.f32.gmra.mxu0 %v265
    %v610 = vpop.f32.mrf.mxu0
    %v611 = vadd.f32 %v438, %v610
    %612 = vmatmul.f32.gmra.mxu0 %v268
    %v613 = vpop.f32.mrf.mxu0
    %v614 = vadd.f32 %v441, %v613
    %615 = vmatmul.f32.gmra.mxu0 %v271
    %v616 = vpop.f32.mrf.mxu0
    %v617 = vadd.f32 %v444, %v616
    %618 = vmatmul.f32.gmra.mxu0 %v274
    %v619 = vpop.f32.mrf.mxu0
    %v620 = vadd.f32 %v447, %v619
    %621 = vmatmul.f32.gmra.mxu0 %v277
    %v622 = vpop.f32.mrf.mxu0
    %v623 = vadd.f32 %v450, %v622
    %624 = vmatmul.f32.gmra.mxu0 %v280
    %v625 = vpop.f32.mrf.mxu0
    %v626 = vadd.f32 %v453, %v625
    %627 = vmatmul.f32.gmra.mxu0 %v283
    %v628 = vpop.f32.mrf.mxu0
    %v629 = vadd.f32 %v456, %v628
    %630 = vmatmul.f32.gmra.mxu0 %v286
    %v631 = vpop.f32.mrf.mxu0
    %v632 = vadd.f32 %v459, %v631
    %633 = vmatmul.f32.gmra.mxu0 %v289
    %v634 = vpop.f32.mrf.mxu0
    %v635 = vadd.f32 %v462, %v634
    %636 = vmatmul.f32.gmra.mxu0 %v292
    %v637 = vpop.f32.mrf.mxu0
    %v638 = vadd.f32 %v465, %v637
    %639 = vmatmul.f32.gmra.mxu0 %v295
    %v640 = vpop.f32.mrf.mxu0
    %v641 = vadd.f32 %v468, %v640
    %642 = vmatmul.f32.gmra.mxu0 %v298
    %v643 = vpop.f32.mrf.mxu0
    %v644 = vadd.f32 %v471, %v643
    %645 = vmatmul.f32.gmra.mxu0 %v301
    %v646 = vpop.f32.mrf.mxu0
    %v647 = vadd.f32 %v474, %v646
    %648 = vmatmul.f32.gmra.mxu0 %v304
    %v649 = vpop.f32.mrf.mxu0
    %v650 = vadd.f32 %v477, %v649
    %651 = vdwg.mxu0
    %v652 = vmax.f32 %v497, %v536
    %v653 = vmax.f32 %v500, %v539
    %v654 = vmax.f32 %v503, %v542
    %v655 = vmax.f32 %v506, %v545
    %v656 = vmax.f32 %v509, %v548
    %v657 = vmax.f32 %v512, %v551
    %v658 = vmax.f32 %v515, %v554
    %v659 = vmax.f32 %v518, %v557
    %v660 = vmax.f32 %v521, %v560
    %v661 = vmax.f32 %v524, %v563
    %v662 = vmax.f32 %v527, %v566
    %v663 = vmax.f32 %v530, %v569
    %v664 = vmax.f32 %v533, %v572
    %v665 = vmax.f32 %v575, %v614
    %v666 = vmax.f32 %v578, %v617
    %v667 = vmax.f32 %v581, %v620
    %v668 = vmax.f32 %v584, %v623
    %v669 = vmax.f32 %v587, %v626
    %v670 = vmax.f32 %v590, %v629
    %v671 = vmax.f32 %v593, %v632
    %v672 = vmax.f32 %v596, %v635
    %v673 = vmax.f32 %v599, %v638
    %v674 = vmax.f32 %v602, %v641
    %v675 = vmax.f32 %v605, %v644
    %v676 = vmax.f32 %v608, %v647
    %v677 = vmax.f32 %v611, %v650
    %v678 = vmax.f32 %v652, %v665
    %v679 = vmax.f32 %v653, %v666
    %v680 = vmax.f32 %v654, %v667
    %v681 = vmax.f32 %v655, %v668
    %v682 = vmax.f32 %v656, %v669
    %v683 = vmax.f32 %v657, %v670
    %v684 = vmax.f32 %v658, %v671
    %v685 = vmax.f32 %v659, %v672
    %v686 = vmax.f32 %v660, %v673
    %v687 = vmax.f32 %v661, %v674
    %v688 = vmax.f32 %v662, %v675
    %v689 = vmax.f32 %v663, %v676
    %v690 = vmax.f32 %v664, %v677
    %v691 = vld [vmem:[%s2] sm:$0x1]
    %v693 = vperm.slane %v691, 0
    %v695 = vadd.f32 %v678, %v693
    %v696 = vadd.f32 %v679, %v693
    %v697 = vadd.f32 %v680, %v693
    %v698 = vadd.f32 %v681, %v693
    %v699 = vadd.f32 %v682, %v693
    %v700 = vadd.f32 %v683, %v693
    %v701 = vadd.f32 %v684, %v693
    %v702 = vadd.f32 %v685, %v693
    %v703 = vadd.f32 %v686, %v693
    %v704 = vadd.f32 %v687, %v693
    %v705 = vadd.f32 %v688, %v693
    %v706 = vadd.f32 %v689, %v693
    %v707 = vadd.f32 %v690, %v693
    %v708 = vmax.f32 %v695, 0.0
    %v709 = vmax.f32 %v696, 0.0
    %v710 = vmax.f32 %v697, 0.0
    %v711 = vmax.f32 %v698, 0.0
    %v712 = vmax.f32 %v699, 0.0
    %v713 = vmax.f32 %v700, 0.0
    %v714 = vmax.f32 %v701, 0.0
    %v715 = vmax.f32 %v702, 0.0
    %v716 = vmax.f32 %v703, 0.0
    %v717 = vmax.f32 %v704, 0.0
    %v718 = vmax.f32 %v705, 0.0
    %v719 = vmax.f32 %v706, 0.0
    %v720 = vmax.f32 %v707, 0.0
    %vm721 = vcmask 261120
    %722 = vst.msk [vmem:[#allocation2] sm:$0xff] %vm721, %v708
    %723 = vst.msk [vmem:[#allocation2 + $0x8] sm:$0xff] %vm721, %v709
    %724 = vst.msk [vmem:[#allocation2 + $0x10] sm:$0xff] %vm721, %v710
    %725 = vst.msk [vmem:[#allocation2 + $0x18] sm:$0xff] %vm721, %v711
    %726 = vst.msk [vmem:[#allocation2 + $0x20] sm:$0xff] %vm721, %v712
    %727 = vst.msk [vmem:[#allocation2 + $0x28] sm:$0xff] %vm721, %v713
    %728 = vst.msk [vmem:[#allocation2 + $0x30] sm:$0xff] %vm721, %v714
    %729 = vst.msk [vmem:[#allocation2 + $0x38] sm:$0xff] %vm721, %v715
    %730 = vst.msk [vmem:[#allocation2 + $0x40] sm:$0xff] %vm721, %v716
    %731 = vst.msk [vmem:[#allocation2 + $0x48] sm:$0xff] %vm721, %v717
    %732 = vst.msk [vmem:[#allocation2 + $0x50] sm:$0xff] %vm721, %v718
    %733 = vst.msk [vmem:[#allocation2 + $0x58] sm:$0xff] %vm721, %v719
    %734 = vst.msk [vmem:[#allocation2 + $0x60] sm:$0xff] %vm721, %v720
    %v735 = vld [vmem:[#allocation2] sm:$0x3]
    %vm736 = vcmask 254976
    %737 = vst.msk [vmem:[#allocation3] sm:$0x3] %vm736, %v735
    %v738 = vld [vmem:[#allocation2 + $0x2] sm:$0x3]
    %740 = vrot.lane.b32.xlu0 %v738, 32
    %v741 = vpop.permute.xlu0 %740
    %vm743 = vcmask 517376
    %744 = vst.msk [vmem:[#allocation3] sm:$0x3] %vm743, %v741
    %v745 = vld [vmem:[#allocation2 + $0x4] sm:$0x3]
    %747 = vrot.lane.b32.xlu0 %v745, 64
    %v748 = vpop.permute.xlu0 %747
    %vm750 = vcmask 779776
    %751 = vst.msk [vmem:[#allocation3] sm:$0x3] %vm750, %v748
    %v752 = vld [vmem:[#allocation2 + $0x6] sm:$0x3]
    %754 = vrot.lane.b32.xlu0 %v752, 96
    %v755 = vpop.permute.xlu0 %754
    %vm757 = vcmask 1042176
    %758 = vst.msk [vmem:[#allocation3] sm:$0x3] %vm757, %v755
    %v759 = vld [vmem:[#allocation2 + $0x8] sm:$0x3]
    %760 = vst.msk [vmem:[#allocation3 + $0x2] sm:$0x3] %vm736, %v759
    %v761 = vld [vmem:[#allocation2 + $0xa] sm:$0x3]
    %763 = vrot.lane.b32.xlu0 %v761, 32
    %v764 = vpop.permute.xlu0 %763
    %766 = vst.msk [vmem:[#allocation3 + $0x2] sm:$0x3] %vm743, %v764
    %v767 = vld [vmem:[#allocation2 + $0xc] sm:$0x3]
    %769 = vrot.lane.b32.xlu0 %v767, 64
    %v770 = vpop.permute.xlu0 %769
    %772 = vst.msk [vmem:[#allocation3 + $0x2] sm:$0x3] %vm750, %v770
    %v773 = vld [vmem:[#allocation2 + $0xe] sm:$0x3]
    %775 = vrot.lane.b32.xlu0 %v773, 96
    %v776 = vpop.permute.xlu0 %775
    %778 = vst.msk [vmem:[#allocation3 + $0x2] sm:$0x3] %vm757, %v776
    %v779 = vld [vmem:[#allocation2 + $0x10] sm:$0x3]
    %780 = vst.msk [vmem:[#allocation3 + $0x4] sm:$0x3] %vm736, %v779
    %v781 = vld [vmem:[#allocation2 + $0x12] sm:$0x3]
    %783 = vrot.lane.b32.xlu0 %v781, 32
    %v784 = vpop.permute.xlu0 %783
    %786 = vst.msk [vmem:[#allocation3 + $0x4] sm:$0x3] %vm743, %v784
    %v787 = vld [vmem:[#allocation2 + $0x14] sm:$0x3]
    %789 = vrot.lane.b32.xlu0 %v787, 64
    %v790 = vpop.permute.xlu0 %789
    %792 = vst.msk [vmem:[#allocation3 + $0x4] sm:$0x3] %vm750, %v790
    %v793 = vld [vmem:[#allocation2 + $0x16] sm:$0x3]
    %795 = vrot.lane.b32.xlu0 %v793, 96
    %v796 = vpop.permute.xlu0 %795
    %798 = vst.msk [vmem:[#allocation3 + $0x4] sm:$0x3] %vm757, %v796
    %v799 = vld [vmem:[#allocation2 + $0x18] sm:$0x3]
    %800 = vst.msk [vmem:[#allocation3 + $0x6] sm:$0x3] %vm736, %v799
    %v801 = vld [vmem:[#allocation2 + $0x1a] sm:$0x3]
    %803 = vrot.lane.b32.xlu0 %v801, 32
    %v804 = vpop.permute.xlu0 %803
    %806 = vst.msk [vmem:[#allocation3 + $0x6] sm:$0x3] %vm743, %v804
    %v807 = vld [vmem:[#allocation2 + $0x1c] sm:$0x3]
    %809 = vrot.lane.b32.xlu0 %v807, 64
    %v810 = vpop.permute.xlu0 %809
    %812 = vst.msk [vmem:[#allocation3 + $0x6] sm:$0x3] %vm750, %v810
    %v813 = vld [vmem:[#allocation2 + $0x1e] sm:$0x3]
    %815 = vrot.lane.b32.xlu0 %v813, 96
    %v816 = vpop.permute.xlu0 %815
    %818 = vst.msk [vmem:[#allocation3 + $0x6] sm:$0x3] %vm757, %v816
    %v819 = vld [vmem:[#allocation2 + $0x20] sm:$0x3]
    %820 = vst.msk [vmem:[#allocation3 + $0x8] sm:$0x3] %vm736, %v819
    %v821 = vld [vmem:[#allocation2 + $0x22] sm:$0x3]
    %823 = vrot.lane.b32.xlu0 %v821, 32
    %v824 = vpop.permute.xlu0 %823
    %826 = vst.msk [vmem:[#allocation3 + $0x8] sm:$0x3] %vm743, %v824
    %v827 = vld [vmem:[#allocation2 + $0x24] sm:$0x3]
    %829 = vrot.lane.b32.xlu0 %v827, 64
    %v830 = vpop.permute.xlu0 %829
    %832 = vst.msk [vmem:[#allocation3 + $0x8] sm:$0x3] %vm750, %v830
    %v833 = vld [vmem:[#allocation2 + $0x26] sm:$0x3]
    %835 = vrot.lane.b32.xlu0 %v833, 96
    %v836 = vpop.permute.xlu0 %835
    %838 = vst.msk [vmem:[#allocation3 + $0x8] sm:$0x3] %vm757, %v836
    %v839 = vld [vmem:[#allocation2 + $0x28] sm:$0x3]
    %840 = vst.msk [vmem:[#allocation3 + $0xa] sm:$0x3] %vm736, %v839
    %v841 = vld [vmem:[#allocation2 + $0x2a] sm:$0x3]
    %843 = vrot.lane.b32.xlu0 %v841, 32
    %v844 = vpop.permute.xlu0 %843
    %846 = vst.msk [vmem:[#allocation3 + $0xa] sm:$0x3] %vm743, %v844
    %v847 = vld [vmem:[#allocation2 + $0x2c] sm:$0x3]
    %849 = vrot.lane.b32.xlu0 %v847, 64
    %v850 = vpop.permute.xlu0 %849
    %852 = vst.msk [vmem:[#allocation3 + $0xa] sm:$0x3] %vm750, %v850
    %v853 = vld [vmem:[#allocation2 + $0x2e] sm:$0x3]
    %855 = vrot.lane.b32.xlu0 %v853, 96
    %v856 = vpop.permute.xlu0 %855
    %858 = vst.msk [vmem:[#allocation3 + $0xa] sm:$0x3] %vm757, %v856
    %v859 = vld [vmem:[#allocation2 + $0x30] sm:$0x3]
    %860 = vst.msk [vmem:[#allocation3 + $0xc] sm:$0x3] %vm736, %v859
    %v861 = vld [vmem:[#allocation2 + $0x32] sm:$0x3]
    %863 = vrot.lane.b32.xlu0 %v861, 32
    %v864 = vpop.permute.xlu0 %863
    %866 = vst.msk [vmem:[#allocation3 + $0xc] sm:$0x3] %vm743, %v864
    %v867 = vld [vmem:[#allocation2 + $0x34] sm:$0x3]
    %869 = vrot.lane.b32.xlu0 %v867, 64
    %v870 = vpop.permute.xlu0 %869
    %872 = vst.msk [vmem:[#allocation3 + $0xc] sm:$0x3] %vm750, %v870
    %v873 = vld [vmem:[#allocation2 + $0x36] sm:$0x3]
    %875 = vrot.lane.b32.xlu0 %v873, 96
    %v876 = vpop.permute.xlu0 %875
    %878 = vst.msk [vmem:[#allocation3 + $0xc] sm:$0x3] %vm757, %v876
    %v879 = vld [vmem:[#allocation2 + $0x38] sm:$0x3]
    %880 = vst.msk [vmem:[#allocation3 + $0xe] sm:$0x3] %vm736, %v879
    %v881 = vld [vmem:[#allocation2 + $0x3a] sm:$0x3]
    %883 = vrot.lane.b32.xlu0 %v881, 32
    %v884 = vpop.permute.xlu0 %883
    %886 = vst.msk [vmem:[#allocation3 + $0xe] sm:$0x3] %vm743, %v884
    %v887 = vld [vmem:[#allocation2 + $0x3c] sm:$0x3]
    %889 = vrot.lane.b32.xlu0 %v887, 64
    %v890 = vpop.permute.xlu0 %889
    %892 = vst.msk [vmem:[#allocation3 + $0xe] sm:$0x3] %vm750, %v890
    %v893 = vld [vmem:[#allocation2 + $0x3e] sm:$0x3]
    %895 = vrot.lane.b32.xlu0 %v893, 96
    %v896 = vpop.permute.xlu0 %895
    %898 = vst.msk [vmem:[#allocation3 + $0xe] sm:$0x3] %vm757, %v896
    %v899 = vld [vmem:[#allocation2 + $0x40] sm:$0x3]
    %900 = vst.msk [vmem:[#allocation3 + $0x10] sm:$0x3] %vm736, %v899
    %v901 = vld [vmem:[#allocation2 + $0x42] sm:$0x3]
    %903 = vrot.lane.b32.xlu0 %v901, 32
    %v904 = vpop.permute.xlu0 %903
    %906 = vst.msk [vmem:[#allocation3 + $0x10] sm:$0x3] %vm743, %v904
    %v907 = vld [vmem:[#allocation2 + $0x44] sm:$0x3]
    %909 = vrot.lane.b32.xlu0 %v907, 64
    %v910 = vpop.permute.xlu0 %909
    %912 = vst.msk [vmem:[#allocation3 + $0x10] sm:$0x3] %vm750, %v910
    %v913 = vld [vmem:[#allocation2 + $0x46] sm:$0x3]
    %915 = vrot.lane.b32.xlu0 %v913, 96
    %v916 = vpop.permute.xlu0 %915
    %918 = vst.msk [vmem:[#allocation3 + $0x10] sm:$0x3] %vm757, %v916
    %v919 = vld [vmem:[#allocation2 + $0x48] sm:$0x3]
    %920 = vst.msk [vmem:[#allocation3 + $0x12] sm:$0x3] %vm736, %v919
    %v921 = vld [vmem:[#allocation2 + $0x4a] sm:$0x3]
    %923 = vrot.lane.b32.xlu0 %v921, 32
    %v924 = vpop.permute.xlu0 %923
    %926 = vst.msk [vmem:[#allocation3 + $0x12] sm:$0x3] %vm743, %v924
    %v927 = vld [vmem:[#allocation2 + $0x4c] sm:$0x3]
    %929 = vrot.lane.b32.xlu0 %v927, 64
    %v930 = vpop.permute.xlu0 %929
    %932 = vst.msk [vmem:[#allocation3 + $0x12] sm:$0x3] %vm750, %v930
    %v933 = vld [vmem:[#allocation2 + $0x4e] sm:$0x3]
    %935 = vrot.lane.b32.xlu0 %v933, 96
    %v936 = vpop.permute.xlu0 %935
    %938 = vst.msk [vmem:[#allocation3 + $0x12] sm:$0x3] %vm757, %v936
    %v939 = vld [vmem:[#allocation2 + $0x50] sm:$0x3]
    %940 = vst.msk [vmem:[#allocation3 + $0x14] sm:$0x3] %vm736, %v939
    %v941 = vld [vmem:[#allocation2 + $0x52] sm:$0x3]
    %943 = vrot.lane.b32.xlu0 %v941, 32
    %v944 = vpop.permute.xlu0 %943
    %946 = vst.msk [vmem:[#allocation3 + $0x14] sm:$0x3] %vm743, %v944
    %v947 = vld [vmem:[#allocation2 + $0x54] sm:$0x3]
    %949 = vrot.lane.b32.xlu0 %v947, 64
    %v950 = vpop.permute.xlu0 %949
    %952 = vst.msk [vmem:[#allocation3 + $0x14] sm:$0x3] %vm750, %v950
    %v953 = vld [vmem:[#allocation2 + $0x56] sm:$0x3]
    %955 = vrot.lane.b32.xlu0 %v953, 96
    %v956 = vpop.permute.xlu0 %955
    %958 = vst.msk [vmem:[#allocation3 + $0x14] sm:$0x3] %vm757, %v956
    %v959 = vld [vmem:[#allocation2 + $0x58] sm:$0x3]
    %960 = vst.msk [vmem:[#allocation3 + $0x16] sm:$0x3] %vm736, %v959
    %v961 = vld [vmem:[#allocation2 + $0x5a] sm:$0x3]
    %963 = vrot.lane.b32.xlu0 %v961, 32
    %v964 = vpop.permute.xlu0 %963
    %966 = vst.msk [vmem:[#allocation3 + $0x16] sm:$0x3] %vm743, %v964
    %v967 = vld [vmem:[#allocation2 + $0x5c] sm:$0x3]
    %969 = vrot.lane.b32.xlu0 %v967, 64
    %v970 = vpop.permute.xlu0 %969
    %972 = vst.msk [vmem:[#allocation3 + $0x16] sm:$0x3] %vm750, %v970
    %v973 = vld [vmem:[#allocation2 + $0x5e] sm:$0x3]
    %975 = vrot.lane.b32.xlu0 %v973, 96
    %v976 = vpop.permute.xlu0 %975
    %978 = vst.msk [vmem:[#allocation3 + $0x16] sm:$0x3] %vm757, %v976
    %v979 = vld [vmem:[#allocation2 + $0x60] sm:$0x3]
    %980 = vst.msk [vmem:[#allocation3 + $0x18] sm:$0x3] %vm736, %v979
    %v981 = vld [vmem:[#allocation3] sm:$0xff]
    %v982 = vld [vmem:[#allocation3 + $0x8] sm:$0xff]
    %v983 = vld [vmem:[#allocation3 + $0x10] sm:$0xff]
    %v984 = vld [vmem:[#allocation3 + $0x18] sm:$0x3]
    %v985 = vld [vmem:[%s3] sm:$0xff]
    %v986 = vld [vmem:[%s3 + $0x8] sm:$0xff]
    %v987 = vld [vmem:[%s3 + $0x10] sm:$0xff]
    %v988 = vld [vmem:[%s3 + $0x18] sm:$0xff]
    %v989 = vld [vmem:[%s3 + $0x20] sm:$0xff]
    %v990 = vld [vmem:[%s3 + $0x28] sm:$0xff]
    %v991 = vld [vmem:[%s3 + $0x30] sm:$0xff]
    %v992 = vld [vmem:[%s3 + $0x38] sm:$0xff]
    %v993 = vld [vmem:[%s3 + $0x40] sm:$0xff]
    %v994 = vld [vmem:[%s3 + $0x48] sm:$0xff]
    %v995 = vld [vmem:[%s3 + $0x50] sm:$0xff]
    %v996 = vld [vmem:[%s3 + $0x58] sm:$0xff]
    %v997 = vld [vmem:[%s3 + $0x60] sm:$0xff]
    %v998 = vld [vmem:[%s3 + $0x68] sm:$0xff]
    %v999 = vld [vmem:[%s3 + $0x70] sm:$0xff]
    %v1000 = vld [vmem:[%s3 + $0x78] sm:$0xff]
    %v1001 = vld [vmem:[%s3 + $0x80] sm:$0xff]
    %v1002 = vld [vmem:[%s3 + $0x88] sm:$0xff]
    %v1003 = vld [vmem:[%s3 + $0x90] sm:$0xff]
    %v1004 = vld [vmem:[%s3 + $0x98] sm:$0xff]
    %v1005 = vld [vmem:[%s3 + $0xa0] sm:$0xff]
    %v1006 = vld [vmem:[%s3 + $0xa8] sm:$0xff]
    %v1007 = vld [vmem:[%s3 + $0xb0] sm:$0xff]
    %v1008 = vld [vmem:[%s3 + $0xb8] sm:$0xff]
    %v1009 = vld [vmem:[%s3 + $0xc0] sm:$0xff]
    %v1010 = vld [vmem:[%s3 + $0xc8] sm:$0xff]
    %v1011 = vld [vmem:[%s3 + $0xd0] sm:$0xff]
    %v1012 = vld [vmem:[%s3 + $0xd8] sm:$0xff]
    %v1013 = vld [vmem:[%s3 + $0xe0] sm:$0xff]
    %v1014 = vld [vmem:[%s3 + $0xe8] sm:$0xff]
    %v1015 = vld [vmem:[%s3 + $0xf0] sm:$0xff]
    %v1016 = vld [vmem:[%s3 + $0xf8] sm:$0xff]
    %v1017 = vld [vmem:[%s3 + $0x100] sm:$0xff]
    %v1018 = vld [vmem:[%s3 + $0x108] sm:$0xff]
    %v1019 = vld [vmem:[%s3 + $0x110] sm:$0xff]
    %v1020 = vld [vmem:[%s3 + $0x118] sm:$0xff]
    %v1021 = vld [vmem:[%s3 + $0x120] sm:$0xff]
    %v1022 = vld [vmem:[%s3 + $0x128] sm:$0xff]
    %v1023 = vld [vmem:[%s3 + $0x130] sm:$0xff]
    %v1024 = vld [vmem:[%s3 + $0x138] sm:$0xff]
    %v1025 = vld [vmem:[%s3 + $0x140] sm:$0xff]
    %v1026 = vld [vmem:[%s3 + $0x148] sm:$0xff]
    %v1027 = vld [vmem:[%s3 + $0x150] sm:$0xff]
    %v1028 = vld [vmem:[%s3 + $0x158] sm:$0xff]
    %v1029 = vld [vmem:[%s3 + $0x160] sm:$0xff]
    %v1030 = vld [vmem:[%s3 + $0x168] sm:$0xff]
    %v1031 = vld [vmem:[%s3 + $0x170] sm:$0xff]
    %v1032 = vld [vmem:[%s3 + $0x178] sm:$0xff]
    %v1033 = vld [vmem:[%s3 + $0x180] sm:$0xff]
    %v1034 = vld [vmem:[%s3 + $0x188] sm:$0xff]
    %v1035 = vld [vmem:[%s3 + $0x190] sm:$0xff]
    %v1036 = vld [vmem:[%s3 + $0x198] sm:$0xff]
    %v1037 = vld [vmem:[%s3 + $0x1a0] sm:$0xff]
    %v1038 = vld [vmem:[%s3 + $0x1a8] sm:$0xff]
    %v1039 = vld [vmem:[%s3 + $0x1b0] sm:$0xff]
    %v1040 = vld [vmem:[%s3 + $0x1b8] sm:$0xff]
    %v1041 = vld [vmem:[%s3 + $0x1c0] sm:$0xff]
    %v1042 = vld [vmem:[%s3 + $0x1c8] sm:$0xff]
    %v1043 = vld [vmem:[%s3 + $0x1d0] sm:$0xff]
    %v1044 = vld [vmem:[%s3 + $0x1d8] sm:$0xff]
    %v1045 = vld [vmem:[%s3 + $0x1e0] sm:$0xff]
    %v1046 = vld [vmem:[%s3 + $0x1e8] sm:$0xff]
    %v1047 = vld [vmem:[%s3 + $0x1f0] sm:$0xff]
    %v1048 = vld [vmem:[%s3 + $0x1f8] sm:$0xff]
    %v1049 = vld [vmem:[%s3 + $0x200] sm:$0xff]
    %v1050 = vld [vmem:[%s3 + $0x208] sm:$0xff]
    %v1051 = vld [vmem:[%s3 + $0x210] sm:$0xff]
    %v1052 = vld [vmem:[%s3 + $0x218] sm:$0xff]
    %v1053 = vld [vmem:[%s3 + $0x220] sm:$0xff]
    %v1054 = vld [vmem:[%s3 + $0x228] sm:$0xff]
    %v1055 = vld [vmem:[%s3 + $0x230] sm:$0xff]
    %v1056 = vld [vmem:[%s3 + $0x238] sm:$0xff]
    %v1057 = vld [vmem:[%s3 + $0x240] sm:$0xff]
    %v1058 = vld [vmem:[%s3 + $0x248] sm:$0xff]
    %v1059 = vld [vmem:[%s3 + $0x250] sm:$0xff]
    %v1060 = vld [vmem:[%s3 + $0x258] sm:$0xff]
    %v1061 = vld [vmem:[%s3 + $0x260] sm:$0xff]
    %v1062 = vld [vmem:[%s3 + $0x268] sm:$0xff]
    %v1063 = vld [vmem:[%s3 + $0x270] sm:$0xff]
    %v1064 = vld [vmem:[%s3 + $0x278] sm:$0xff]
    %v1065 = vld [vmem:[%s3 + $0x280] sm:$0xff]
    %v1066 = vld [vmem:[%s3 + $0x288] sm:$0xff]
    %v1067 = vld [vmem:[%s3 + $0x290] sm:$0xff]
    %v1068 = vld [vmem:[%s3 + $0x298] sm:$0xff]
    %v1069 = vld [vmem:[%s3 + $0x2a0] sm:$0xff]
    %v1070 = vld [vmem:[%s3 + $0x2a8] sm:$0xff]
    %v1071 = vld [vmem:[%s3 + $0x2b0] sm:$0xff]
    %v1072 = vld [vmem:[%s3 + $0x2b8] sm:$0xff]
    %v1073 = vld [vmem:[%s3 + $0x2c0] sm:$0xff]
    %v1074 = vld [vmem:[%s3 + $0x2c8] sm:$0xff]
    %v1075 = vld [vmem:[%s3 + $0x2d0] sm:$0xff]
    %v1076 = vld [vmem:[%s3 + $0x2d8] sm:$0xff]
    %v1077 = vld [vmem:[%s3 + $0x2e0] sm:$0xff]
    %v1078 = vld [vmem:[%s3 + $0x2e8] sm:$0xff]
    %v1079 = vld [vmem:[%s3 + $0x2f0] sm:$0xff]
    %v1080 = vld [vmem:[%s3 + $0x2f8] sm:$0xff]
    %v1081 = vld [vmem:[%s3 + $0x300] sm:$0xff]
    %v1082 = vld [vmem:[%s3 + $0x308] sm:$0xff]
    %v1083 = vld [vmem:[%s3 + $0x310] sm:$0xff]
    %v1084 = vld [vmem:[%s3 + $0x318] sm:$0xff]
    %v1085 = vld [vmem:[%s3 + $0x320] sm:$0xff]
    %v1086 = vld [vmem:[%s3 + $0x328] sm:$0xff]
    %v1087 = vld [vmem:[%s3 + $0x330] sm:$0xff]
    %v1088 = vld [vmem:[%s3 + $0x338] sm:$0xff]
    %v1089 = vld [vmem:[%s3 + $0x340] sm:$0xff]
    %v1090 = vld [vmem:[%s3 + $0x348] sm:$0xff]
    %v1091 = vld [vmem:[%s3 + $0x350] sm:$0xff]
    %v1092 = vld [vmem:[%s3 + $0x358] sm:$0xff]
    %v1093 = vld [vmem:[%s3 + $0x360] sm:$0xff]
    %v1094 = vld [vmem:[%s3 + $0x368] sm:$0xff]
    %v1095 = vld [vmem:[%s3 + $0x370] sm:$0xff]
    %v1096 = vld [vmem:[%s3 + $0x378] sm:$0xff]
    %v1097 = vld [vmem:[%s3 + $0x380] sm:$0xff]
    %v1098 = vld [vmem:[%s3 + $0x388] sm:$0xff]
    %v1099 = vld [vmem:[%s3 + $0x390] sm:$0xff]
    %v1100 = vld [vmem:[%s3 + $0x398] sm:$0xff]
    %v1101 = vld [vmem:[%s3 + $0x3a0] sm:$0xff]
    %v1102 = vld [vmem:[%s3 + $0x3a8] sm:$0xff]
    %v1103 = vld [vmem:[%s3 + $0x3b0] sm:$0xff]
    %v1104 = vld [vmem:[%s3 + $0x3b8] sm:$0xff]
    %v1105 = vld [vmem:[%s3 + $0x3c0] sm:$0xff]
    %v1106 = vld [vmem:[%s3 + $0x3c8] sm:$0xff]
    %v1107 = vld [vmem:[%s3 + $0x3d0] sm:$0xff]
    %v1108 = vld [vmem:[%s3 + $0x3d8] sm:$0xff]
    %v1109 = vld [vmem:[%s3 + $0x3e0] sm:$0xff]
    %v1110 = vld [vmem:[%s3 + $0x3e8] sm:$0xff]
    %v1111 = vld [vmem:[%s3 + $0x3f0] sm:$0xff]
    %v1112 = vld [vmem:[%s3 + $0x3f8] sm:$0xff]
    %v1113 = vld [vmem:[%s3 + $0x400] sm:$0xff]
    %v1114 = vld [vmem:[%s3 + $0x408] sm:$0xff]
    %v1115 = vld [vmem:[%s3 + $0x410] sm:$0xff]
    %v1116 = vld [vmem:[%s3 + $0x418] sm:$0xff]
    %v1117 = vld [vmem:[%s3 + $0x420] sm:$0xff]
    %v1118 = vld [vmem:[%s3 + $0x428] sm:$0xff]
    %v1119 = vld [vmem:[%s3 + $0x430] sm:$0xff]
    %v1120 = vld [vmem:[%s3 + $0x438] sm:$0xff]
    %v1121 = vld [vmem:[%s3 + $0x440] sm:$0xff]
    %v1122 = vld [vmem:[%s3 + $0x448] sm:$0xff]
    %v1123 = vld [vmem:[%s3 + $0x450] sm:$0xff]
    %v1124 = vld [vmem:[%s3 + $0x458] sm:$0xff]
    %v1125 = vld [vmem:[%s3 + $0x460] sm:$0xff]
    %v1126 = vld [vmem:[%s3 + $0x468] sm:$0xff]
    %v1127 = vld [vmem:[%s3 + $0x470] sm:$0xff]
    %v1128 = vld [vmem:[%s3 + $0x478] sm:$0xff]
    %v1129 = vld [vmem:[%s3 + $0x480] sm:$0xff]
    %v1130 = vld [vmem:[%s3 + $0x488] sm:$0xff]
    %v1131 = vld [vmem:[%s3 + $0x490] sm:$0xff]
    %v1132 = vld [vmem:[%s3 + $0x498] sm:$0xff]
    %v1133 = vld [vmem:[%s3 + $0x4a0] sm:$0xff]
    %v1134 = vld [vmem:[%s3 + $0x4a8] sm:$0xff]
    %v1135 = vld [vmem:[%s3 + $0x4b0] sm:$0xff]
    %v1136 = vld [vmem:[%s3 + $0x4b8] sm:$0xff]
    %v1137 = vld [vmem:[%s3 + $0x4c0] sm:$0xff]
    %v1138 = vld [vmem:[%s3 + $0x4c8] sm:$0xff]
    %v1139 = vld [vmem:[%s3 + $0x4d0] sm:$0xff]
    %v1140 = vld [vmem:[%s3 + $0x4d8] sm:$0xff]
    %v1141 = vld [vmem:[%s3 + $0x4e0] sm:$0xff]
    %v1142 = vld [vmem:[%s3 + $0x4e8] sm:$0xff]
    %v1143 = vld [vmem:[%s3 + $0x4f0] sm:$0xff]
    %v1144 = vld [vmem:[%s3 + $0x4f8] sm:$0xff]
    %v1145 = vld [vmem:[%s3 + $0x500] sm:$0xff]
    %v1146 = vld [vmem:[%s3 + $0x508] sm:$0xff]
    %v1147 = vld [vmem:[%s3 + $0x510] sm:$0xff]
    %v1148 = vld [vmem:[%s3 + $0x518] sm:$0xff]
    %v1149 = vld [vmem:[%s3 + $0x520] sm:$0xff]
    %v1150 = vld [vmem:[%s3 + $0x528] sm:$0xff]
    %v1151 = vld [vmem:[%s3 + $0x530] sm:$0xff]
    %v1152 = vld [vmem:[%s3 + $0x538] sm:$0xff]
    %v1153 = vld [vmem:[%s3 + $0x540] sm:$0xff]
    %v1154 = vld [vmem:[%s3 + $0x548] sm:$0xff]
    %v1155 = vld [vmem:[%s3 + $0x550] sm:$0xff]
    %v1156 = vld [vmem:[%s3 + $0x558] sm:$0xff]
    %v1157 = vld [vmem:[%s3 + $0x560] sm:$0xff]
    %v1158 = vld [vmem:[%s3 + $0x568] sm:$0xff]
    %v1159 = vld [vmem:[%s3 + $0x570] sm:$0xff]
    %v1160 = vld [vmem:[%s3 + $0x578] sm:$0xff]
    %v1161 = vld [vmem:[%s3 + $0x580] sm:$0xff]
    %v1162 = vld [vmem:[%s3 + $0x588] sm:$0xff]
    %v1163 = vld [vmem:[%s3 + $0x590] sm:$0xff]
    %v1164 = vld [vmem:[%s3 + $0x598] sm:$0xff]
    %v1165 = vld [vmem:[%s3 + $0x5a0] sm:$0xff]
    %v1166 = vld [vmem:[%s3 + $0x5a8] sm:$0xff]
    %v1167 = vld [vmem:[%s3 + $0x5b0] sm:$0xff]
    %v1168 = vld [vmem:[%s3 + $0x5b8] sm:$0xff]
    %v1169 = vld [vmem:[%s3 + $0x5c0] sm:$0xff]
    %v1170 = vld [vmem:[%s3 + $0x5c8] sm:$0xff]
    %v1171 = vld [vmem:[%s3 + $0x5d0] sm:$0xff]
    %v1172 = vld [vmem:[%s3 + $0x5d8] sm:$0xff]
    %v1173 = vld [vmem:[%s3 + $0x5e0] sm:$0xff]
    %v1174 = vld [vmem:[%s3 + $0x5e8] sm:$0xff]
    %v1175 = vld [vmem:[%s3 + $0x5f0] sm:$0xff]
    %v1176 = vld [vmem:[%s3 + $0x5f8] sm:$0xff]
    %v1177 = vld [vmem:[%s3 + $0x600] sm:$0xff]
    %v1178 = vld [vmem:[%s3 + $0x608] sm:$0xff]
    %v1179 = vld [vmem:[%s3 + $0x610] sm:$0xff]
    %v1180 = vld [vmem:[%s3 + $0x618] sm:$0xff]
    %v1181 = vld [vmem:[%s4] sm:$0x1]
    %v1183 = vperm.slane %v1181, 0
    %1189 = vst [vmem:[#allocation1] ss:$4 sm:$0xff] %v981
    %s1190 = scalar_lea.vmem [#allocation1], 32
    %1191 = vst [vmem:[%s1190] ss:$4 sm:$0xff] %v982
    %v1192 = vld.sshfl [vmem:[#allocation1] sm:$0xff pattern:$0x73625140]
    %v1193 = vld.sshfl [vmem:[#allocation1 + $0x8] sm:$0xff pattern:$0x73625140]
    %v1194 = vld.sshfl [vmem:[#allocation1 + $0x10] sm:$0xff pattern:$0x73625140]
    %v1195 = vld.sshfl [vmem:[#allocation1 + $0x18] sm:$0xff pattern:$0x73625140]
    %v1196 = vld.sshfl [vmem:[#allocation1 + $0x20] sm:$0xff pattern:$0x73625140]
    %v1197 = vld.sshfl [vmem:[#allocation1 + $0x28] sm:$0xff pattern:$0x73625140]
    %v1198 = vld.sshfl [vmem:[#allocation1 + $0x30] sm:$0xff pattern:$0x73625140]
    %v1199 = vld.sshfl [vmem:[#allocation1 + $0x38] sm:$0xff pattern:$0x73625140]
    %1200 = vst [vmem:[#allocation1] ss:$4 sm:$0xff] %v983
    %1201 = vst [vmem:[%s1190] ss:$4 sm:$0xff] %v984
    %v1202 = vld.sshfl [vmem:[#allocation1] sm:$0xff pattern:$0x73625140]
    %v1203 = vld.sshfl [vmem:[#allocation1 + $0x8] sm:$0xff pattern:$0x73625140]
    %v1204 = vld.sshfl [vmem:[#allocation1 + $0x10] sm:$0xff pattern:$0x73625140]
    %v1205 = vld.sshfl [vmem:[#allocation1 + $0x18] sm:$0xff pattern:$0x73625140]
    %v1206 = vld.sshfl [vmem:[#allocation1 + $0x20] sm:$0xff pattern:$0x73625140]
    %v1219 = vsel %vm721, %v1206, 0
    %1221 = vmatpush.msra.mxu0 %v1000
    %1222 = vmatpush.msra.mxu0 %v999
    %1223 = vmatpush.msra.mxu0 %v998
    %1224 = vmatpush.msra.mxu0 %v997
    %1225 = vmatpush.msra.mxu0 %v996
    %1226 = vmatpush.msra.mxu0 %v995
    %1227 = vmatpush.msra.mxu0 %v994
    %1228 = vmatpush.msra.mxu0 %v993
    %1229 = vmatpush.msra.mxu0 %v992
    %1230 = vmatpush.msra.mxu0 %v991
    %1231 = vmatpush.msra.mxu0 %v990
    %1232 = vmatpush.msra.mxu0 %v989
    %1233 = vmatpush.msra.mxu0 %v988
    %1234 = vmatpush.msra.mxu0 %v987
    %1235 = vmatpush.msra.mxu0 %v986
    %1236 = vmatpush.msra.mxu0 %v985
    %1237 = vmatmul.f32.gmra.mxu0 %v1192
    %v1238 = vpop.f32.mrf.mxu0
    %v1239 = vadd.f32 %v1183, %v1238
    %1240 = vdwg.mxu0
    %1241 = vmatpush.msra.mxu0 %v1016
    %1242 = vmatpush.msra.mxu0 %v1015
    %1243 = vmatpush.msra.mxu0 %v1014
    %1244 = vmatpush.msra.mxu0 %v1013
    %1245 = vmatpush.msra.mxu0 %v1012
    %1246 = vmatpush.msra.mxu0 %v1011
    %1247 = vmatpush.msra.mxu0 %v1010
    %1248 = vmatpush.msra.mxu0 %v1009
    %1249 = vmatpush.msra.mxu0 %v1008
    %1250 = vmatpush.msra.mxu0 %v1007
    %1251 = vmatpush.msra.mxu0 %v1006
    %1252 = vmatpush.msra.mxu0 %v1005
    %1253 = vmatpush.msra.mxu0 %v1004
    %1254 = vmatpush.msra.mxu0 %v1003
    %1255 = vmatpush.msra.mxu0 %v1002
    %1256 = vmatpush.msra.mxu0 %v1001
    %1257 = vmatmul.f32.gmra.mxu0 %v1193
    %v1258 = vpop.f32.mrf.mxu0
    %v1259 = vadd.f32 %v1239, %v1258
    %1260 = vdwg.mxu0
    %1261 = vmatpush.msra.mxu0 %v1032
    %1262 = vmatpush.msra.mxu0 %v1031
    %1263 = vmatpush.msra.mxu0 %v1030
    %1264 = vmatpush.msra.mxu0 %v1029
    %1265 = vmatpush.msra.mxu0 %v1028
    %1266 = vmatpush.msra.mxu0 %v1027
    %1267 = vmatpush.msra.mxu0 %v1026
    %1268 = vmatpush.msra.mxu0 %v1025
    %1269 = vmatpush.msra.mxu0 %v1024
    %1270 = vmatpush.msra.mxu0 %v1023
    %1271 = vmatpush.msra.mxu0 %v1022
    %1272 = vmatpush.msra.mxu0 %v1021
    %1273 = vmatpush.msra.mxu0 %v1020
    %1274 = vmatpush.msra.mxu0 %v1019
    %1275 = vmatpush.msra.mxu0 %v1018
    %1276 = vmatpush.msra.mxu0 %v1017
    %1277 = vmatmul.f32.gmra.mxu0 %v1194
    %v1278 = vpop.f32.mrf.mxu0
    %v1279 = vadd.f32 %v1259, %v1278
    %1280 = vdwg.mxu0
    %1281 = vmatpush.msra.mxu0 %v1048
    %1282 = vmatpush.msra.mxu0 %v1047
    %1283 = vmatpush.msra.mxu0 %v1046
    %1284 = vmatpush.msra.mxu0 %v1045
    %1285 = vmatpush.msra.mxu0 %v1044
    %1286 = vmatpush.msra.mxu0 %v1043
    %1287 = vmatpush.msra.mxu0 %v1042
    %1288 = vmatpush.msra.mxu0 %v1041
    %1289 = vmatpush.msra.mxu0 %v1040
    %1290 = vmatpush.msra.mxu0 %v1039
    %1291 = vmatpush.msra.mxu0 %v1038
    %1292 = vmatpush.msra.mxu0 %v1037
    %1293 = vmatpush.msra.mxu0 %v1036
    %1294 = vmatpush.msra.mxu0 %v1035
    %1295 = vmatpush.msra.mxu0 %v1034
    %1296 = vmatpush.msra.mxu0 %v1033
    %1297 = vmatmul.f32.gmra.mxu0 %v1195
    %v1298 = vpop.f32.mrf.mxu0
    %v1299 = vadd.f32 %v1279, %v1298
    %1300 = vdwg.mxu0
    %1301 = vmatpush.msra.mxu0 %v1064
    %1302 = vmatpush.msra.mxu0 %v1063
    %1303 = vmatpush.msra.mxu0 %v1062
    %1304 = vmatpush.msra.mxu0 %v1061
    %1305 = vmatpush.msra.mxu0 %v1060
    %1306 = vmatpush.msra.mxu0 %v1059
    %1307 = vmatpush.msra.mxu0 %v1058
    %1308 = vmatpush.msra.mxu0 %v1057
    %1309 = vmatpush.msra.mxu0 %v1056
    %1310 = vmatpush.msra.mxu0 %v1055
    %1311 = vmatpush.msra.mxu0 %v1054
    %1312 = vmatpush.msra.mxu0 %v1053
    %1313 = vmatpush.msra.mxu0 %v1052
    %1314 = vmatpush.msra.mxu0 %v1051
    %1315 = vmatpush.msra.mxu0 %v1050
    %1316 = vmatpush.msra.mxu0 %v1049
    %1317 = vmatmul.f32.gmra.mxu0 %v1196
    %v1318 = vpop.f32.mrf.mxu0
    %v1319 = vadd.f32 %v1299, %v1318
    %1320 = vdwg.mxu0
    %1321 = vmatpush.msra.mxu0 %v1080
    %1322 = vmatpush.msra.mxu0 %v1079
    %1323 = vmatpush.msra.mxu0 %v1078
    %1324 = vmatpush.msra.mxu0 %v1077
    %1325 = vmatpush.msra.mxu0 %v1076
    %1326 = vmatpush.msra.mxu0 %v1075
    %1327 = vmatpush.msra.mxu0 %v1074
    %1328 = vmatpush.msra.mxu0 %v1073
    %1329 = vmatpush.msra.mxu0 %v1072
    %1330 = vmatpush.msra.mxu0 %v1071
    %1331 = vmatpush.msra.mxu0 %v1070
    %1332 = vmatpush.msra.mxu0 %v1069
    %1333 = vmatpush.msra.mxu0 %v1068
    %1334 = vmatpush.msra.mxu0 %v1067
    %1335 = vmatpush.msra.mxu0 %v1066
    %1336 = vmatpush.msra.mxu0 %v1065
    %1337 = vmatmul.f32.gmra.mxu0 %v1197
    %v1338 = vpop.f32.mrf.mxu0
    %v1339 = vadd.f32 %v1319, %v1338
    %1340 = vdwg.mxu0
    %1341 = vmatpush.msra.mxu0 %v1096
    %1342 = vmatpush.msra.mxu0 %v1095
    %1343 = vmatpush.msra.mxu0 %v1094
    %1344 = vmatpush.msra.mxu0 %v1093
    %1345 = vmatpush.msra.mxu0 %v1092
    %1346 = vmatpush.msra.mxu0 %v1091
    %1347 = vmatpush.msra.mxu0 %v1090
    %1348 = vmatpush.msra.mxu0 %v1089
    %1349 = vmatpush.msra.mxu0 %v1088
    %1350 = vmatpush.msra.mxu0 %v1087
    %1351 = vmatpush.msra.mxu0 %v1086
    %1352 = vmatpush.msra.mxu0 %v1085
    %1353 = vmatpush.msra.mxu0 %v1084
    %1354 = vmatpush.msra.mxu0 %v1083
    %1355 = vmatpush.msra.mxu0 %v1082
    %1356 = vmatpush.msra.mxu0 %v1081
    %1357 = vmatmul.f32.gmra.mxu0 %v1198
    %v1358 = vpop.f32.mrf.mxu0
    %v1359 = vadd.f32 %v1339, %v1358
    %1360 = vdwg.mxu0
    %1361 = vmatpush.msra.mxu0 %v1112
    %1362 = vmatpush.msra.mxu0 %v1111
    %1363 = vmatpush.msra.mxu0 %v1110
    %1364 = vmatpush.msra.mxu0 %v1109
    %1365 = vmatpush.msra.mxu0 %v1108
    %1366 = vmatpush.msra.mxu0 %v1107
    %1367 = vmatpush.msra.mxu0 %v1106
    %1368 = vmatpush.msra.mxu0 %v1105
    %1369 = vmatpush.msra.mxu0 %v1104
    %1370 = vmatpush.msra.mxu0 %v1103
    %1371 = vmatpush.msra.mxu0 %v1102
    %1372 = vmatpush.msra.mxu0 %v1101
    %1373 = vmatpush.msra.mxu0 %v1100
    %1374 = vmatpush.msra.mxu0 %v1099
    %1375 = vmatpush.msra.mxu0 %v1098
    %1376 = vmatpush.msra.mxu0 %v1097
    %1377 = vmatmul.f32.gmra.mxu0 %v1199
    %v1378 = vpop.f32.mrf.mxu0
    %v1379 = vadd.f32 %v1359, %v1378
    %1380 = vdwg.mxu0
    %1381 = vmatpush.msra.mxu0 %v1128
    %1382 = vmatpush.msra.mxu0 %v1127
    %1383 = vmatpush.msra.mxu0 %v1126
    %1384 = vmatpush.msra.mxu0 %v1125
    %1385 = vmatpush.msra.mxu0 %v1124
    %1386 = vmatpush.msra.mxu0 %v1123
    %1387 = vmatpush.msra.mxu0 %v1122
    %1388 = vmatpush.msra.mxu0 %v1121
    %1389 = vmatpush.msra.mxu0 %v1120
    %1390 = vmatpush.msra.mxu0 %v1119
    %1391 = vmatpush.msra.mxu0 %v1118
    %1392 = vmatpush.msra.mxu0 %v1117
    %1393 = vmatpush.msra.mxu0 %v1116
    %1394 = vmatpush.msra.mxu0 %v1115
    %1395 = vmatpush.msra.mxu0 %v1114
    %1396 = vmatpush.msra.mxu0 %v1113
    %1397 = vmatmul.f32.gmra.mxu0 %v1202
    %v1398 = vpop.f32.mrf.mxu0
    %v1399 = vadd.f32 %v1379, %v1398
    %1400 = vdwg.mxu0
    %1401 = vmatpush.msra.mxu0 %v1144
    %1402 = vmatpush.msra.mxu0 %v1143
    %1403 = vmatpush.msra.mxu0 %v1142
    %1404 = vmatpush.msra.mxu0 %v1141
    %1405 = vmatpush.msra.mxu0 %v1140
    %1406 = vmatpush.msra.mxu0 %v1139
    %1407 = vmatpush.msra.mxu0 %v1138
    %1408 = vmatpush.msra.mxu0 %v1137
    %1409 = vmatpush.msra.mxu0 %v1136
    %1410 = vmatpush.msra.mxu0 %v1135
    %1411 = vmatpush.msra.mxu0 %v1134
    %1412 = vmatpush.msra.mxu0 %v1133
    %1413 = vmatpush.msra.mxu0 %v1132
    %1414 = vmatpush.msra.mxu0 %v1131
    %1415 = vmatpush.msra.mxu0 %v1130
    %1416 = vmatpush.msra.mxu0 %v1129
    %1417 = vmatmul.f32.gmra.mxu0 %v1203
    %v1418 = vpop.f32.mrf.mxu0
    %v1419 = vadd.f32 %v1399, %v1418
    %1420 = vdwg.mxu0
    %1421 = vmatpush.msra.mxu0 %v1160
    %1422 = vmatpush.msra.mxu0 %v1159
    %1423 = vmatpush.msra.mxu0 %v1158
    %1424 = vmatpush.msra.mxu0 %v1157
    %1425 = vmatpush.msra.mxu0 %v1156
    %1426 = vmatpush.msra.mxu0 %v1155
    %1427 = vmatpush.msra.mxu0 %v1154
    %1428 = vmatpush.msra.mxu0 %v1153
    %1429 = vmatpush.msra.mxu0 %v1152
    %1430 = vmatpush.msra.mxu0 %v1151
    %1431 = vmatpush.msra.mxu0 %v1150
    %1432 = vmatpush.msra.mxu0 %v1149
    %1433 = vmatpush.msra.mxu0 %v1148
    %1434 = vmatpush.msra.mxu0 %v1147
    %1435 = vmatpush.msra.mxu0 %v1146
    %1436 = vmatpush.msra.mxu0 %v1145
    %1437 = vmatmul.f32.gmra.mxu0 %v1204
    %v1438 = vpop.f32.mrf.mxu0
    %v1439 = vadd.f32 %v1419, %v1438
    %1440 = vdwg.mxu0
    %1441 = vmatpush.msra.mxu0 %v1176
    %1442 = vmatpush.msra.mxu0 %v1175
    %1443 = vmatpush.msra.mxu0 %v1174
    %1444 = vmatpush.msra.mxu0 %v1173
    %1445 = vmatpush.msra.mxu0 %v1172
    %1446 = vmatpush.msra.mxu0 %v1171
    %1447 = vmatpush.msra.mxu0 %v1170
    %1448 = vmatpush.msra.mxu0 %v1169
    %1449 = vmatpush.msra.mxu0 %v1168
    %1450 = vmatpush.msra.mxu0 %v1167
    %1451 = vmatpush.msra.mxu0 %v1166
    %1452 = vmatpush.msra.mxu0 %v1165
    %1453 = vmatpush.msra.mxu0 %v1164
    %1454 = vmatpush.msra.mxu0 %v1163
    %1455 = vmatpush.msra.mxu0 %v1162
    %1456 = vmatpush.msra.mxu0 %v1161
    %1457 = vmatmul.f32.gmra.mxu0 %v1205
    %v1458 = vpop.f32.mrf.mxu0
    %v1459 = vadd.f32 %v1439, %v1458
    %1460 = vdwg.mxu0
    %1461 = vmatpush.msra.mxu0 0.0
    %1462 = vmatpush.msra.mxu0 0.0
    %1463 = vmatpush.msra.mxu0 0.0
    %1464 = vmatpush.msra.mxu0 0.0
    %1465 = vmatpush.msra.mxu0 0.0
    %1466 = vmatpush.msra.mxu0 0.0
    %1467 = vmatpush.msra.mxu0 0.0
    %1468 = vmatpush.msra.mxu0 0.0
    %1469 = vmatpush.msra.mxu0 0.0
    %1470 = vmatpush.msra.mxu0 0.0
    %1471 = vmatpush.msra.mxu0 0.0
    %1472 = vmatpush.msra.mxu0 0.0
    %1473 = vmatpush.msra.mxu0 %v1180
    %1474 = vmatpush.msra.mxu0 %v1179
    %1475 = vmatpush.msra.mxu0 %v1178
    %1476 = vmatpush.msra.mxu0 %v1177
    %1477 = vmatmul.f32.gmra.mxu0 %v1219
    %v1478 = vpop.f32.mrf.mxu0
    %v1479 = vadd.f32 %v1459, %v1478
    %1480 = vdwg.mxu0
    %v1481 = vmax.f32 %v1479, 0.0
    %v1482 = vld [vmem:[%s5] sm:$0xff]
    %v1483 = vld [vmem:[%s5 + $0x8] sm:$0xff]
    %v1484 = vld [vmem:[%s5 + $0x10] sm:$0xff]
    %v1485 = vld [vmem:[%s5 + $0x18] sm:$0xff]
    %v1486 = vld [vmem:[%s5 + $0x20] sm:$0xff]
    %v1487 = vld [vmem:[%s5 + $0x28] sm:$0xff]
    %v1488 = vld [vmem:[%s5 + $0x30] sm:$0xff]
    %v1489 = vld [vmem:[%s5 + $0x38] sm:$0xff]
    %v1490 = vld [vmem:[%s5 + $0x40] sm:$0xff]
    %v1491 = vld [vmem:[%s5 + $0x48] sm:$0xff]
    %v1492 = vld [vmem:[%s5 + $0x50] sm:$0xff]
    %v1493 = vld [vmem:[%s5 + $0x58] sm:$0xff]
    %v1494 = vld [vmem:[%s5 + $0x60] sm:$0xff]
    %v1495 = vld [vmem:[%s5 + $0x68] sm:$0xff]
    %v1496 = vld [vmem:[%s5 + $0x70] sm:$0xff]
    %v1497 = vld [vmem:[%s5 + $0x78] sm:$0xff]
    %v1498 = vld [vmem:[%s6] sm:$0x1]
    %v1500 = vperm.slane %v1498, 0
    %1502 = vmatpush.msra.mxu0 %v1497
    %1503 = vmatpush.msra.mxu0 %v1496
    %1504 = vmatpush.msra.mxu0 %v1495
    %1505 = vmatpush.msra.mxu0 %v1494
    %1506 = vmatpush.msra.mxu0 %v1493
    %1507 = vmatpush.msra.mxu0 %v1492
    %1508 = vmatpush.msra.mxu0 %v1491
    %1509 = vmatpush.msra.mxu0 %v1490
    %1510 = vmatpush.msra.mxu0 %v1489
    %1511 = vmatpush.msra.mxu0 %v1488
    %1512 = vmatpush.msra.mxu0 %v1487
    %1513 = vmatpush.msra.mxu0 %v1486
    %1514 = vmatpush.msra.mxu0 %v1485
    %1515 = vmatpush.msra.mxu0 %v1484
    %1516 = vmatpush.msra.mxu0 %v1483
    %1517 = vmatpush.msra.mxu0 %v1482
    %1518 = vmatmul.f32.gmra.mxu0 %v1481
    %v1519 = vpop.f32.mrf.mxu0
    %v1520 = vadd.f32 %v1500, %v1519
    %1521 = vdwg.mxu0
    %vm1522 = vcmask 74752
    %1523 = vst.msk [vmem:[#allocation4] sm:$0x3] %vm1522, %v1520
    // Predicated region
    $region30: #{basic_cnn_forward.3} parent=1 // pred_check
      _
    $region31: #{basic_cnn_forward.3} parent=1 // pred_check_branch
      %1525 = sbr.rel (0) target = $region33
    $region32: #{basic_cnn_forward.3} parent=1 // pred_region
      %1527 = vsyncadd [#allocation5], 0
      %s1529 = sshll.u32 [#allocation4], 4
      %s1530 = int_to_ptr.vmem [resolvable:$true] %s1529
      %s1531 = sshll.u32 %s7, 4
      %s1532 = int_to_ptr.hbm [resolvable:$true] %s1531
      %1534 = dma.vmem_to_hbm [thread:$0]  %s1530, 32, %s1532, [#allocation5]
    $region33: #{basic_cnn_forward.3} parent=1 // pred_fallthru
      _
    // Predicated region
    $region34: #{basic_cnn_forward.3} parent=1 // pred_check
      _
    $region35: #{basic_cnn_forward.3} parent=1 // pred_check_branch
      %1536 = sbr.rel (0) target = $region37
    $region36: #{basic_cnn_forward.3} parent=1 // pred_region
      %1538 = dma.done [#allocation5], 32
    $region37: #{basic_cnn_forward.3} parent=1 // pred_fallthru
      _
    %1539 = vsyncpa [#allocation5], 1

</llo_original>
